<compile_context>
chip_gen: v7x
topology: tpu7x:2x2x1
jax: 0.10.0
libtpu: 0.0.40
codegen_flags: <defaults>
</compile_context>

<pallas_src>
import functools
import math

import jax
import jax.numpy as jnp
import numpy as np
from jax.experimental import pallas as pl
from jax.experimental.pallas import tpu as pltpu


# ----------------------------- fused Pallas kernel ---------------------------

def _locnet_kernel(xp_ref, w1t_ref, b1_ref, w2t_ref, b2_ref,
                   wf1_ref, bf1_ref, wf2_ref, bf2_ref,
                   o_ref, xr1_ref, c1_ref, h1_ref, xr2_ref, *, bt):
    f32 = jnp.float32

    # ---- conv1 im2col (Toeplitz over width), built in-kernel -------------------
    # xp_ref[0, b, r*16 + q, jin] = image[b, 2*q + r, jin]    (zero padded lanes)
    # XR1 row (b, pi*12 + i1), lane (di*128 + jin) = image[b, 2*i1 + pi + di, jin]
    for pi in range(2):
        for di in range(5):
            e = pi + di
            src = (e % 2) * 16 + e // 2
            xr1_ref[:, pi * 12:pi * 12 + 12, di * 128:(di + 1) * 128] = \
                xp_ref[0, :, src:src + 12, :]

    # conv1: one (bt*24, 640) x (640, 512) matmul.
    # N layout = (pj, j1, oc): the j-pool is a max over two aligned 256-lane halves.
    c1_ref[...] = jnp.dot(xr1_ref[...].reshape(bt * 24, 640), w1t_ref[...],
                          preferred_element_type=f32).reshape(bt, 24, 512)

    # fused 2x2 max-pool + bias + ReLU  (rows: pi slabs, lanes: pj halves)
    h = jnp.maximum(c1_ref[:, :12, :], c1_ref[:, 12:, :])      # pool over row parity
    h = jnp.maximum(h[..., :256], h[..., 256:])                # pool over col parity
    h1_ref[...] = jnp.maximum(h + b1_ref[...], 0.0)            # (bt, 12, 256): (i1, j1*16+ch)

    # ---- conv2: 5 aligned lane-offset copies -> ONE K=1280 matmul --------------
    for di in range(5):
        xr2_ref[:, :, di * 256:(di + 1) * 256] = h1_ref[:, di:di + 8, :]
    c2 = jnp.dot(xr2_ref[...].reshape(bt * 8, 1280), w2t_ref[...],
                 preferred_element_type=f32).reshape(bt, 8, 256)

    # fused 2x2 max-pool + bias + ReLU + NCHW flatten for fc1
    c2 = jnp.maximum(c2[..., :128], c2[..., 128:])             # pool over col parity
    c2 = jnp.maximum(c2 + b2_ref[...], 0.0)                    # bias+ReLU (commutes with max)
    f1in = jnp.concatenate(
        [jnp.maximum(c2[:, 2 * i3, :], c2[:, 2 * i3 + 1, :]) for i3 in range(4)],
        axis=-1)                                               # (bt, 512): i3*128+j3*32+oc

    # ---- fc1 + ReLU, fc2 (128-lane padded, lane-dense output store) ------------
    f1 = jnp.maximum(jnp.dot(f1in, wf1_ref[...], preferred_element_type=f32)
                     + bf1_ref[...], 0.0)                      # (bt, 64)
    o_ref[0] = jnp.dot(f1, wf2_ref[...], preferred_element_type=f32) + bf2_ref[...]


# ------------------------------ wrapper / glue --------------------------------

def _pick_bt(batch):
    """Batch tile: biggest divisor that still gives >=2 grid steps (v7x megacore),
    capped at 16 so per-step scratch stays well under the v5e 16 MiB scoped VMEM."""
    if batch <= 1:
        return 1
    for bt in (16, 8, 4, 2, 1):
        if batch % bt == 0 and batch // bt >= 2:
            return bt
    return 1


@functools.partial(jax.jit, static_argnames=("num_out",))
def unbounded_grid_locnet_forward(x_nchw, params, num_out):
    """Eval-mode forward of UnBoundedGridLocNet.  x: (B, 1, 28, 28) float32."""
    # TODO(synk): Dropout2d / F.dropout are training-mode stochastic ops; implemented as
    # eval-mode identities.
    B = x_nchw.shape[0]
    bt = _pick_bt(B)
    nsteps = B // bt
    n_pad = params["wf2"].shape[1]

    # Parity-split + pad the image: xp[b, r*16 + q, j] = x[b, 0, 2*q + r, j], zeros elsewhere.
    x = x_nchw[:, 0].astype(jnp.float32)                       # (B, 28, 28)
    xp = x.reshape(B, 14, 2, 28).transpose(0, 2, 1, 3)         # (B, 2, 14, 28)
    xp = jnp.pad(xp, ((0, 0), (0, 0), (0, 2), (0, 100)))       # (B, 2, 16, 128)
    xp = xp.reshape(nsteps, bt, 32, 128)

    out = pl.pallas_call(
        functools.partial(_locnet_kernel, bt=bt),
        out_shape=jax.ShapeDtypeStruct((nsteps, bt, n_pad), jnp.float32),
        grid=(nsteps,),
        in_specs=[
            pl.BlockSpec((1, bt, 32, 128), lambda c: (c, 0, 0, 0)),   # parity-split image
            pl.BlockSpec((640, 512), lambda c: (0, 0)),               # conv1 Toeplitz weight
            pl.BlockSpec((1, 256), lambda c: (0, 0)),                 # conv1 bias row
            pl.BlockSpec((1280, 256), lambda c: (0, 0)),              # conv2 Toeplitz weight
            pl.BlockSpec((1, 128), lambda c: (0, 0)),                 # conv2 bias row
            pl.BlockSpec((512, 64), lambda c: (0, 0)),                # fc1 weight
            pl.BlockSpec((1, 64), lambda c: (0, 0)),                  # fc1 bias
            pl.BlockSpec((64, n_pad), lambda c: (0, 0)),              # fc2 weight
            pl.BlockSpec((1, n_pad), lambda c: (0, 0)),               # fc2 bias
        ],
        out_specs=pl.BlockSpec((1, bt, n_pad), lambda c: (c, 0, 0)),
        scratch_shapes=[
            pltpu.VMEM((bt, 24, 640), jnp.float32),    # conv1 im2col (Toeplitz rows)
            pltpu.VMEM((bt, 24, 512), jnp.float32),    # conv1 pre-pool output
            pltpu.VMEM((bt, 12, 256), jnp.float32),    # pooled conv1 feature map
            pltpu.VMEM((bt, 8, 1280), jnp.float32),    # conv2 im2col
        ],
        compiler_params=pltpu.CompilerParams(
            dimension_semantics=("parallel",)),
    )(xp, params["w1t"], params["b1"], params["w2t"], params["b2"],
      params["wf1"], params["bf1"], params["wf2"], params["bf2"])

    out = out.reshape(B, n_pad)[:, :num_out]
    return out.reshape(B, -1, 2)


# --------------------------- parameter preparation ----------------------------

def prepare_params(conv1_w, conv1_b, conv2_w, conv2_b, fc1_w, fc1_b, fc2_w, fc2_b):
    """Pack PyTorch-layout weights into padded Toeplitz / kernel-ready layouts (exact)."""
    conv1_w = np.asarray(conv1_w, np.float32); conv1_b = np.asarray(conv1_b, np.float32)
    conv2_w = np.asarray(conv2_w, np.float32); conv2_b = np.asarray(conv2_b, np.float32)
    fc1_w = np.asarray(fc1_w, np.float32);     fc1_b = np.asarray(fc1_b, np.float32)
    fc2_w = np.asarray(fc2_w, np.float32);     fc2_b = np.asarray(fc2_b, np.float32)
    num_out = fc2_w.shape[0]
    n_pad = max(128, ((num_out + 127) // 128) * 128)

    # conv1 Toeplitz weight: rows (di, jin<128), cols (pj, j1<16, oc<16).
    w1k = conv1_w[:, 0].transpose(1, 2, 0)                     # (5, 5, 10) = (di, dj, oc)
    w1t = np.zeros((5, 128, 2, 16, 16), np.float32)
    for di in range(5):
        for dj in range(5):
            for pj in range(2):
                for j1 in range(12):
                    w1t[di, 2 * j1 + pj + dj, pj, j1, :10] = w1k[di, dj]
    b1 = np.zeros((1, 256), np.float32)
    for j1 in range(12):
        b1[0, j1 * 16:j1 * 16 + 10] = conv1_b

    # conv2 Toeplitz weight: rows (di, j1<16, ch<16), cols (pj, j3, oc<32).
    w2k = conv2_w.transpose(2, 3, 1, 0)                        # (5, 5, 10, 20) = (di, dj, ic, oc)
    w2t = np.zeros((5, 16, 16, 2, 4, 32), np.float32)
    for di in range(5):
        for dj in range(5):
            for pj in range(2):
                for j3 in range(4):
                    w2t[di, 2 * j3 + pj + dj, :10, pj, j3, :20] = w2k[di, dj]
    b2 = np.zeros((1, 128), np.float32)
    for j3 in range(4):
        b2[0, j3 * 32:j3 * 32 + 20] = conv2_b

    # fc1: rows k = i3*128 + j3*32 + oc  (matches the kernel's pooled flatten order),
    # reproducing PyTorch's NCHW .view(-1, 320) index oc*16 + i3*4 + j3.
    wf1 = np.zeros((4, 4, 32, 64), np.float32)
    for oc in range(20):
        for i3 in range(4):
            for j3 in range(4):
                wf1[i3, j3, oc, :50] = fc1_w[:, oc * 16 + i3 * 4 + j3]
    bf1 = np.zeros((1, 64), np.float32)
    bf1[0, :50] = fc1_b

    # fc2: (num_out, 50) -> (64, n_pad), bias padded to n_pad lanes.
    wf2 = np.zeros((64, n_pad), np.float32)
    wf2[:50, :num_out] = fc2_w.T
    bf2 = np.zeros((1, n_pad), np.float32)
    bf2[0, :num_out] = fc2_b

    return {"w1t": jnp.asarray(w1t.reshape(640, 512)), "b1": jnp.asarray(b1),
            "w2t": jnp.asarray(w2t.reshape(1280, 256)), "b2": jnp.asarray(b2),
            "wf1": jnp.asarray(wf1.reshape(512, 64)), "bf1": jnp.asarray(bf1),
            "wf2": jnp.asarray(wf2), "bf2": jnp.asarray(bf2)}


def init_raw_params(key, num_output, target_control_points):
    """PyTorch-default init; fc2.weight <- 0, fc2.bias <- target control points."""
    ks = jax.random.split(key, 6)

    def u(k, shape, fan_in):
        bound = 1.0 / math.sqrt(fan_in)
        return jax.random.uniform(k, shape, jnp.float32, -bound, bound)

    conv1_w = u(ks[0], (10, 1, 5, 5), 1 * 5 * 5)
    conv1_b = u(ks[1], (10,), 1 * 5 * 5)
    conv2_w = u(ks[2], (20, 10, 5, 5), 10 * 5 * 5)
    conv2_b = u(ks[3], (20,), 10 * 5 * 5)
    fc1_w = u(ks[4], (50, 320), 320)
    fc1_b = u(ks[5], (50,), 320)
    fc2_w = jnp.zeros((num_output, 50), jnp.float32)
    fc2_b = target_control_points.reshape(-1).astype(jnp.float32)
    return (conv1_w, conv1_b, conv2_w, conv2_b, fc1_w, fc1_b, fc2_w, fc2_b)


# ------------------------------ pure-JAX reference -----------------------------

def _reference_forward(x_nchw, raw):
    conv1_w, conv1_b, conv2_w, conv2_b, fc1_w, fc1_b, fc2_w, fc2_b = raw
    dn = ("NCHW", "OIHW", "NCHW")
    y = jax.lax.conv_general_dilated(x_nchw, conv1_w, (1, 1), "VALID", dimension_numbers=dn)
    y = y + conv1_b[None, :, None, None]
    y = jax.lax.reduce_window(y, -jnp.inf, jax.lax.max, (1, 1, 2, 2), (1, 1, 2, 2), "VALID")
    y = jnp.maximum(y, 0.0)
    y = jax.lax.conv_general_dilated(y, conv2_w, (1, 1), "VALID", dimension_numbers=dn)
    y = y + conv2_b[None, :, None, None]
    y = jax.lax.reduce_window(y, -jnp.inf, jax.lax.max, (1, 1, 2, 2), (1, 1, 2, 2), "VALID")
    y = jnp.maximum(y, 0.0)
    y = y.reshape(y.shape[0], -1)
    y = jnp.maximum(y @ fc1_w.T + fc1_b, 0.0)
    y = y @ fc2_w.T + fc2_b
    return y.reshape(y.shape[0], -1, 2)


# --------------------------------- main ---------------------------------------

if __name__ == "__main__":
    grid_height, grid_width = 4, 5
    num_out = grid_height * grid_width * 2
    ys = jnp.linspace(-1.0, 1.0, grid_height)
    xs = jnp.linspace(-1.0, 1.0, grid_width)
    target_control_points = jnp.stack(
        jnp.meshgrid(ys, xs, indexing="ij"), axis=-1).reshape(-1, 2)   # (20, 2)

    key = jax.random.PRNGKey(0)
    k_param, k_x, k_chk = jax.random.split(key, 3)
    raw = init_raw_params(k_param, num_out, target_control_points)
    params = prepare_params(*raw)

    # Input must be (B, 1, 28, 28) -- the 320-dim fc1 fixes the spatial size.
    x = jax.random.normal(k_x, (2, 1, 28, 28), jnp.float32)

    # Self-check vs. a pure-JAX reference with a non-zero fc2 so every layer is exercised.
    raw_chk = list(raw)
    raw_chk[6] = jax.random.uniform(k_chk, (num_out, 50), jnp.float32,
                                    -1.0 / math.sqrt(50), 1.0 / math.sqrt(50))
    chk = unbounded_grid_locnet_forward(x, prepare_params(*raw_chk), num_out=num_out)
    ref = _reference_forward(x, raw_chk)
    np.testing.assert_allclose(np.asarray(chk), np.asarray(ref), rtol=5e-2, atol=5e-2)

    # Module-faithful run (fc2.weight == 0, fc2.bias == target control points).
    out = unbounded_grid_locnet_forward(x, params, num_out=num_out)
    jax.block_until_ready(out)

    assert out.shape == (2, grid_height * grid_width, 2), out.shape
    print("KERNEL_OK")
</pallas_src>

<mosaic_0001>
module attributes {stable_mosaic.version = 11 : i64} {
  func.func @_locnet_kernel(%arg0: i32, %arg1: memref<1x1x32x128xf32, #tpu.memory_space<vmem>>, %arg2: memref<640x512xf32, #tpu.memory_space<vmem>>, %arg3: memref<1x256xf32, #tpu.memory_space<vmem>>, %arg4: memref<1280x256xf32, #tpu.memory_space<vmem>>, %arg5: memref<1x128xf32, #tpu.memory_space<vmem>>, %arg6: memref<512x64xf32, #tpu.memory_space<vmem>>, %arg7: memref<1x64xf32, #tpu.memory_space<vmem>>, %arg8: memref<64x128xf32, #tpu.memory_space<vmem>>, %arg9: memref<1x128xf32, #tpu.memory_space<vmem>>, %arg10: memref<1x1x128xf32, #tpu.memory_space<vmem>>, %arg11: memref<1x24x640xf32, #tpu.memory_space<vmem>>, %arg12: memref<1x24x512xf32, #tpu.memory_space<vmem>>, %arg13: memref<1x12x256xf32, #tpu.memory_space<vmem>>, %arg14: memref<1x8x1280xf32, #tpu.memory_space<vmem>>) attributes {dimension_semantics = [#tpu.dimension_semantics<parallel>], iteration_bounds = array<i64: 2>, scalar_prefetch = 0 : i64, scratch_operands = 4 : i64, tpu.core_type = #tpu.core_type<tc>, window_params = [{transform_indices = @transform_0, window_bounds = array<i64: 1, 1, 32, 128>}, {pipeline_mode = #tpu.pipeline_mode<synchronous>, transform_indices = @transform_1, window_bounds = array<i64: 640, 512>}, {pipeline_mode = #tpu.pipeline_mode<synchronous>, transform_indices = @transform_2, window_bounds = array<i64: 1, 256>}, {pipeline_mode = #tpu.pipeline_mode<synchronous>, transform_indices = @transform_3, window_bounds = array<i64: 1280, 256>}, {pipeline_mode = #tpu.pipeline_mode<synchronous>, transform_indices = @transform_4, window_bounds = array<i64: 1, 128>}, {pipeline_mode = #tpu.pipeline_mode<synchronous>, transform_indices = @transform_5, window_bounds = array<i64: 512, 64>}, {pipeline_mode = #tpu.pipeline_mode<synchronous>, transform_indices = @transform_6, window_bounds = array<i64: 1, 64>}, {pipeline_mode = #tpu.pipeline_mode<synchronous>, transform_indices = @transform_7, window_bounds = array<i64: 64, 128>}, {pipeline_mode = #tpu.pipeline_mode<synchronous>, transform_indices = @transform_8, window_bounds = array<i64: 1, 128>}, {transform_indices = @transform_9, window_bounds = array<i64: 1, 1, 128>}]} {
    %c0 = arith.constant 0 : index
    %c0_0 = arith.constant 0 : index
    %c0_1 = arith.constant 0 : index
    %c0_2 = arith.constant 0 : index
    %0 = vector.load %arg1[%c0, %c0_0, %c0_1, %c0_2] : memref<1x1x32x128xf32, #tpu.memory_space<vmem>>, vector<1x1x12x128xf32>
    %1 = vector.shape_cast %0 : vector<1x1x12x128xf32> to vector<1x12x128xf32>
    %c0_3 = arith.constant 0 : index
    %c0_4 = arith.constant 0 : index
    %c0_5 = arith.constant 0 : index
    %2 = vector.load %arg11[%c0_3, %c0_4, %c0_5] : memref<1x24x640xf32, #tpu.memory_space<vmem>>, vector<1x12x128xf32>
    tpu.vector_store %arg11[%c0_3, %c0_4, %c0_5], %1 {strides = array<i32>} : memref<1x24x640xf32, #tpu.memory_space<vmem>>, vector<1x12x128xf32>,
    %c0_6 = arith.constant 0 : index
    %c0_7 = arith.constant 0 : index
    %c16 = arith.constant 16 : index
    %c0_8 = arith.constant 0 : index
    %3 = vector.load %arg1[%c0_6, %c0_7, %c16, %c0_8] : memref<1x1x32x128xf32, #tpu.memory_space<vmem>>, vector<1x1x12x128xf32>
    %4 = vector.shape_cast %3 : vector<1x1x12x128xf32> to vector<1x12x128xf32>
    %c0_9 = arith.constant 0 : index
    %c0_10 = arith.constant 0 : index
    %c128 = arith.constant 128 : index
    %5 = vector.load %arg11[%c0_9, %c0_10, %c128] : memref<1x24x640xf32, #tpu.memory_space<vmem>>, vector<1x12x128xf32>
    tpu.vector_store %arg11[%c0_9, %c0_10, %c128], %4 {strides = array<i32>} : memref<1x24x640xf32, #tpu.memory_space<vmem>>, vector<1x12x128xf32>,
    %c0_11 = arith.constant 0 : index
    %c0_12 = arith.constant 0 : index
    %c1 = arith.constant 1 : index
    %c0_13 = arith.constant 0 : index
    %6 = vector.load %arg1[%c0_11, %c0_12, %c1, %c0_13] : memref<1x1x32x128xf32, #tpu.memory_space<vmem>>, vector<1x1x12x128xf32>
    %7 = vector.shape_cast %6 : vector<1x1x12x128xf32> to vector<1x12x128xf32>
    %c0_14 = arith.constant 0 : index
    %c0_15 = arith.constant 0 : index
    %c256 = arith.constant 256 : index
    %8 = vector.load %arg11[%c0_14, %c0_15, %c256] : memref<1x24x640xf32, #tpu.memory_space<vmem>>, vector<1x12x128xf32>
    tpu.vector_store %arg11[%c0_14, %c0_15, %c256], %7 {strides = array<i32>} : memref<1x24x640xf32, #tpu.memory_space<vmem>>, vector<1x12x128xf32>,
    %c0_16 = arith.constant 0 : index
    %c0_17 = arith.constant 0 : index
    %c17 = arith.constant 17 : index
    %c0_18 = arith.constant 0 : index
    %9 = vector.load %arg1[%c0_16, %c0_17, %c17, %c0_18] : memref<1x1x32x128xf32, #tpu.memory_space<vmem>>, vector<1x1x12x128xf32>
    %10 = vector.shape_cast %9 : vector<1x1x12x128xf32> to vector<1x12x128xf32>
    %c0_19 = arith.constant 0 : index
    %c0_20 = arith.constant 0 : index
    %c384 = arith.constant 384 : index
    %11 = vector.load %arg11[%c0_19, %c0_20, %c384] : memref<1x24x640xf32, #tpu.memory_space<vmem>>, vector<1x12x128xf32>
    tpu.vector_store %arg11[%c0_19, %c0_20, %c384], %10 {strides = array<i32>} : memref<1x24x640xf32, #tpu.memory_space<vmem>>, vector<1x12x128xf32>,
    %c0_21 = arith.constant 0 : index
    %c0_22 = arith.constant 0 : index
    %c2 = arith.constant 2 : index
    %c0_23 = arith.constant 0 : index
    %12 = vector.load %arg1[%c0_21, %c0_22, %c2, %c0_23] : memref<1x1x32x128xf32, #tpu.memory_space<vmem>>, vector<1x1x12x128xf32>
    %13 = vector.shape_cast %12 : vector<1x1x12x128xf32> to vector<1x12x128xf32>
    %c0_24 = arith.constant 0 : index
    %c0_25 = arith.constant 0 : index
    %c512 = arith.constant 512 : index
    %14 = vector.load %arg11[%c0_24, %c0_25, %c512] : memref<1x24x640xf32, #tpu.memory_space<vmem>>, vector<1x12x128xf32>
    tpu.vector_store %arg11[%c0_24, %c0_25, %c512], %13 {strides = array<i32>} : memref<1x24x640xf32, #tpu.memory_space<vmem>>, vector<1x12x128xf32>,
    %c0_26 = arith.constant 0 : index
    %c0_27 = arith.constant 0 : index
    %c16_28 = arith.constant 16 : index
    %c0_29 = arith.constant 0 : index
    %15 = vector.load %arg1[%c0_26, %c0_27, %c16_28, %c0_29] : memref<1x1x32x128xf32, #tpu.memory_space<vmem>>, vector<1x1x12x128xf32>
    %16 = vector.shape_cast %15 : vector<1x1x12x128xf32> to vector<1x12x128xf32>
    %c0_30 = arith.constant 0 : index
    %c12 = arith.constant 12 : index
    %c0_31 = arith.constant 0 : index
    %17 = vector.load %arg11[%c0_30, %c12, %c0_31] : memref<1x24x640xf32, #tpu.memory_space<vmem>>, vector<1x12x128xf32>
    tpu.vector_store %arg11[%c0_30, %c12, %c0_31], %16 {strides = array<i32>} : memref<1x24x640xf32, #tpu.memory_space<vmem>>, vector<1x12x128xf32>,
    %c0_32 = arith.constant 0 : index
    %c0_33 = arith.constant 0 : index
    %c1_34 = arith.constant 1 : index
    %c0_35 = arith.constant 0 : index
    %18 = vector.load %arg1[%c0_32, %c0_33, %c1_34, %c0_35] : memref<1x1x32x128xf32, #tpu.memory_space<vmem>>, vector<1x1x12x128xf32>
    %19 = vector.shape_cast %18 : vector<1x1x12x128xf32> to vector<1x12x128xf32>
    %c0_36 = arith.constant 0 : index
    %c12_37 = arith.constant 12 : index
    %c128_38 = arith.constant 128 : index
    %20 = vector.load %arg11[%c0_36, %c12_37, %c128_38] : memref<1x24x640xf32, #tpu.memory_space<vmem>>, vector<1x12x128xf32>
    tpu.vector_store %arg11[%c0_36, %c12_37, %c128_38], %19 {strides = array<i32>} : memref<1x24x640xf32, #tpu.memory_space<vmem>>, vector<1x12x128xf32>,
    %c0_39 = arith.constant 0 : index
    %c0_40 = arith.constant 0 : index
    %c17_41 = arith.constant 17 : index
    %c0_42 = arith.constant 0 : index
    %21 = vector.load %arg1[%c0_39, %c0_40, %c17_41, %c0_42] : memref<1x1x32x128xf32, #tpu.memory_space<vmem>>, vector<1x1x12x128xf32>
    %22 = vector.shape_cast %21 : vector<1x1x12x128xf32> to vector<1x12x128xf32>
    %c0_43 = arith.constant 0 : index
    %c12_44 = arith.constant 12 : index
    %c256_45 = arith.constant 256 : index
    %23 = vector.load %arg11[%c0_43, %c12_44, %c256_45] : memref<1x24x640xf32, #tpu.memory_space<vmem>>, vector<1x12x128xf32>
    tpu.vector_store %arg11[%c0_43, %c12_44, %c256_45], %22 {strides = array<i32>} : memref<1x24x640xf32, #tpu.memory_space<vmem>>, vector<1x12x128xf32>,
    %c0_46 = arith.constant 0 : index
    %c0_47 = arith.constant 0 : index
    %c2_48 = arith.constant 2 : index
    %c0_49 = arith.constant 0 : index
    %24 = vector.load %arg1[%c0_46, %c0_47, %c2_48, %c0_49] : memref<1x1x32x128xf32, #tpu.memory_space<vmem>>, vector<1x1x12x128xf32>
    %25 = vector.shape_cast %24 : vector<1x1x12x128xf32> to vector<1x12x128xf32>
    %c0_50 = arith.constant 0 : index
    %c12_51 = arith.constant 12 : index
    %c384_52 = arith.constant 384 : index
    %26 = vector.load %arg11[%c0_50, %c12_51, %c384_52] : memref<1x24x640xf32, #tpu.memory_space<vmem>>, vector<1x12x128xf32>
    tpu.vector_store %arg11[%c0_50, %c12_51, %c384_52], %25 {strides = array<i32>} : memref<1x24x640xf32, #tpu.memory_space<vmem>>, vector<1x12x128xf32>,
    %c0_53 = arith.constant 0 : index
    %c0_54 = arith.constant 0 : index
    %c18 = arith.constant 18 : index
    %c0_55 = arith.constant 0 : index
    %27 = vector.load %arg1[%c0_53, %c0_54, %c18, %c0_55] : memref<1x1x32x128xf32, #tpu.memory_space<vmem>>, vector<1x1x12x128xf32>
    %28 = vector.shape_cast %27 : vector<1x1x12x128xf32> to vector<1x12x128xf32>
    %c0_56 = arith.constant 0 : index
    %c12_57 = arith.constant 12 : index
    %c512_58 = arith.constant 512 : index
    %29 = vector.load %arg11[%c0_56, %c12_57, %c512_58] : memref<1x24x640xf32, #tpu.memory_space<vmem>>, vector<1x12x128xf32>
    tpu.vector_store %arg11[%c0_56, %c12_57, %c512_58], %28 {strides = array<i32>} : memref<1x24x640xf32, #tpu.memory_space<vmem>>, vector<1x12x128xf32>,
    %c0_59 = arith.constant 0 : index
    %c0_60 = arith.constant 0 : index
    %c0_61 = arith.constant 0 : index
    %30 = vector.load %arg11[%c0_59, %c0_60, %c0_61] : memref<1x24x640xf32, #tpu.memory_space<vmem>>, vector<1x24x640xf32>
    %31 = vector.shape_cast %30 : vector<1x24x640xf32> to vector<24x640xf32>
    %c0_62 = arith.constant 0 : index
    %c0_63 = arith.constant 0 : index
    %32 = vector.load %arg2[%c0_62, %c0_63] : memref<640x512xf32, #tpu.memory_space<vmem>>, vector<640x512xf32>
    %cst = arith.constant dense<0.000000e+00> : vector<24x512xf32>
    %33 = tpu.matmul %31, %32, %cst {dimension_numbers = #tpu.dot_dimension_numbers<[1], [0], [0], [1], [0, 0, 1, 1], [], []>} : vector<24x640xf32>, vector<640x512xf32>, vector<24x512xf32> -> vector<24x512xf32>
    %34 = vector.shape_cast %33 : vector<24x512xf32> to vector<1x24x512xf32>
    %c0_64 = arith.constant 0 : index
    %c0_65 = arith.constant 0 : index
    %c0_66 = arith.constant 0 : index
    %35 = vector.load %arg12[%c0_64, %c0_65, %c0_66] : memref<1x24x512xf32, #tpu.memory_space<vmem>>, vector<1x24x512xf32>
    tpu.vector_store %arg12[%c0_64, %c0_65, %c0_66], %34 {strides = array<i32>} : memref<1x24x512xf32, #tpu.memory_space<vmem>>, vector<1x24x512xf32>,
    %c0_67 = arith.constant 0 : index
    %c0_68 = arith.constant 0 : index
    %c0_69 = arith.constant 0 : index
    %36 = vector.load %arg12[%c0_67, %c0_68, %c0_69] : memref<1x24x512xf32, #tpu.memory_space<vmem>>, vector<1x12x512xf32>
    %c0_70 = arith.constant 0 : index
    %c12_71 = arith.constant 12 : index
    %c0_72 = arith.constant 0 : index
    %37 = vector.load %arg12[%c0_70, %c12_71, %c0_72] : memref<1x24x512xf32, #tpu.memory_space<vmem>>, vector<1x12x512xf32>
    %38 = arith.maximumf %36, %37 : vector<1x12x512xf32>
    %39 = vector.extract_strided_slice %38 {offsets = [0, 0, 0], sizes = [1, 12, 256], strides = [1, 1, 1]} : vector<1x12x512xf32> to vector<1x12x256xf32>
    %40 = vector.extract_strided_slice %38 {offsets = [0, 0, 256], sizes = [1, 12, 256], strides = [1, 1, 1]} : vector<1x12x512xf32> to vector<1x12x256xf32>
    %41 = arith.maximumf %39, %40 : vector<1x12x256xf32>
    %c0_73 = arith.constant 0 : index
    %c0_74 = arith.constant 0 : index
    %42 = vector.load %arg3[%c0_73, %c0_74] : memref<1x256xf32, #tpu.memory_space<vmem>>, vector<1x256xf32>
    %43 = vector.shape_cast %42 : vector<1x256xf32> to vector<1x1x256xf32>
    %44 = vector.broadcast %43 : vector<1x1x256xf32> to vector<1x12x256xf32>
    %45 = arith.addf %41, %44 : vector<1x12x256xf32>
    %cst_75 = arith.constant 0.000000e+00 : f32
    %46 = vector.broadcast %cst_75 : f32 to vector<1x12x256xf32>
    %47 = arith.maximumf %45, %46 : vector<1x12x256xf32>
    %c0_76 = arith.constant 0 : index
    %c0_77 = arith.constant 0 : index
    %c0_78 = arith.constant 0 : index
    %48 = vector.load %arg13[%c0_76, %c0_77, %c0_78] : memref<1x12x256xf32, #tpu.memory_space<vmem>>, vector<1x12x256xf32>
    tpu.vector_store %arg13[%c0_76, %c0_77, %c0_78], %47 {strides = array<i32>} : memref<1x12x256xf32, #tpu.memory_space<vmem>>, vector<1x12x256xf32>,
    %c0_79 = arith.constant 0 : index
    %c0_80 = arith.constant 0 : index
    %c0_81 = arith.constant 0 : index
    %49 = vector.load %arg13[%c0_79, %c0_80, %c0_81] : memref<1x12x256xf32, #tpu.memory_space<vmem>>, vector<1x8x256xf32>
    %c0_82 = arith.constant 0 : index
    %c0_83 = arith.constant 0 : index
    %c0_84 = arith.constant 0 : index
    %50 = vector.load %arg14[%c0_82, %c0_83, %c0_84] : memref<1x8x1280xf32, #tpu.memory_space<vmem>>, vector<1x8x256xf32>
    tpu.vector_store %arg14[%c0_82, %c0_83, %c0_84], %49 {strides = array<i32>} : memref<1x8x1280xf32, #tpu.memory_space<vmem>>, vector<1x8x256xf32>,
    %c0_85 = arith.constant 0 : index
    %c1_86 = arith.constant 1 : index
    %c0_87 = arith.constant 0 : index
    %51 = vector.load %arg13[%c0_85, %c1_86, %c0_87] : memref<1x12x256xf32, #tpu.memory_space<vmem>>, vector<1x8x256xf32>
    %c0_88 = arith.constant 0 : index
    %c0_89 = arith.constant 0 : index
    %c256_90 = arith.constant 256 : index
    %52 = vector.load %arg14[%c0_88, %c0_89, %c256_90] : memref<1x8x1280xf32, #tpu.memory_space<vmem>>, vector<1x8x256xf32>
    tpu.vector_store %arg14[%c0_88, %c0_89, %c256_90], %51 {strides = array<i32>} : memref<1x8x1280xf32, #tpu.memory_space<vmem>>, vector<1x8x256xf32>,
    %c0_91 = arith.constant 0 : index
    %c2_92 = arith.constant 2 : index
    %c0_93 = arith.constant 0 : index
    %53 = vector.load %arg13[%c0_91, %c2_92, %c0_93] : memref<1x12x256xf32, #tpu.memory_space<vmem>>, vector<1x8x256xf32>
    %c0_94 = arith.constant 0 : index
    %c0_95 = arith.constant 0 : index
    %c512_96 = arith.constant 512 : index
    %54 = vector.load %arg14[%c0_94, %c0_95, %c512_96] : memref<1x8x1280xf32, #tpu.memory_space<vmem>>, vector<1x8x256xf32>
    tpu.vector_store %arg14[%c0_94, %c0_95, %c512_96], %53 {strides = array<i32>} : memref<1x8x1280xf32, #tpu.memory_space<vmem>>, vector<1x8x256xf32>,
    %c0_97 = arith.constant 0 : index
    %c3 = arith.constant 3 : index
    %c0_98 = arith.constant 0 : index
    %55 = vector.load %arg13[%c0_97, %c3, %c0_98] : memref<1x12x256xf32, #tpu.memory_space<vmem>>, vector<1x8x256xf32>
    %c0_99 = arith.constant 0 : index
    %c0_100 = arith.constant 0 : index
    %c768 = arith.constant 768 : index
    %56 = vector.load %arg14[%c0_99, %c0_100, %c768] : memref<1x8x1280xf32, #tpu.memory_space<vmem>>, vector<1x8x256xf32>
    tpu.vector_store %arg14[%c0_99, %c0_100, %c768], %55 {strides = array<i32>} : memref<1x8x1280xf32, #tpu.memory_space<vmem>>, vector<1x8x256xf32>,
    %c0_101 = arith.constant 0 : index
    %c4 = arith.constant 4 : index
    %c0_102 = arith.constant 0 : index
    %57 = vector.load %arg13[%c0_101, %c4, %c0_102] : memref<1x12x256xf32, #tpu.memory_space<vmem>>, vector<1x8x256xf32>
    %c0_103 = arith.constant 0 : index
    %c0_104 = arith.constant 0 : index
    %c1024 = arith.constant 1024 : index
    %58 = vector.load %arg14[%c0_103, %c0_104, %c1024] : memref<1x8x1280xf32, #tpu.memory_space<vmem>>, vector<1x8x256xf32>
    tpu.vector_store %arg14[%c0_103, %c0_104, %c1024], %57 {strides = array<i32>} : memref<1x8x1280xf32, #tpu.memory_space<vmem>>, vector<1x8x256xf32>,
    %c0_105 = arith.constant 0 : index
    %c0_106 = arith.constant 0 : index
    %c0_107 = arith.constant 0 : index
    %59 = vector.load %arg14[%c0_105, %c0_106, %c0_107] : memref<1x8x1280xf32, #tpu.memory_space<vmem>>, vector<1x8x1280xf32>
    %60 = vector.shape_cast %59 : vector<1x8x1280xf32> to vector<8x1280xf32>
    %c0_108 = arith.constant 0 : index
    %c0_109 = arith.constant 0 : index
    %61 = vector.load %arg4[%c0_108, %c0_109] : memref<1280x256xf32, #tpu.memory_space<vmem>>, vector<1280x256xf32>
    %cst_110 = arith.constant dense<0.000000e+00> : vector<8x256xf32>
    %62 = tpu.matmul %60, %61, %cst_110 {dimension_numbers = #tpu.dot_dimension_numbers<[1], [0], [0], [1], [0, 0, 1, 1], [], []>} : vector<8x1280xf32>, vector<1280x256xf32>, vector<8x256xf32> -> vector<8x256xf32>
    %63 = vector.shape_cast %62 : vector<8x256xf32> to vector<1x8x256xf32>
    %64 = vector.extract_strided_slice %63 {offsets = [0, 0, 0], sizes = [1, 8, 128], strides = [1, 1, 1]} : vector<1x8x256xf32> to vector<1x8x128xf32>
    %65 = vector.extract_strided_slice %63 {offsets = [0, 0, 128], sizes = [1, 8, 128], strides = [1, 1, 1]} : vector<1x8x256xf32> to vector<1x8x128xf32>
    %66 = arith.maximumf %64, %65 : vector<1x8x128xf32>
    %c0_111 = arith.constant 0 : index
    %c0_112 = arith.constant 0 : index
    %67 = vector.load %arg5[%c0_111, %c0_112] : memref<1x128xf32, #tpu.memory_space<vmem>>, vector<1x128xf32>
    %68 = vector.shape_cast %67 : vector<1x128xf32> to vector<1x1x128xf32>
    %69 = vector.broadcast %68 : vector<1x1x128xf32> to vector<1x8x128xf32>
    %70 = arith.addf %66, %69 : vector<1x8x128xf32>
    %cst_113 = arith.constant 0.000000e+00 : f32
    %71 = vector.broadcast %cst_113 : f32 to vector<1x8x128xf32>
    %72 = arith.maximumf %70, %71 : vector<1x8x128xf32>
    %73 = vector.extract_strided_slice %72 {offsets = [0, 0, 0], sizes = [1, 1, 128], strides = [1, 1, 1]} : vector<1x8x128xf32> to vector<1x1x128xf32>
    %74 = vector.shape_cast %73 : vector<1x1x128xf32> to vector<1x128xf32>
    %75 = vector.extract_strided_slice %72 {offsets = [0, 1, 0], sizes = [1, 1, 128], strides = [1, 1, 1]} : vector<1x8x128xf32> to vector<1x1x128xf32>
    %76 = vector.shape_cast %75 : vector<1x1x128xf32> to vector<1x128xf32>
    %77 = arith.maximumf %74, %76 : vector<1x128xf32>
    %78 = vector.extract_strided_slice %72 {offsets = [0, 2, 0], sizes = [1, 1, 128], strides = [1, 1, 1]} : vector<1x8x128xf32> to vector<1x1x128xf32>
    %79 = vector.shape_cast %78 : vector<1x1x128xf32> to vector<1x128xf32>
    %80 = vector.extract_strided_slice %72 {offsets = [0, 3, 0], sizes = [1, 1, 128], strides = [1, 1, 1]} : vector<1x8x128xf32> to vector<1x1x128xf32>
    %81 = vector.shape_cast %80 : vector<1x1x128xf32> to vector<1x128xf32>
    %82 = arith.maximumf %79, %81 : vector<1x128xf32>
    %83 = vector.extract_strided_slice %72 {offsets = [0, 4, 0], sizes = [1, 1, 128], strides = [1, 1, 1]} : vector<1x8x128xf32> to vector<1x1x128xf32>
    %84 = vector.shape_cast %83 : vector<1x1x128xf32> to vector<1x128xf32>
    %85 = vector.extract_strided_slice %72 {offsets = [0, 5, 0], sizes = [1, 1, 128], strides = [1, 1, 1]} : vector<1x8x128xf32> to vector<1x1x128xf32>
    %86 = vector.shape_cast %85 : vector<1x1x128xf32> to vector<1x128xf32>
    %87 = arith.maximumf %84, %86 : vector<1x128xf32>
    %88 = vector.extract_strided_slice %72 {offsets = [0, 6, 0], sizes = [1, 1, 128], strides = [1, 1, 1]} : vector<1x8x128xf32> to vector<1x1x128xf32>
    %89 = vector.shape_cast %88 : vector<1x1x128xf32> to vector<1x128xf32>
    %90 = vector.extract_strided_slice %72 {offsets = [0, 7, 0], sizes = [1, 1, 128], strides = [1, 1, 1]} : vector<1x8x128xf32> to vector<1x1x128xf32>
    %91 = vector.shape_cast %90 : vector<1x1x128xf32> to vector<1x128xf32>
    %92 = arith.maximumf %89, %91 : vector<1x128xf32>
    %93 = tpu.concatenate %77, %82, %87, %92 in 1 : vector<1x128xf32>, vector<1x128xf32>, vector<1x128xf32>, vector<1x128xf32> -> vector<1x512xf32>
    %c0_114 = arith.constant 0 : index
    %c0_115 = arith.constant 0 : index
    %94 = vector.load %arg6[%c0_114, %c0_115] : memref<512x64xf32, #tpu.memory_space<vmem>>, vector<512x64xf32>
    %cst_116 = arith.constant dense<0.000000e+00> : vector<1x64xf32>
    %95 = tpu.matmul %93, %94, %cst_116 {dimension_numbers = #tpu.dot_dimension_numbers<[1], [0], [0], [1], [0, 0, 1, 1], [], []>} : vector<1x512xf32>, vector<512x64xf32>, vector<1x64xf32> -> vector<1x64xf32>
    %c0_117 = arith.constant 0 : index
    %c0_118 = arith.constant 0 : index
    %96 = vector.load %arg7[%c0_117, %c0_118] : memref<1x64xf32, #tpu.memory_space<vmem>>, vector<1x64xf32>
    %97 = arith.addf %95, %96 : vector<1x64xf32>
    %cst_119 = arith.constant 0.000000e+00 : f32
    %98 = vector.broadcast %cst_119 : f32 to vector<1x64xf32>
    %99 = arith.maximumf %97, %98 : vector<1x64xf32>
    %c0_120 = arith.constant 0 : index
    %c0_121 = arith.constant 0 : index
    %100 = vector.load %arg8[%c0_120, %c0_121] : memref<64x128xf32, #tpu.memory_space<vmem>>, vector<64x128xf32>
    %cst_122 = arith.constant dense<0.000000e+00> : vector<1x128xf32>
    %101 = tpu.matmul %99, %100, %cst_122 {dimension_numbers = #tpu.dot_dimension_numbers<[1], [0], [0], [1], [0, 0, 1, 1], [], []>} : vector<1x64xf32>, vector<64x128xf32>, vector<1x128xf32> -> vector<1x128xf32>
    %c0_123 = arith.constant 0 : index
    %c0_124 = arith.constant 0 : index
    %102 = vector.load %arg9[%c0_123, %c0_124] : memref<1x128xf32, #tpu.memory_space<vmem>>, vector<1x128xf32>
    %103 = arith.addf %101, %102 : vector<1x128xf32>
    %c0_125 = arith.constant 0 : index
    %c0_126 = arith.constant 0 : index
    %c0_127 = arith.constant 0 : index
    %104 = vector.load %arg10[%c0_125, %c0_126, %c0_127] : memref<1x1x128xf32, #tpu.memory_space<vmem>>, vector<1x1x128xf32>
    %105 = vector.shape_cast %104 : vector<1x1x128xf32> to vector<1x128xf32>
    %106 = vector.shape_cast %103 : vector<1x128xf32> to vector<1x1x128xf32>
    tpu.vector_store %arg10[%c0_125, %c0_126, %c0_127], %106 {strides = array<i32>} : memref<1x1x128xf32, #tpu.memory_space<vmem>>, vector<1x1x128xf32>,
    return
  }
  func.func @transform_0(%arg0: i32) -> (i32, i32, i32, i32) {
    %c0_i32 = arith.constant 0 : i32
    %c0_i32_0 = arith.constant 0 : i32
    %c0_i32_1 = arith.constant 0 : i32
    %c0_i32_2 = arith.constant 0 : i32
    return %arg0, %c0_i32, %c0_i32_0, %c0_i32_1 : i32, i32, i32, i32
  }
  func.func @transform_1(%arg0: i32) -> (i32, i32) {
    %c0_i32 = arith.constant 0 : i32
    %c0_i32_0 = arith.constant 0 : i32
    %c0_i32_1 = arith.constant 0 : i32
    return %c0_i32, %c0_i32_0 : i32, i32
  }
  func.func @transform_2(%arg0: i32) -> (i32, i32) {
    %c0_i32 = arith.constant 0 : i32
    %c0_i32_0 = arith.constant 0 : i32
    %c0_i32_1 = arith.constant 0 : i32
    return %c0_i32, %c0_i32_0 : i32, i32
  }
  func.func @transform_3(%arg0: i32) -> (i32, i32) {
    %c0_i32 = arith.constant 0 : i32
    %c0_i32_0 = arith.constant 0 : i32
    %c0_i32_1 = arith.constant 0 : i32
    return %c0_i32, %c0_i32_0 : i32, i32
  }
  func.func @transform_4(%arg0: i32) -> (i32, i32) {
    %c0_i32 = arith.constant 0 : i32
    %c0_i32_0 = arith.constant 0 : i32
    %c0_i32_1 = arith.constant 0 : i32
    return %c0_i32, %c0_i32_0 : i32, i32
  }
  func.func @transform_5(%arg0: i32) -> (i32, i32) {
    %c0_i32 = arith.constant 0 : i32
    %c0_i32_0 = arith.constant 0 : i32
    %c0_i32_1 = arith.constant 0 : i32
    return %c0_i32, %c0_i32_0 : i32, i32
  }
  func.func @transform_6(%arg0: i32) -> (i32, i32) {
    %c0_i32 = arith.constant 0 : i32
    %c0_i32_0 = arith.constant 0 : i32
    %c0_i32_1 = arith.constant 0 : i32
    return %c0_i32, %c0_i32_0 : i32, i32
  }
  func.func @transform_7(%arg0: i32) -> (i32, i32) {
    %c0_i32 = arith.constant 0 : i32
    %c0_i32_0 = arith.constant 0 : i32
    %c0_i32_1 = arith.constant 0 : i32
    return %c0_i32, %c0_i32_0 : i32, i32
  }
  func.func @transform_8(%arg0: i32) -> (i32, i32) {
    %c0_i32 = arith.constant 0 : i32
    %c0_i32_0 = arith.constant 0 : i32
    %c0_i32_1 = arith.constant 0 : i32
    return %c0_i32, %c0_i32_0 : i32, i32
  }
  func.func @transform_9(%arg0: i32) -> (i32, i32, i32) {
    %c0_i32 = arith.constant 0 : i32
    %c0_i32_0 = arith.constant 0 : i32
    %c0_i32_1 = arith.constant 0 : i32
    return %arg0, %c0_i32, %c0_i32_0 : i32, i32, i32
  }
}

</mosaic_0001>

<llo_original>
// kernel: unbounded_grid_locnet_forward.1
$region0: #{unbounded_grid_locnet_forward.1}
  #allocation0 [shape = 'u32[]', space=smem, size = 0x4, offset = 0x4, fixed_abs, tag = 'smem constant byte address 0x4 - core index']
  #allocation1 [shape = 'u32[144,128]{1,0:T(1,128)}', space=vmem, size = 0x12000, scoped, tag = 'internal scratch']
  #allocation2 [shape = 'f32[1,24,640]{2,1,0:T(8,128)}', space=vmem, size = 0xf000, scoped, tag = 'scratch operand']
  #allocation3 [shape = 'f32[1,24,512]{2,1,0:T(8,128)}', space=vmem, size = 0xc000, scoped, tag = 'scratch operand']
  #allocation4 [shape = 'f32[1,12,256]{2,1,0:T(8,128)}', space=vmem, size = 0x4000, scoped, tag = 'scratch operand']
  #allocation5 [shape = 'f32[1,8,1280]{2,1,0:T(8,128)}', space=vmem, size = 0xa000, scoped, tag = 'scratch operand']
  %s0 = inlined_call_operand.vmem [shape: f32[2,1,32,128], index: 0, kind: input, shape index: {}]
  %s1 = inlined_call_operand.hbm [shape: f32[640,512], index: 1, kind: input, shape index: {}]
  %s2 = inlined_call_operand.hbm [shape: f32[1,256], index: 2, kind: input, shape index: {}]
  %s3 = inlined_call_operand.hbm [shape: f32[1280,256], index: 3, kind: input, shape index: {}]
  %s4 = inlined_call_operand.hbm [shape: f32[1,128], index: 4, kind: input, shape index: {}]
  %s5 = inlined_call_operand.vmem [shape: f32[512,64], index: 5, kind: input, shape index: {}]
  %s6 = inlined_call_operand.hbm [shape: f32[1,64], index: 6, kind: input, shape index: {}]
  %s7 = inlined_call_operand.hbm [shape: f32[64,128], index: 7, kind: input, shape index: {}]
  %s8 = inlined_call_operand.hbm [shape: f32[1,128], index: 8, kind: input, shape index: {}]
  %s9 = inlined_call_operand.vmem [shape: f32[2,1,128], index: 9, kind: output, shape index: {}]
  %s10 = sld [smem:[#allocation0]]
  $region97: #{unbounded_grid_locnet_forward.1} parent=0
    _
  %s12 = ssub.s32 1, %s10
  %s13 = scalar_select 0, %s12, %s10
  $region1: #{unbounded_grid_locnet_forward.1} parent=0
    #allocation6 [shape = 'u8[1310720]{0}', space=vmem, size = 0x140000, scoped, tag = 'input window, operand 1, single buffered']
    #allocation7 [shape = 's32[2]{0}', space=sflag, size = 0x8, scoped, tag = 'scoped memory for unbounded_grid_locnet_forward.1']
    #allocation8 [shape = 'u8[1024]{0}', space=vmem, size = 0x400, scoped, tag = 'input window, operand 2, single buffered']
    #allocation9 [shape = 's32[1]{0}', space=sflag, size = 0x4, scoped, tag = 'scoped memory for unbounded_grid_locnet_forward.1']
    #allocation10 [shape = 'u8[1310720]{0}', space=vmem, size = 0x140000, scoped, tag = 'input window, operand 3, single buffered']
    #allocation11 [shape = 'u8[512]{0}', space=vmem, size = 0x400, scoped, tag = 'input window, operand 4, single buffered']
    #allocation12 [shape = 's32[1]{0}', space=sflag, size = 0x4, scoped, tag = 'scoped memory for unbounded_grid_locnet_forward.1']
    #allocation13 [shape = 'u8[512]{0}', space=vmem, size = 0x400, scoped, tag = 'input window, operand 6, single buffered']
    #allocation14 [shape = 'u8[32768]{0}', space=vmem, size = 0x8000, scoped, tag = 'input window, operand 7, single buffered']
    #allocation15 [shape = 's32[1]{0}', space=sflag, size = 0x4, scoped, tag = 'scoped memory for unbounded_grid_locnet_forward.1']
    #allocation16 [shape = 'u8[512]{0}', space=vmem, size = 0x400, scoped, tag = 'input window, operand 8, single buffered']
    %14 = vsyncpa [#allocation7], 0
    %15 = vsyncpa [#allocation9], 0
    %16 = vsyncpa [#allocation12], 0
    %17 = vsyncpa [#allocation15], 0
    loop: start=0, step=1, limit=4
    $region2: #{unbounded_grid_locnet_forward.1} parent=1 // loop_pre_header
      _
    $region3: #{unbounded_grid_locnet_forward.1} parent=1 // loop_header
      %s19 = sphi 0, %s23
      %p20 = scmp.ge.s32.totalorder %s19, 4
      %s29 = sphi 0, %s31
      %s32 = sphi 0, %s29
      %s33 = sphi 0, %s32
      %s49 = sphi 0, %s33
      %s53 = sphi 0, %s53
      %s55 = sphi 0, %s53
      %s56 = sphi 0, %s55
      %s70 = sphi 0, %s56
      %s74 = sphi 0, %s74
      %s76 = sphi 0, %s74
      %s77 = sphi 0, %s76
      %s91 = sphi 0, %s77
      %s95 = sphi 0, %s95
      %s97 = sphi 0, %s95
      %s98 = sphi 0, %s97
      %s112 = sphi 0, %s98
      %s116 = sphi 0, %s116
      %s118 = sphi 0, %s116
      %s119 = sphi 0, %s118
      %s133 = sphi 0, %s119
      %s137 = sphi 0, %s137
      %s139 = sphi 0, %s137
      %s140 = sphi 0, %s139
      %s154 = sphi 0, %s140
      %s158 = sphi 0, %s158
      %s160 = sphi 0, %s158
      %s161 = sphi 0, %s160
      %s175 = sphi 0, %s161
      %s179 = sphi 0, %s179
      %s181 = sphi 0, %s179
      %s182 = sphi 0, %s181
      %s196 = sphi 0, %s182
      %s200 = sphi 0, %s200
      %s202 = sphi 0, %s200
      %s203 = sphi 0, %s202
      %s217 = sphi 0, %s203
      %s223 = sphi 0, %s225
      %s226 = sphi 0, %s223
      %s227 = sphi 0, %s226
      %s243 = sphi 0, %s227
    $region4: #{unbounded_grid_locnet_forward.1} parent=1 // loop_header_branch
      %22 = sbr.rel (%p20) target = $region8
    $region5: #{unbounded_grid_locnet_forward.1} parent=1 // loop_body
      %s24 = ssub.s32 %s19, 1
      %s25 = ssub.s32 %s19, 2
      %s26 = sadd.s32 %s19, 1
      %s27 = ssub.s32 %s19, %s26
      %p28 = scmp.eq.s32.totalorder %s27, 0
      %s30 = sadd.s32 %s29, 1
      %s31 = scalar_select %p28, %s29, %s30
      %p34 = pneg %p28
      %p35 = scmp.eq.s32.totalorder %s19, 1
      %p36 = por %p34, %p35
      %p37 = scmp.ne.s32.totalorder %s29, %s32
      %p38 = scmp.eq.s32.totalorder %s19, 0
      %p39 = por %p37, %p38
      %p40 = scmp.ne.s32.totalorder %s29, %s32
      %p41 = scmp.eq.s32.totalorder %s24, 1
      %p42 = por %p40, %p41
      %p43 = scmp.ne.s32.totalorder %s32, %s33
      %p44 = scmp.eq.s32.totalorder %s24, 0
      %p45 = por %p43, %p44
      %p46 = scmp.ne.s32.totalorder %s32, %s33
      %p47 = scmp.eq.s32.totalorder %s25, 1
      %p48 = por %p46, %p47
      %p50 = scmp.ne.s32.totalorder %s33, %s49
      %p51 = scmp.eq.s32.totalorder %s25, 0
      %p52 = por %p50, %p51
      %s54 = sadd.s32 %s53, 1
      %p57 = scmp.eq.s32.totalorder %s19, 1
      %p58 = scmp.ne.s32.totalorder %s53, %s55
      %p59 = scmp.eq.s32.totalorder %s19, 0
      %p60 = por %p58, %p59
      %p61 = scmp.ne.s32.totalorder %s53, %s55
      %p62 = scmp.eq.s32.totalorder %s24, 1
      %p63 = por %p61, %p62
      %p64 = scmp.ne.s32.totalorder %s55, %s56
      %p65 = scmp.eq.s32.totalorder %s24, 0
      %p66 = por %p64, %p65
      %p67 = scmp.ne.s32.totalorder %s55, %s56
      %p68 = scmp.eq.s32.totalorder %s25, 1
      %p69 = por %p67, %p68
      %p71 = scmp.ne.s32.totalorder %s56, %s70
      %p72 = scmp.eq.s32.totalorder %s25, 0
      %p73 = por %p71, %p72
      %s75 = sadd.s32 %s74, 1
      %p78 = scmp.eq.s32.totalorder %s19, 1
      %p79 = scmp.ne.s32.totalorder %s74, %s76
      %p80 = scmp.eq.s32.totalorder %s19, 0
      %p81 = por %p79, %p80
      %p82 = scmp.ne.s32.totalorder %s74, %s76
      %p83 = scmp.eq.s32.totalorder %s24, 1
      %p84 = por %p82, %p83
      %p85 = scmp.ne.s32.totalorder %s76, %s77
      %p86 = scmp.eq.s32.totalorder %s24, 0
      %p87 = por %p85, %p86
      %p88 = scmp.ne.s32.totalorder %s76, %s77
      %p89 = scmp.eq.s32.totalorder %s25, 1
      %p90 = por %p88, %p89
      %p92 = scmp.ne.s32.totalorder %s77, %s91
      %p93 = scmp.eq.s32.totalorder %s25, 0
      %p94 = por %p92, %p93
      %s96 = sadd.s32 %s95, 1
      %p99 = scmp.eq.s32.totalorder %s19, 1
      %p100 = scmp.ne.s32.totalorder %s95, %s97
      %p101 = scmp.eq.s32.totalorder %s19, 0
      %p102 = por %p100, %p101
      %p103 = scmp.ne.s32.totalorder %s95, %s97
      %p104 = scmp.eq.s32.totalorder %s24, 1
      %p105 = por %p103, %p104
      %p106 = scmp.ne.s32.totalorder %s97, %s98
      %p107 = scmp.eq.s32.totalorder %s24, 0
      %p108 = por %p106, %p107
      %p109 = scmp.ne.s32.totalorder %s97, %s98
      %p110 = scmp.eq.s32.totalorder %s25, 1
      %p111 = por %p109, %p110
      %p113 = scmp.ne.s32.totalorder %s98, %s112
      %p114 = scmp.eq.s32.totalorder %s25, 0
      %p115 = por %p113, %p114
      %s117 = sadd.s32 %s116, 1
      %p120 = scmp.eq.s32.totalorder %s19, 1
      %p121 = scmp.ne.s32.totalorder %s116, %s118
      %p122 = scmp.eq.s32.totalorder %s19, 0
      %p123 = por %p121, %p122
      %p124 = scmp.ne.s32.totalorder %s116, %s118
      %p125 = scmp.eq.s32.totalorder %s24, 1
      %p126 = por %p124, %p125
      %p127 = scmp.ne.s32.totalorder %s118, %s119
      %p128 = scmp.eq.s32.totalorder %s24, 0
      %p129 = por %p127, %p128
      %p130 = scmp.ne.s32.totalorder %s118, %s119
      %p131 = scmp.eq.s32.totalorder %s25, 1
      %p132 = por %p130, %p131
      %p134 = scmp.ne.s32.totalorder %s119, %s133
      %p135 = scmp.eq.s32.totalorder %s25, 0
      %p136 = por %p134, %p135
      %s138 = sadd.s32 %s137, 1
      %p141 = scmp.eq.s32.totalorder %s19, 1
      %p142 = scmp.ne.s32.totalorder %s137, %s139
      %p143 = scmp.eq.s32.totalorder %s19, 0
      %p144 = por %p142, %p143
      %p145 = scmp.ne.s32.totalorder %s137, %s139
      %p146 = scmp.eq.s32.totalorder %s24, 1
      %p147 = por %p145, %p146
      %p148 = scmp.ne.s32.totalorder %s139, %s140
      %p149 = scmp.eq.s32.totalorder %s24, 0
      %p150 = por %p148, %p149
      %p151 = scmp.ne.s32.totalorder %s139, %s140
      %p152 = scmp.eq.s32.totalorder %s25, 1
      %p153 = por %p151, %p152
      %p155 = scmp.ne.s32.totalorder %s140, %s154
      %p156 = scmp.eq.s32.totalorder %s25, 0
      %p157 = por %p155, %p156
      %s159 = sadd.s32 %s158, 1
      %p162 = scmp.eq.s32.totalorder %s19, 1
      %p163 = scmp.ne.s32.totalorder %s158, %s160
      %p164 = scmp.eq.s32.totalorder %s19, 0
      %p165 = por %p163, %p164
      %p166 = scmp.ne.s32.totalorder %s158, %s160
      %p167 = scmp.eq.s32.totalorder %s24, 1
      %p168 = por %p166, %p167
      %p169 = scmp.ne.s32.totalorder %s160, %s161
      %p170 = scmp.eq.s32.totalorder %s24, 0
      %p171 = por %p169, %p170
      %p172 = scmp.ne.s32.totalorder %s160, %s161
      %p173 = scmp.eq.s32.totalorder %s25, 1
      %p174 = por %p172, %p173
      %p176 = scmp.ne.s32.totalorder %s161, %s175
      %p177 = scmp.eq.s32.totalorder %s25, 0
      %p178 = por %p176, %p177
      %s180 = sadd.s32 %s179, 1
      %p183 = scmp.eq.s32.totalorder %s19, 1
      %p184 = scmp.ne.s32.totalorder %s179, %s181
      %p185 = scmp.eq.s32.totalorder %s19, 0
      %p186 = por %p184, %p185
      %p187 = scmp.ne.s32.totalorder %s179, %s181
      %p188 = scmp.eq.s32.totalorder %s24, 1
      %p189 = por %p187, %p188
      %p190 = scmp.ne.s32.totalorder %s181, %s182
      %p191 = scmp.eq.s32.totalorder %s24, 0
      %p192 = por %p190, %p191
      %p193 = scmp.ne.s32.totalorder %s181, %s182
      %p194 = scmp.eq.s32.totalorder %s25, 1
      %p195 = por %p193, %p194
      %p197 = scmp.ne.s32.totalorder %s182, %s196
      %p198 = scmp.eq.s32.totalorder %s25, 0
      %p199 = por %p197, %p198
      %s201 = sadd.s32 %s200, 1
      %p204 = scmp.eq.s32.totalorder %s19, 1
      %p205 = scmp.ne.s32.totalorder %s200, %s202
      %p206 = scmp.eq.s32.totalorder %s19, 0
      %p207 = por %p205, %p206
      %p208 = scmp.ne.s32.totalorder %s200, %s202
      %p209 = scmp.eq.s32.totalorder %s24, 1
      %p210 = por %p208, %p209
      %p211 = scmp.ne.s32.totalorder %s202, %s203
      %p212 = scmp.eq.s32.totalorder %s24, 0
      %p213 = por %p211, %p212
      %p214 = scmp.ne.s32.totalorder %s202, %s203
      %p215 = scmp.eq.s32.totalorder %s25, 1
      %p216 = por %p214, %p215
      %p218 = scmp.ne.s32.totalorder %s203, %s217
      %p219 = scmp.eq.s32.totalorder %s25, 0
      %p220 = por %p218, %p219
      %s221 = ssub.s32 %s19, %s26
      %p222 = scmp.eq.s32.totalorder %s221, 0
      %s224 = sadd.s32 %s223, 1
      %s225 = scalar_select %p222, %s223, %s224
      %p228 = pneg %p222
      %p229 = scmp.eq.s32.totalorder %s19, 1
      %p230 = por %p228, %p229
      %p231 = scmp.ne.s32.totalorder %s223, %s226
      %p232 = scmp.eq.s32.totalorder %s19, 0
      %p233 = por %p231, %p232
      %p234 = scmp.ne.s32.totalorder %s223, %s226
      %p235 = scmp.eq.s32.totalorder %s24, 1
      %p236 = por %p234, %p235
      %p237 = scmp.ne.s32.totalorder %s226, %s227
      %p238 = scmp.eq.s32.totalorder %s24, 0
      %p239 = por %p237, %p238
      %p240 = scmp.ne.s32.totalorder %s226, %s227
      %p241 = scmp.eq.s32.totalorder %s25, 1
      %p242 = por %p240, %p241
      %p244 = scmp.ne.s32.totalorder %s227, %s243
      %p245 = scmp.eq.s32.totalorder %s25, 0
      %p246 = por %p244, %p245
      %p247 = scmp.le.s32.totalorder 1, %s19
      %p248 = scmp.lt.s32.totalorder %s19, 3
      %p249 = pnand %p247, %p248
      %p250 = pneg %p249
      // Predicated region
      $region9: #{unbounded_grid_locnet_forward.1} parent=5 // pred_check
        _
      $region10: #{unbounded_grid_locnet_forward.1} parent=5 // pred_check_branch
        %252 = sbr.rel (%p249) target = $region12
      $region11: #{unbounded_grid_locnet_forward.1} parent=5 // pred_region
        %s253 = ssub.s32 %s19, 1
        // Predicated region
        $region13: #{unbounded_grid_locnet_forward.1} parent=11 // pred_check
          %p254 = pneg %p66
        $region14: #{unbounded_grid_locnet_forward.1} parent=11 // pred_check_branch
          %256 = sbr.rel (%p254) target = $region16
        $region15: #{unbounded_grid_locnet_forward.1} parent=11 // pred_region
          %s258 = ssub.s32 40960, 40960
          %259 = vsyncadd [#allocation7], %s258
          %s260 = sshll.u32 [#allocation6], 4
          %s261 = int_to_ptr.vmem [resolvable:$true] %s260
          %266 = dma.hbm_to_vmem [thread:$0]  %s1, 40960, %s261, [#allocation7], 512, 512, 32
        $region16: #{unbounded_grid_locnet_forward.1} parent=11 // pred_fallthru
          _
        // Predicated region
        $region17: #{unbounded_grid_locnet_forward.1} parent=11 // pred_check
          %p267 = pneg %p87
        $region18: #{unbounded_grid_locnet_forward.1} parent=11 // pred_check_branch
          %269 = sbr.rel (%p267) target = $region20
        $region19: #{unbounded_grid_locnet_forward.1} parent=11 // pred_region
          %s271 = ssub.s32 32, 32
          %272 = vsyncadd [#allocation9], %s271
          %s274 = sshll.u32 [#allocation8], 4
          %s275 = int_to_ptr.vmem [resolvable:$true] %s274
          %277 = dma.hbm_to_vmem [thread:$0]  %s2, 32, %s275, [#allocation9]
        $region20: #{unbounded_grid_locnet_forward.1} parent=11 // pred_fallthru
          _
        // Predicated region
        $region21: #{unbounded_grid_locnet_forward.1} parent=11 // pred_check
          %p278 = pneg %p108
        $region22: #{unbounded_grid_locnet_forward.1} parent=11 // pred_check_branch
          %280 = sbr.rel (%p278) target = $region24
        $region23: #{unbounded_grid_locnet_forward.1} parent=11 // pred_region
          %s282 = ssub.s32 40960, 40960
          %283 = vsyncadd [#allocation9], %s282
          %s284 = sshll.u32 [#allocation10], 4
          %s285 = int_to_ptr.vmem [resolvable:$true] %s284
          %290 = dma.hbm_to_vmem [thread:$0]  %s3, 40960, %s285, [#allocation9], 256, 256, 16
        $region24: #{unbounded_grid_locnet_forward.1} parent=11 // pred_fallthru
          _
        // Predicated region
        $region25: #{unbounded_grid_locnet_forward.1} parent=11 // pred_check
          %p291 = pneg %p129
        $region26: #{unbounded_grid_locnet_forward.1} parent=11 // pred_check_branch
          %293 = sbr.rel (%p291) target = $region28
        $region27: #{unbounded_grid_locnet_forward.1} parent=11 // pred_region
          %s295 = ssub.s32 16, 16
          %296 = vsyncadd [#allocation12], %s295
          %s298 = sshll.u32 [#allocation11], 4
          %s299 = int_to_ptr.vmem [resolvable:$true] %s298
          %301 = dma.hbm_to_vmem [thread:$0]  %s4, 16, %s299, [#allocation12]
        $region28: #{unbounded_grid_locnet_forward.1} parent=11 // pred_fallthru
          _
        // Predicated region
        $region29: #{unbounded_grid_locnet_forward.1} parent=11 // pred_check
          %p302 = pneg %p150
        $region30: #{unbounded_grid_locnet_forward.1} parent=11 // pred_check_branch
          %304 = sbr.rel (%p302) target = $region32
        $region31: #{unbounded_grid_locnet_forward.1} parent=11 // pred_region
          _
        $region32: #{unbounded_grid_locnet_forward.1} parent=11 // pred_fallthru
          _
        // Predicated region
        $region33: #{unbounded_grid_locnet_forward.1} parent=11 // pred_check
          %p305 = pneg %p171
        $region34: #{unbounded_grid_locnet_forward.1} parent=11 // pred_check_branch
          %307 = sbr.rel (%p305) target = $region36
        $region35: #{unbounded_grid_locnet_forward.1} parent=11 // pred_region
          %s309 = ssub.s32 16, 16
          %310 = vsyncadd [#allocation12], %s309
          %s312 = sshll.u32 [#allocation13], 4
          %s313 = int_to_ptr.vmem [resolvable:$true] %s312
          %315 = dma.hbm_to_vmem [thread:$0]  %s6, 16, %s313, [#allocation12]
        $region36: #{unbounded_grid_locnet_forward.1} parent=11 // pred_fallthru
          _
        // Predicated region
        $region37: #{unbounded_grid_locnet_forward.1} parent=11 // pred_check
          %p316 = pneg %p192
        $region38: #{unbounded_grid_locnet_forward.1} parent=11 // pred_check_branch
          %318 = sbr.rel (%p316) target = $region40
        $region39: #{unbounded_grid_locnet_forward.1} parent=11 // pred_region
          %s320 = ssub.s32 1024, 1024
          %321 = vsyncadd [#allocation15], %s320
          %s322 = sshll.u32 [#allocation14], 4
          %s323 = int_to_ptr.vmem [resolvable:$true] %s322
          %328 = dma.hbm_to_vmem [thread:$0]  %s7, 1024, %s323, [#allocation15], 128, 128, 8
        $region40: #{unbounded_grid_locnet_forward.1} parent=11 // pred_fallthru
          _
        // Predicated region
        $region41: #{unbounded_grid_locnet_forward.1} parent=11 // pred_check
          %p329 = pneg %p213
        $region42: #{unbounded_grid_locnet_forward.1} parent=11 // pred_check_branch
          %331 = sbr.rel (%p329) target = $region44
        $region43: #{unbounded_grid_locnet_forward.1} parent=11 // pred_region
          %s333 = ssub.s32 16, 16
          %334 = vsyncadd [#allocation15], %s333
          %s336 = sshll.u32 [#allocation16], 4
          %s337 = int_to_ptr.vmem [resolvable:$true] %s336
          %339 = dma.hbm_to_vmem [thread:$0]  %s8, 16, %s337, [#allocation15]
        $region44: #{unbounded_grid_locnet_forward.1} parent=11 // pred_fallthru
          _
      $region12: #{unbounded_grid_locnet_forward.1} parent=5 // pred_fallthru
        _
      %p340 = scmp.lt.s32.totalorder %s19, 2
      // Predicated region
      $region45: #{unbounded_grid_locnet_forward.1} parent=5 // pred_check
        %p341 = pneg %p340
      $region46: #{unbounded_grid_locnet_forward.1} parent=5 // pred_check_branch
        %343 = sbr.rel (%p341) target = $region48
      $region47: #{unbounded_grid_locnet_forward.1} parent=5 // pred_region
        // Predicated region
        $region49: #{unbounded_grid_locnet_forward.1} parent=47 // pred_check
          %p344 = pneg %p39
        $region50: #{unbounded_grid_locnet_forward.1} parent=47 // pred_check_branch
          %346 = sbr.rel (%p344) target = $region52
        $region51: #{unbounded_grid_locnet_forward.1} parent=47 // pred_region
          %p347 = scmp.lt.s32.totalorder %s19, 1
          %s348 = scalar_select %p347, %s19, 1
          %s349 = smul.addr %s348, 4
          %s350 = smul.addr %s349, 8
          %s351 = scalar_lea.vmem %s0, %s350
        $region52: #{unbounded_grid_locnet_forward.1} parent=47 // pred_fallthru
          _
      $region48: #{unbounded_grid_locnet_forward.1} parent=5 // pred_fallthru
        _
      %p352 = scmp.le.s32.totalorder 1, %s19
      %p353 = scmp.lt.s32.totalorder %s19, 3
      %p354 = pnand %p352, %p353
      %p355 = pneg %p354
      // Predicated region
      $region53: #{unbounded_grid_locnet_forward.1} parent=5 // pred_check
        _
      $region54: #{unbounded_grid_locnet_forward.1} parent=5 // pred_check_branch
        %357 = sbr.rel (%p354) target = $region56
      $region55: #{unbounded_grid_locnet_forward.1} parent=5 // pred_region
        %s358 = ssub.s32 %s19, 1
        // Predicated region
        $region57: #{unbounded_grid_locnet_forward.1} parent=55 // pred_check
          %p359 = pneg %p66
        $region58: #{unbounded_grid_locnet_forward.1} parent=55 // pred_check_branch
          %361 = sbr.rel (%p359) target = $region60
        $region59: #{unbounded_grid_locnet_forward.1} parent=55 // pred_region
          %362 = dma.done [#allocation7], 40960
        $region60: #{unbounded_grid_locnet_forward.1} parent=55 // pred_fallthru
          _
        // Predicated region
        $region61: #{unbounded_grid_locnet_forward.1} parent=55 // pred_check
          %p363 = pneg %p87
        $region62: #{unbounded_grid_locnet_forward.1} parent=55 // pred_check_branch
          %365 = sbr.rel (%p363) target = $region64
        $region63: #{unbounded_grid_locnet_forward.1} parent=55 // pred_region
          %366 = dma.done [#allocation9], 32
        $region64: #{unbounded_grid_locnet_forward.1} parent=55 // pred_fallthru
          _
        // Predicated region
        $region65: #{unbounded_grid_locnet_forward.1} parent=55 // pred_check
          %p367 = pneg %p108
        $region66: #{unbounded_grid_locnet_forward.1} parent=55 // pred_check_branch
          %369 = sbr.rel (%p367) target = $region68
        $region67: #{unbounded_grid_locnet_forward.1} parent=55 // pred_region
          %370 = dma.done [#allocation9], 40960
        $region68: #{unbounded_grid_locnet_forward.1} parent=55 // pred_fallthru
          _
        // Predicated region
        $region69: #{unbounded_grid_locnet_forward.1} parent=55 // pred_check
          %p371 = pneg %p129
        $region70: #{unbounded_grid_locnet_forward.1} parent=55 // pred_check_branch
          %373 = sbr.rel (%p371) target = $region72
        $region71: #{unbounded_grid_locnet_forward.1} parent=55 // pred_region
          %374 = dma.done [#allocation12], 16
        $region72: #{unbounded_grid_locnet_forward.1} parent=55 // pred_fallthru
          _
        // Predicated region
        $region73: #{unbounded_grid_locnet_forward.1} parent=55 // pred_check
          %p375 = pneg %p171
        $region74: #{unbounded_grid_locnet_forward.1} parent=55 // pred_check_branch
          %377 = sbr.rel (%p375) target = $region76
        $region75: #{unbounded_grid_locnet_forward.1} parent=55 // pred_region
          %378 = dma.done [#allocation12], 16
        $region76: #{unbounded_grid_locnet_forward.1} parent=55 // pred_fallthru
          _
        // Predicated region
        $region77: #{unbounded_grid_locnet_forward.1} parent=55 // pred_check
          %p379 = pneg %p192
        $region78: #{unbounded_grid_locnet_forward.1} parent=55 // pred_check_branch
          %381 = sbr.rel (%p379) target = $region80
        $region79: #{unbounded_grid_locnet_forward.1} parent=55 // pred_region
          %382 = dma.done [#allocation15], 1024
        $region80: #{unbounded_grid_locnet_forward.1} parent=55 // pred_fallthru
          _
        // Predicated region
        $region81: #{unbounded_grid_locnet_forward.1} parent=55 // pred_check
          %p383 = pneg %p213
        $region82: #{unbounded_grid_locnet_forward.1} parent=55 // pred_check_branch
          %385 = sbr.rel (%p383) target = $region84
        $region83: #{unbounded_grid_locnet_forward.1} parent=55 // pred_region
          %386 = dma.done [#allocation15], 16
        $region84: #{unbounded_grid_locnet_forward.1} parent=55 // pred_fallthru
          _
        %p387 = scmp.lt.s32.totalorder %s24, 1
        %s388 = scalar_select %p387, %s24, 1
        %s389 = smul.addr %s388, 4
        %s390 = smul.addr %s389, 8
        %s391 = scalar_lea.vmem %s0, %s390
        %p392 = pneg %p45
        %p393 = pneg %p42
        %p394 = pneg %p66
        %p395 = pneg %p63
        %p396 = pneg %p87
        %p397 = pneg %p84
        %p398 = pneg %p108
        %p399 = pneg %p105
        %p400 = pneg %p129
        %p401 = pneg %p126
        %p402 = pneg %p150
        %p403 = pneg %p147
        %p404 = pneg %p171
        %p405 = pneg %p168
        %p406 = pneg %p192
        %p407 = pneg %p189
        %p408 = pneg %p213
        %p409 = pneg %p210
        %p410 = pneg %p239
        %p411 = pneg %p236
        %p412 = scmp.lt.s32.totalorder %s24, 1
        %s413 = scalar_select %p412, %s24, 1
        %s414 = scalar_lea.vmem %s9, %s413
        %p415 = scmp.lt.s32.totalorder %s24, 1
        %s416 = scalar_select %p415, %s24, 1
        %s417 = smul.addr %s416, 4
        %s418 = smul.addr %s417, 8
        %s419 = scalar_lea.vmem %s0, %s418
        %p420 = scmp.lt.s32.totalorder %s24, 1
        %s421 = scalar_select %p420, %s24, 1
        %s422 = scalar_lea.vmem %s9, %s421
        %v423 = vld [vmem:[%s419] sm:$0xff]
        %v424 = vld [vmem:[%s419 + $0x8] sm:$0xf]
        %425 = vst [vmem:[#allocation2] sm:$0xff] %v423
        %426 = vst [vmem:[#allocation2 + $0x28] sm:$0xf] %v424
        %v427 = vld [vmem:[%s419 + $0x10] sm:$0xff]
        %v428 = vld [vmem:[%s419 + $0x18] sm:$0xf]
        %429 = vst [vmem:[#allocation2 + $0x8] sm:$0xff] %v427
        %430 = vst [vmem:[#allocation2 + $0x30] sm:$0xf] %v428
        %v431 = vld [vmem:[%s419 + $0x1] sm:$0xff]
        %v432 = vld [vmem:[%s419 + $0x9] sm:$0xf]
        %433 = vst [vmem:[#allocation2 + $0x10] sm:$0xff] %v431
        %434 = vst [vmem:[#allocation2 + $0x38] sm:$0xf] %v432
        %v435 = vld [vmem:[%s419 + $0x11] sm:$0xff]
        %v436 = vld [vmem:[%s419 + $0x19] sm:$0xf]
        %437 = vst [vmem:[#allocation2 + $0x18] sm:$0xff] %v435
        %438 = vst [vmem:[#allocation2 + $0x40] sm:$0xf] %v436
        %v439 = vld [vmem:[%s419 + $0x2] sm:$0xff]
        %v440 = vld [vmem:[%s419 + $0xa] sm:$0xf]
        %441 = vst [vmem:[#allocation2 + $0x20] sm:$0xff] %v439
        %442 = vst [vmem:[#allocation2 + $0x48] sm:$0xf] %v440
        %v443 = vld [vmem:[%s419 + $0x10] sm:$0xff]
        %v444 = vld [vmem:[%s419 + $0x18] sm:$0xf]
        %vm447 = vcmask 1043456
        %v448 = vrot.slane %v443, 4
        %v449 = vrot.slane %v444, 4
        %v450 = vsel %vm447, %v448, %v449
        %453 = vst [vmem:[#allocation2 + $0x28] sm:$0xf0] %v448
        %454 = vst [vmem:[#allocation2 + $0x50] sm:$0xff] %v450
        %v455 = vld [vmem:[%s419 + $0x1] sm:$0xff]
        %v456 = vld [vmem:[%s419 + $0x9] sm:$0xf]
        %v459 = vrot.slane %v455, 4
        %v460 = vrot.slane %v456, 4
        %v461 = vsel %vm447, %v459, %v460
        %464 = vst [vmem:[#allocation2 + $0x30] sm:$0xf0] %v459
        %465 = vst [vmem:[#allocation2 + $0x58] sm:$0xff] %v461
        %v466 = vld [vmem:[%s419 + $0x11] sm:$0xff]
        %v467 = vld [vmem:[%s419 + $0x19] sm:$0xf]
        %v470 = vrot.slane %v466, 4
        %v471 = vrot.slane %v467, 4
        %v472 = vsel %vm447, %v470, %v471
        %475 = vst [vmem:[#allocation2 + $0x38] sm:$0xf0] %v470
        %476 = vst [vmem:[#allocation2 + $0x60] sm:$0xff] %v472
        %v477 = vld [vmem:[%s419 + $0x2] sm:$0xff]
        %v478 = vld [vmem:[%s419 + $0xa] sm:$0xf]
        %v481 = vrot.slane %v477, 4
        %v482 = vrot.slane %v478, 4
        %v483 = vsel %vm447, %v481, %v482
        %486 = vst [vmem:[#allocation2 + $0x40] sm:$0xf0] %v481
        %487 = vst [vmem:[#allocation2 + $0x68] sm:$0xff] %v483
        %v488 = vld [vmem:[%s419 + $0x12] sm:$0xff]
        %v489 = vld [vmem:[%s419 + $0x1a] sm:$0xf]
        %v492 = vrot.slane %v488, 4
        %v493 = vrot.slane %v489, 4
        %v494 = vsel %vm447, %v492, %v493
        %497 = vst [vmem:[#allocation2 + $0x48] sm:$0xf0] %v492
        %498 = vst [vmem:[#allocation2 + $0x70] sm:$0xff] %v494
        %v499 = vld [vmem:[#allocation2] sm:$0xff]
        %v500 = vld [vmem:[#allocation2 + $0x8] sm:$0xff]
        %v501 = vld [vmem:[#allocation2 + $0x10] sm:$0xff]
        %v502 = vld [vmem:[#allocation2 + $0x18] sm:$0xff]
        %v503 = vld [vmem:[#allocation2 + $0x20] sm:$0xff]
        %v504 = vld [vmem:[#allocation2 + $0x28] sm:$0xff]
        %v505 = vld [vmem:[#allocation2 + $0x30] sm:$0xff]
        %v506 = vld [vmem:[#allocation2 + $0x38] sm:$0xff]
        %v507 = vld [vmem:[#allocation2 + $0x40] sm:$0xff]
        %v508 = vld [vmem:[#allocation2 + $0x48] sm:$0xff]
        %v509 = vld [vmem:[#allocation2 + $0x50] sm:$0xff]
        %v510 = vld [vmem:[#allocation2 + $0x58] sm:$0xff]
        %v511 = vld [vmem:[#allocation2 + $0x60] sm:$0xff]
        %v512 = vld [vmem:[#allocation2 + $0x68] sm:$0xff]
        %v513 = vld [vmem:[#allocation2 + $0x70] sm:$0xff]
        %v514 = vld [vmem:[#allocation6] sm:$0xff]
        %v515 = vld [vmem:[#allocation6 + $0x8] sm:$0xff]
        %v516 = vld [vmem:[#allocation6 + $0x10] sm:$0xff]
        %v517 = vld [vmem:[#allocation6 + $0x18] sm:$0xff]
        %v518 = vld [vmem:[#allocation6 + $0x20] sm:$0xff]
        %v519 = vld [vmem:[#allocation6 + $0x28] sm:$0xff]
        %v520 = vld [vmem:[#allocation6 + $0x30] sm:$0xff]
        %v521 = vld [vmem:[#allocation6 + $0x38] sm:$0xff]
        %v522 = vld [vmem:[#allocation6 + $0x40] sm:$0xff]
        %v523 = vld [vmem:[#allocation6 + $0x48] sm:$0xff]
        %v524 = vld [vmem:[#allocation6 + $0x50] sm:$0xff]
        %v525 = vld [vmem:[#allocation6 + $0x58] sm:$0xff]
        %v526 = vld [vmem:[#allocation6 + $0x60] sm:$0xff]
        %v527 = vld [vmem:[#allocation6 + $0x68] sm:$0xff]
        %v528 = vld [vmem:[#allocation6 + $0x70] sm:$0xff]
        %v529 = vld [vmem:[#allocation6 + $0x78] sm:$0xff]
        %v530 = vld [vmem:[#allocation6 + $0x80] sm:$0xff]
        %v531 = vld [vmem:[#allocation6 + $0x88] sm:$0xff]
        %v532 = vld [vmem:[#allocation6 + $0x90] sm:$0xff]
        %v533 = vld [vmem:[#allocation6 + $0x98] sm:$0xff]
        %v534 = vld [vmem:[#allocation6 + $0xa0] sm:$0xff]
        %v535 = vld [vmem:[#allocation6 + $0xa8] sm:$0xff]
        %v536 = vld [vmem:[#allocation6 + $0xb0] sm:$0xff]
        %v537 = vld [vmem:[#allocation6 + $0xb8] sm:$0xff]
        %v538 = vld [vmem:[#allocation6 + $0xc0] sm:$0xff]
        %v539 = vld [vmem:[#allocation6 + $0xc8] sm:$0xff]
        %v540 = vld [vmem:[#allocation6 + $0xd0] sm:$0xff]
        %v541 = vld [vmem:[#allocation6 + $0xd8] sm:$0xff]
        %v542 = vld [vmem:[#allocation6 + $0xe0] sm:$0xff]
        %v543 = vld [vmem:[#allocation6 + $0xe8] sm:$0xff]
        %v544 = vld [vmem:[#allocation6 + $0xf0] sm:$0xff]
        %v545 = vld [vmem:[#allocation6 + $0xf8] sm:$0xff]
        %v546 = vld [vmem:[#allocation6 + $0x100] sm:$0xff]
        %v547 = vld [vmem:[#allocation6 + $0x108] sm:$0xff]
        %v548 = vld [vmem:[#allocation6 + $0x110] sm:$0xff]
        %v549 = vld [vmem:[#allocation6 + $0x118] sm:$0xff]
        %v550 = vld [vmem:[#allocation6 + $0x120] sm:$0xff]
        %v551 = vld [vmem:[#allocation6 + $0x128] sm:$0xff]
        %v552 = vld [vmem:[#allocation6 + $0x130] sm:$0xff]
        %v553 = vld [vmem:[#allocation6 + $0x138] sm:$0xff]
        %v554 = vld [vmem:[#allocation6 + $0x140] sm:$0xff]
        %v555 = vld [vmem:[#allocation6 + $0x148] sm:$0xff]
        %v556 = vld [vmem:[#allocation6 + $0x150] sm:$0xff]
        %v557 = vld [vmem:[#allocation6 + $0x158] sm:$0xff]
        %v558 = vld [vmem:[#allocation6 + $0x160] sm:$0xff]
        %v559 = vld [vmem:[#allocation6 + $0x168] sm:$0xff]
        %v560 = vld [vmem:[#allocation6 + $0x170] sm:$0xff]
        %v561 = vld [vmem:[#allocation6 + $0x178] sm:$0xff]
        %v562 = vld [vmem:[#allocation6 + $0x180] sm:$0xff]
        %v563 = vld [vmem:[#allocation6 + $0x188] sm:$0xff]
        %v564 = vld [vmem:[#allocation6 + $0x190] sm:$0xff]
        %v565 = vld [vmem:[#allocation6 + $0x198] sm:$0xff]
        %v566 = vld [vmem:[#allocation6 + $0x1a0] sm:$0xff]
        %v567 = vld [vmem:[#allocation6 + $0x1a8] sm:$0xff]
        %v568 = vld [vmem:[#allocation6 + $0x1b0] sm:$0xff]
        %v569 = vld [vmem:[#allocation6 + $0x1b8] sm:$0xff]
        %v570 = vld [vmem:[#allocation6 + $0x1c0] sm:$0xff]
        %v571 = vld [vmem:[#allocation6 + $0x1c8] sm:$0xff]
        %v572 = vld [vmem:[#allocation6 + $0x1d0] sm:$0xff]
        %v573 = vld [vmem:[#allocation6 + $0x1d8] sm:$0xff]
        %v574 = vld [vmem:[#allocation6 + $0x1e0] sm:$0xff]
        %v575 = vld [vmem:[#allocation6 + $0x1e8] sm:$0xff]
        %v576 = vld [vmem:[#allocation6 + $0x1f0] sm:$0xff]
        %v577 = vld [vmem:[#allocation6 + $0x1f8] sm:$0xff]
        %v578 = vld [vmem:[#allocation6 + $0x200] sm:$0xff]
        %v579 = vld [vmem:[#allocation6 + $0x208] sm:$0xff]
        %v580 = vld [vmem:[#allocation6 + $0x210] sm:$0xff]
        %v581 = vld [vmem:[#allocation6 + $0x218] sm:$0xff]
        %v582 = vld [vmem:[#allocation6 + $0x220] sm:$0xff]
        %v583 = vld [vmem:[#allocation6 + $0x228] sm:$0xff]
        %v584 = vld [vmem:[#allocation6 + $0x230] sm:$0xff]
        %v585 = vld [vmem:[#allocation6 + $0x238] sm:$0xff]
        %v586 = vld [vmem:[#allocation6 + $0x240] sm:$0xff]
        %v587 = vld [vmem:[#allocation6 + $0x248] sm:$0xff]
        %v588 = vld [vmem:[#allocation6 + $0x250] sm:$0xff]
        %v589 = vld [vmem:[#allocation6 + $0x258] sm:$0xff]
        %v590 = vld [vmem:[#allocation6 + $0x260] sm:$0xff]
        %v591 = vld [vmem:[#allocation6 + $0x268] sm:$0xff]
        %v592 = vld [vmem:[#allocation6 + $0x270] sm:$0xff]
        %v593 = vld [vmem:[#allocation6 + $0x278] sm:$0xff]
        %v594 = vld [vmem:[#allocation6 + $0x280] sm:$0xff]
        %v595 = vld [vmem:[#allocation6 + $0x288] sm:$0xff]
        %v596 = vld [vmem:[#allocation6 + $0x290] sm:$0xff]
        %v597 = vld [vmem:[#allocation6 + $0x298] sm:$0xff]
        %v598 = vld [vmem:[#allocation6 + $0x2a0] sm:$0xff]
        %v599 = vld [vmem:[#allocation6 + $0x2a8] sm:$0xff]
        %v600 = vld [vmem:[#allocation6 + $0x2b0] sm:$0xff]
        %v601 = vld [vmem:[#allocation6 + $0x2b8] sm:$0xff]
        %v602 = vld [vmem:[#allocation6 + $0x2c0] sm:$0xff]
        %v603 = vld [vmem:[#allocation6 + $0x2c8] sm:$0xff]
        %v604 = vld [vmem:[#allocation6 + $0x2d0] sm:$0xff]
        %v605 = vld [vmem:[#allocation6 + $0x2d8] sm:$0xff]
        %v606 = vld [vmem:[#allocation6 + $0x2e0] sm:$0xff]
        %v607 = vld [vmem:[#allocation6 + $0x2e8] sm:$0xff]
        %v608 = vld [vmem:[#allocation6 + $0x2f0] sm:$0xff]
        %v609 = vld [vmem:[#allocation6 + $0x2f8] sm:$0xff]
        %v610 = vld [vmem:[#allocation6 + $0x300] sm:$0xff]
        %v611 = vld [vmem:[#allocation6 + $0x308] sm:$0xff]
        %v612 = vld [vmem:[#allocation6 + $0x310] sm:$0xff]
        %v613 = vld [vmem:[#allocation6 + $0x318] sm:$0xff]
        %v614 = vld [vmem:[#allocation6 + $0x320] sm:$0xff]
        %v615 = vld [vmem:[#allocation6 + $0x328] sm:$0xff]
        %v616 = vld [vmem:[#allocation6 + $0x330] sm:$0xff]
        %v617 = vld [vmem:[#allocation6 + $0x338] sm:$0xff]
        %v618 = vld [vmem:[#allocation6 + $0x340] sm:$0xff]
        %v619 = vld [vmem:[#allocation6 + $0x348] sm:$0xff]
        %v620 = vld [vmem:[#allocation6 + $0x350] sm:$0xff]
        %v621 = vld [vmem:[#allocation6 + $0x358] sm:$0xff]
        %v622 = vld [vmem:[#allocation6 + $0x360] sm:$0xff]
        %v623 = vld [vmem:[#allocation6 + $0x368] sm:$0xff]
        %v624 = vld [vmem:[#allocation6 + $0x370] sm:$0xff]
        %v625 = vld [vmem:[#allocation6 + $0x378] sm:$0xff]
        %v626 = vld [vmem:[#allocation6 + $0x380] sm:$0xff]
        %v627 = vld [vmem:[#allocation6 + $0x388] sm:$0xff]
        %v628 = vld [vmem:[#allocation6 + $0x390] sm:$0xff]
        %v629 = vld [vmem:[#allocation6 + $0x398] sm:$0xff]
        %v630 = vld [vmem:[#allocation6 + $0x3a0] sm:$0xff]
        %v631 = vld [vmem:[#allocation6 + $0x3a8] sm:$0xff]
        %v632 = vld [vmem:[#allocation6 + $0x3b0] sm:$0xff]
        %v633 = vld [vmem:[#allocation6 + $0x3b8] sm:$0xff]
        %v634 = vld [vmem:[#allocation6 + $0x3c0] sm:$0xff]
        %v635 = vld [vmem:[#allocation6 + $0x3c8] sm:$0xff]
        %v636 = vld [vmem:[#allocation6 + $0x3d0] sm:$0xff]
        %v637 = vld [vmem:[#allocation6 + $0x3d8] sm:$0xff]
        %v638 = vld [vmem:[#allocation6 + $0x3e0] sm:$0xff]
        %v639 = vld [vmem:[#allocation6 + $0x3e8] sm:$0xff]
        %v640 = vld [vmem:[#allocation6 + $0x3f0] sm:$0xff]
        %v641 = vld [vmem:[#allocation6 + $0x3f8] sm:$0xff]
        %v642 = vld [vmem:[#allocation6 + $0x400] sm:$0xff]
        %v643 = vld [vmem:[#allocation6 + $0x408] sm:$0xff]
        %v644 = vld [vmem:[#allocation6 + $0x410] sm:$0xff]
        %v645 = vld [vmem:[#allocation6 + $0x418] sm:$0xff]
        %v646 = vld [vmem:[#allocation6 + $0x420] sm:$0xff]
        %v647 = vld [vmem:[#allocation6 + $0x428] sm:$0xff]
        %v648 = vld [vmem:[#allocation6 + $0x430] sm:$0xff]
        %v649 = vld [vmem:[#allocation6 + $0x438] sm:$0xff]
        %v650 = vld [vmem:[#allocation6 + $0x440] sm:$0xff]
        %v651 = vld [vmem:[#allocation6 + $0x448] sm:$0xff]
        %v652 = vld [vmem:[#allocation6 + $0x450] sm:$0xff]
        %v653 = vld [vmem:[#allocation6 + $0x458] sm:$0xff]
        %v654 = vld [vmem:[#allocation6 + $0x460] sm:$0xff]
        %v655 = vld [vmem:[#allocation6 + $0x468] sm:$0xff]
        %v656 = vld [vmem:[#allocation6 + $0x470] sm:$0xff]
        %v657 = vld [vmem:[#allocation6 + $0x478] sm:$0xff]
        %v658 = vld [vmem:[#allocation6 + $0x480] sm:$0xff]
        %v659 = vld [vmem:[#allocation6 + $0x488] sm:$0xff]
        %v660 = vld [vmem:[#allocation6 + $0x490] sm:$0xff]
        %v661 = vld [vmem:[#allocation6 + $0x498] sm:$0xff]
        %v662 = vld [vmem:[#allocation6 + $0x4a0] sm:$0xff]
        %v663 = vld [vmem:[#allocation6 + $0x4a8] sm:$0xff]
        %v664 = vld [vmem:[#allocation6 + $0x4b0] sm:$0xff]
        %v665 = vld [vmem:[#allocation6 + $0x4b8] sm:$0xff]
        %v666 = vld [vmem:[#allocation6 + $0x4c0] sm:$0xff]
        %v667 = vld [vmem:[#allocation6 + $0x4c8] sm:$0xff]
        %v668 = vld [vmem:[#allocation6 + $0x4d0] sm:$0xff]
        %v669 = vld [vmem:[#allocation6 + $0x4d8] sm:$0xff]
        %v670 = vld [vmem:[#allocation6 + $0x4e0] sm:$0xff]
        %v671 = vld [vmem:[#allocation6 + $0x4e8] sm:$0xff]
        %v672 = vld [vmem:[#allocation6 + $0x4f0] sm:$0xff]
        %v673 = vld [vmem:[#allocation6 + $0x4f8] sm:$0xff]
        %v674 = vld [vmem:[#allocation6 + $0x500] sm:$0xff]
        %v675 = vld [vmem:[#allocation6 + $0x508] sm:$0xff]
        %v676 = vld [vmem:[#allocation6 + $0x510] sm:$0xff]
        %v677 = vld [vmem:[#allocation6 + $0x518] sm:$0xff]
        %v678 = vld [vmem:[#allocation6 + $0x520] sm:$0xff]
        %v679 = vld [vmem:[#allocation6 + $0x528] sm:$0xff]
        %v680 = vld [vmem:[#allocation6 + $0x530] sm:$0xff]
        %v681 = vld [vmem:[#allocation6 + $0x538] sm:$0xff]
        %v682 = vld [vmem:[#allocation6 + $0x540] sm:$0xff]
        %v683 = vld [vmem:[#allocation6 + $0x548] sm:$0xff]
        %v684 = vld [vmem:[#allocation6 + $0x550] sm:$0xff]
        %v685 = vld [vmem:[#allocation6 + $0x558] sm:$0xff]
        %v686 = vld [vmem:[#allocation6 + $0x560] sm:$0xff]
        %v687 = vld [vmem:[#allocation6 + $0x568] sm:$0xff]
        %v688 = vld [vmem:[#allocation6 + $0x570] sm:$0xff]
        %v689 = vld [vmem:[#allocation6 + $0x578] sm:$0xff]
        %v690 = vld [vmem:[#allocation6 + $0x580] sm:$0xff]
        %v691 = vld [vmem:[#allocation6 + $0x588] sm:$0xff]
        %v692 = vld [vmem:[#allocation6 + $0x590] sm:$0xff]
        %v693 = vld [vmem:[#allocation6 + $0x598] sm:$0xff]
        %v694 = vld [vmem:[#allocation6 + $0x5a0] sm:$0xff]
        %v695 = vld [vmem:[#allocation6 + $0x5a8] sm:$0xff]
        %v696 = vld [vmem:[#allocation6 + $0x5b0] sm:$0xff]
        %v697 = vld [vmem:[#allocation6 + $0x5b8] sm:$0xff]
        %v698 = vld [vmem:[#allocation6 + $0x5c0] sm:$0xff]
        %v699 = vld [vmem:[#allocation6 + $0x5c8] sm:$0xff]
        %v700 = vld [vmem:[#allocation6 + $0x5d0] sm:$0xff]
        %v701 = vld [vmem:[#allocation6 + $0x5d8] sm:$0xff]
        %v702 = vld [vmem:[#allocation6 + $0x5e0] sm:$0xff]
        %v703 = vld [vmem:[#allocation6 + $0x5e8] sm:$0xff]
        %v704 = vld [vmem:[#allocation6 + $0x5f0] sm:$0xff]
        %v705 = vld [vmem:[#allocation6 + $0x5f8] sm:$0xff]
        %v706 = vld [vmem:[#allocation6 + $0x600] sm:$0xff]
        %v707 = vld [vmem:[#allocation6 + $0x608] sm:$0xff]
        %v708 = vld [vmem:[#allocation6 + $0x610] sm:$0xff]
        %v709 = vld [vmem:[#allocation6 + $0x618] sm:$0xff]
        %v710 = vld [vmem:[#allocation6 + $0x620] sm:$0xff]
        %v711 = vld [vmem:[#allocation6 + $0x628] sm:$0xff]
        %v712 = vld [vmem:[#allocation6 + $0x630] sm:$0xff]
        %v713 = vld [vmem:[#allocation6 + $0x638] sm:$0xff]
        %v714 = vld [vmem:[#allocation6 + $0x640] sm:$0xff]
        %v715 = vld [vmem:[#allocation6 + $0x648] sm:$0xff]
        %v716 = vld [vmem:[#allocation6 + $0x650] sm:$0xff]
        %v717 = vld [vmem:[#allocation6 + $0x658] sm:$0xff]
        %v718 = vld [vmem:[#allocation6 + $0x660] sm:$0xff]
        %v719 = vld [vmem:[#allocation6 + $0x668] sm:$0xff]
        %v720 = vld [vmem:[#allocation6 + $0x670] sm:$0xff]
        %v721 = vld [vmem:[#allocation6 + $0x678] sm:$0xff]
        %v722 = vld [vmem:[#allocation6 + $0x680] sm:$0xff]
        %v723 = vld [vmem:[#allocation6 + $0x688] sm:$0xff]
        %v724 = vld [vmem:[#allocation6 + $0x690] sm:$0xff]
        %v725 = vld [vmem:[#allocation6 + $0x698] sm:$0xff]
        %v726 = vld [vmem:[#allocation6 + $0x6a0] sm:$0xff]
        %v727 = vld [vmem:[#allocation6 + $0x6a8] sm:$0xff]
        %v728 = vld [vmem:[#allocation6 + $0x6b0] sm:$0xff]
        %v729 = vld [vmem:[#allocation6 + $0x6b8] sm:$0xff]
        %v730 = vld [vmem:[#allocation6 + $0x6c0] sm:$0xff]
        %v731 = vld [vmem:[#allocation6 + $0x6c8] sm:$0xff]
        %v732 = vld [vmem:[#allocation6 + $0x6d0] sm:$0xff]
        %v733 = vld [vmem:[#allocation6 + $0x6d8] sm:$0xff]
        %v734 = vld [vmem:[#allocation6 + $0x6e0] sm:$0xff]
        %v735 = vld [vmem:[#allocation6 + $0x6e8] sm:$0xff]
        %v736 = vld [vmem:[#allocation6 + $0x6f0] sm:$0xff]
        %v737 = vld [vmem:[#allocation6 + $0x6f8] sm:$0xff]
        %v738 = vld [vmem:[#allocation6 + $0x700] sm:$0xff]
        %v739 = vld [vmem:[#allocation6 + $0x708] sm:$0xff]
        %v740 = vld [vmem:[#allocation6 + $0x710] sm:$0xff]
        %v741 = vld [vmem:[#allocation6 + $0x718] sm:$0xff]
        %v742 = vld [vmem:[#allocation6 + $0x720] sm:$0xff]
        %v743 = vld [vmem:[#allocation6 + $0x728] sm:$0xff]
        %v744 = vld [vmem:[#allocation6 + $0x730] sm:$0xff]
        %v745 = vld [vmem:[#allocation6 + $0x738] sm:$0xff]
        %v746 = vld [vmem:[#allocation6 + $0x740] sm:$0xff]
        %v747 = vld [vmem:[#allocation6 + $0x748] sm:$0xff]
        %v748 = vld [vmem:[#allocation6 + $0x750] sm:$0xff]
        %v749 = vld [vmem:[#allocation6 + $0x758] sm:$0xff]
        %v750 = vld [vmem:[#allocation6 + $0x760] sm:$0xff]
        %v751 = vld [vmem:[#allocation6 + $0x768] sm:$0xff]
        %v752 = vld [vmem:[#allocation6 + $0x770] sm:$0xff]
        %v753 = vld [vmem:[#allocation6 + $0x778] sm:$0xff]
        %v754 = vld [vmem:[#allocation6 + $0x780] sm:$0xff]
        %v755 = vld [vmem:[#allocation6 + $0x788] sm:$0xff]
        %v756 = vld [vmem:[#allocation6 + $0x790] sm:$0xff]
        %v757 = vld [vmem:[#allocation6 + $0x798] sm:$0xff]
        %v758 = vld [vmem:[#allocation6 + $0x7a0] sm:$0xff]
        %v759 = vld [vmem:[#allocation6 + $0x7a8] sm:$0xff]
        %v760 = vld [vmem:[#allocation6 + $0x7b0] sm:$0xff]
        %v761 = vld [vmem:[#allocation6 + $0x7b8] sm:$0xff]
        %v762 = vld [vmem:[#allocation6 + $0x7c0] sm:$0xff]
        %v763 = vld [vmem:[#allocation6 + $0x7c8] sm:$0xff]
        %v764 = vld [vmem:[#allocation6 + $0x7d0] sm:$0xff]
        %v765 = vld [vmem:[#allocation6 + $0x7d8] sm:$0xff]
        %v766 = vld [vmem:[#allocation6 + $0x7e0] sm:$0xff]
        %v767 = vld [vmem:[#allocation6 + $0x7e8] sm:$0xff]
        %v768 = vld [vmem:[#allocation6 + $0x7f0] sm:$0xff]
        %v769 = vld [vmem:[#allocation6 + $0x7f8] sm:$0xff]
        %v770 = vld [vmem:[#allocation6 + $0x800] sm:$0xff]
        %v771 = vld [vmem:[#allocation6 + $0x808] sm:$0xff]
        %v772 = vld [vmem:[#allocation6 + $0x810] sm:$0xff]
        %v773 = vld [vmem:[#allocation6 + $0x818] sm:$0xff]
        %v774 = vld [vmem:[#allocation6 + $0x820] sm:$0xff]
        %v775 = vld [vmem:[#allocation6 + $0x828] sm:$0xff]
        %v776 = vld [vmem:[#allocation6 + $0x830] sm:$0xff]
        %v777 = vld [vmem:[#allocation6 + $0x838] sm:$0xff]
        %v778 = vld [vmem:[#allocation6 + $0x840] sm:$0xff]
        %v779 = vld [vmem:[#allocation6 + $0x848] sm:$0xff]
        %v780 = vld [vmem:[#allocation6 + $0x850] sm:$0xff]
        %v781 = vld [vmem:[#allocation6 + $0x858] sm:$0xff]
        %v782 = vld [vmem:[#allocation6 + $0x860] sm:$0xff]
        %v783 = vld [vmem:[#allocation6 + $0x868] sm:$0xff]
        %v784 = vld [vmem:[#allocation6 + $0x870] sm:$0xff]
        %v785 = vld [vmem:[#allocation6 + $0x878] sm:$0xff]
        %v786 = vld [vmem:[#allocation6 + $0x880] sm:$0xff]
        %v787 = vld [vmem:[#allocation6 + $0x888] sm:$0xff]
        %v788 = vld [vmem:[#allocation6 + $0x890] sm:$0xff]
        %v789 = vld [vmem:[#allocation6 + $0x898] sm:$0xff]
        %v790 = vld [vmem:[#allocation6 + $0x8a0] sm:$0xff]
        %v791 = vld [vmem:[#allocation6 + $0x8a8] sm:$0xff]
        %v792 = vld [vmem:[#allocation6 + $0x8b0] sm:$0xff]
        %v793 = vld [vmem:[#allocation6 + $0x8b8] sm:$0xff]
        %v794 = vld [vmem:[#allocation6 + $0x8c0] sm:$0xff]
        %v795 = vld [vmem:[#allocation6 + $0x8c8] sm:$0xff]
        %v796 = vld [vmem:[#allocation6 + $0x8d0] sm:$0xff]
        %v797 = vld [vmem:[#allocation6 + $0x8d8] sm:$0xff]
        %v798 = vld [vmem:[#allocation6 + $0x8e0] sm:$0xff]
        %v799 = vld [vmem:[#allocation6 + $0x8e8] sm:$0xff]
        %v800 = vld [vmem:[#allocation6 + $0x8f0] sm:$0xff]
        %v801 = vld [vmem:[#allocation6 + $0x8f8] sm:$0xff]
        %v802 = vld [vmem:[#allocation6 + $0x900] sm:$0xff]
        %v803 = vld [vmem:[#allocation6 + $0x908] sm:$0xff]
        %v804 = vld [vmem:[#allocation6 + $0x910] sm:$0xff]
        %v805 = vld [vmem:[#allocation6 + $0x918] sm:$0xff]
        %v806 = vld [vmem:[#allocation6 + $0x920] sm:$0xff]
        %v807 = vld [vmem:[#allocation6 + $0x928] sm:$0xff]
        %v808 = vld [vmem:[#allocation6 + $0x930] sm:$0xff]
        %v809 = vld [vmem:[#allocation6 + $0x938] sm:$0xff]
        %v810 = vld [vmem:[#allocation6 + $0x940] sm:$0xff]
        %v811 = vld [vmem:[#allocation6 + $0x948] sm:$0xff]
        %v812 = vld [vmem:[#allocation6 + $0x950] sm:$0xff]
        %v813 = vld [vmem:[#allocation6 + $0x958] sm:$0xff]
        %v814 = vld [vmem:[#allocation6 + $0x960] sm:$0xff]
        %v815 = vld [vmem:[#allocation6 + $0x968] sm:$0xff]
        %v816 = vld [vmem:[#allocation6 + $0x970] sm:$0xff]
        %v817 = vld [vmem:[#allocation6 + $0x978] sm:$0xff]
        %v818 = vld [vmem:[#allocation6 + $0x980] sm:$0xff]
        %v819 = vld [vmem:[#allocation6 + $0x988] sm:$0xff]
        %v820 = vld [vmem:[#allocation6 + $0x990] sm:$0xff]
        %v821 = vld [vmem:[#allocation6 + $0x998] sm:$0xff]
        %v822 = vld [vmem:[#allocation6 + $0x9a0] sm:$0xff]
        %v823 = vld [vmem:[#allocation6 + $0x9a8] sm:$0xff]
        %v824 = vld [vmem:[#allocation6 + $0x9b0] sm:$0xff]
        %v825 = vld [vmem:[#allocation6 + $0x9b8] sm:$0xff]
        %v826 = vld [vmem:[#allocation6 + $0x9c0] sm:$0xff]
        %v827 = vld [vmem:[#allocation6 + $0x9c8] sm:$0xff]
        %v828 = vld [vmem:[#allocation6 + $0x9d0] sm:$0xff]
        %v829 = vld [vmem:[#allocation6 + $0x9d8] sm:$0xff]
        %v830 = vld [vmem:[#allocation6 + $0x9e0] sm:$0xff]
        %v831 = vld [vmem:[#allocation6 + $0x9e8] sm:$0xff]
        %v832 = vld [vmem:[#allocation6 + $0x9f0] sm:$0xff]
        %v833 = vld [vmem:[#allocation6 + $0x9f8] sm:$0xff]
        %834 = vmatprep.subr.mxu0 %v515
        %835 = vmatpush1.msra.mxu0 %v514
        %836 = vmatprep.subr.mxu0 %v519
        %837 = vmatpush1.msra.mxu0 %v518
        %838 = vmatprep.subr.mxu0 %v523
        %839 = vmatpush1.msra.mxu0 %v522
        %840 = vmatprep.subr.mxu0 %v527
        %841 = vmatpush1.msra.mxu0 %v526
        %842 = vmatprep.subr.mxu0 %v531
        %843 = vmatpush1.msra.mxu0 %v530
        %844 = vmatprep.subr.mxu0 %v535
        %845 = vmatpush1.msra.mxu0 %v534
        %846 = vmatprep.subr.mxu0 %v539
        %847 = vmatpush1.msra.mxu0 %v538
        %848 = vmatprep.subr.mxu0 %v543
        %849 = vmatpush1.msra.mxu0 %v542
        %850 = vmatprep.subr.mxu0 %v547
        %851 = vmatpush1.msra.mxu0 %v546
        %852 = vmatprep.subr.mxu0 %v551
        %853 = vmatpush1.msra.mxu0 %v550
        %854 = vmatprep.subr.mxu0 %v555
        %855 = vmatpush1.msra.mxu0 %v554
        %856 = vmatprep.subr.mxu0 %v559
        %857 = vmatpush1.msra.mxu0 %v558
        %858 = vmatprep.subr.mxu0 %v563
        %859 = vmatpush1.msra.mxu0 %v562
        %860 = vmatprep.subr.mxu0 %v567
        %861 = vmatpush1.msra.mxu0 %v566
        %862 = vmatprep.subr.mxu0 %v571
        %863 = vmatpush1.msra.mxu0 %v570
        %864 = vmatprep.subr.mxu0 %v575
        %865 = vmatpush1.msra.mxu0 %v574
        %866 = vmatprep.subr.mxu0 %v579
        %867 = vmatpush1.msra.mxu0 %v578
        %868 = vmatprep.subr.mxu0 %v583
        %869 = vmatpush1.msra.mxu0 %v582
        %870 = vmatprep.subr.mxu0 %v587
        %871 = vmatpush1.msra.mxu0 %v586
        %872 = vmatprep.subr.mxu0 %v591
        %873 = vmatpush1.msra.mxu0 %v590
        %874 = vmatprep.subr.mxu0 %v595
        %875 = vmatpush1.msra.mxu0 %v594
        %876 = vmatprep.subr.mxu0 %v599
        %877 = vmatpush1.msra.mxu0 %v598
        %878 = vmatprep.subr.mxu0 %v603
        %879 = vmatpush1.msra.mxu0 %v602
        %880 = vmatprep.subr.mxu0 %v607
        %881 = vmatpush1.msra.mxu0 %v606
        %882 = vmatprep.subr.mxu0 %v611
        %883 = vmatpush1.msra.mxu0 %v610
        %884 = vmatprep.subr.mxu0 %v615
        %885 = vmatpush1.msra.mxu0 %v614
        %886 = vmatprep.subr.mxu0 %v619
        %887 = vmatpush1.msra.mxu0 %v618
        %888 = vmatprep.subr.mxu0 %v623
        %889 = vmatpush1.msra.mxu0 %v622
        %890 = vmatprep.subr.mxu0 %v627
        %891 = vmatpush1.msra.mxu0 %v626
        %892 = vmatprep.subr.mxu0 %v631
        %893 = vmatpush1.msra.mxu0 %v630
        %894 = vmatprep.subr.mxu0 %v635
        %895 = vmatpush1.msra.mxu0 %v634
        %896 = vmatprep.subr.mxu0 %v639
        %897 = vmatpush1.msra.mxu0 %v638
        %898 = vmatprep.mubr.f32.mxu0 %v500
        %899 = vmatmul.mubr.f32.gmra.mrb[0].mxu0 %v499
        %v900 = vpop.f32.mrb[0].mxu0
        %v901 = vadd.f32 0.0, %v900
        %v902 = vpop.f32.mrb[0].mxu0
        %v903 = vadd.f32 0.0, %v902
        %904 = vmatprep.mubr.f32.mxu0 %v505
        %905 = vmatmul.mubr.f32.gmra.mrb[0].mxu0 %v504
        %v906 = vpop.f32.mrb[0].mxu0
        %v907 = vadd.f32 0.0, %v906
        %v908 = vpop.f32.mrb[0].mxu0
        %v909 = vadd.f32 0.0, %v908
        %910 = vmatprep.mubr.f32.mxu0 %v510
        %911 = vmatmul.mubr.f32.gmra.mrb[0].mxu0 %v509
        %v912 = vpop.f32.mrb[0].mxu0
        %v913 = vadd.f32 0.0, %v912
        %v914 = vpop.f32.mrb[0].mxu0
        %v915 = vadd.f32 0.0, %v914
        %916 = vdwg.mxu0
        %917 = vmatprep.subr.mxu0 %v643
        %918 = vmatpush1.msra.mxu0 %v642
        %919 = vmatprep.subr.mxu0 %v647
        %920 = vmatpush1.msra.mxu0 %v646
        %921 = vmatprep.subr.mxu0 %v651
        %922 = vmatpush1.msra.mxu0 %v650
        %923 = vmatprep.subr.mxu0 %v655
        %924 = vmatpush1.msra.mxu0 %v654
        %925 = vmatprep.subr.mxu0 %v659
        %926 = vmatpush1.msra.mxu0 %v658
        %927 = vmatprep.subr.mxu0 %v663
        %928 = vmatpush1.msra.mxu0 %v662
        %929 = vmatprep.subr.mxu0 %v667
        %930 = vmatpush1.msra.mxu0 %v666
        %931 = vmatprep.subr.mxu0 %v671
        %932 = vmatpush1.msra.mxu0 %v670
        %933 = vmatprep.subr.mxu0 %v675
        %934 = vmatpush1.msra.mxu0 %v674
        %935 = vmatprep.subr.mxu0 %v679
        %936 = vmatpush1.msra.mxu0 %v678
        %937 = vmatprep.subr.mxu0 %v683
        %938 = vmatpush1.msra.mxu0 %v682
        %939 = vmatprep.subr.mxu0 %v687
        %940 = vmatpush1.msra.mxu0 %v686
        %941 = vmatprep.subr.mxu0 %v691
        %942 = vmatpush1.msra.mxu0 %v690
        %943 = vmatprep.subr.mxu0 %v695
        %944 = vmatpush1.msra.mxu0 %v694
        %945 = vmatprep.subr.mxu0 %v699
        %946 = vmatpush1.msra.mxu0 %v698
        %947 = vmatprep.subr.mxu0 %v703
        %948 = vmatpush1.msra.mxu0 %v702
        %949 = vmatprep.subr.mxu0 %v707
        %950 = vmatpush1.msra.mxu0 %v706
        %951 = vmatprep.subr.mxu0 %v711
        %952 = vmatpush1.msra.mxu0 %v710
        %953 = vmatprep.subr.mxu0 %v715
        %954 = vmatpush1.msra.mxu0 %v714
        %955 = vmatprep.subr.mxu0 %v719
        %956 = vmatpush1.msra.mxu0 %v718
        %957 = vmatprep.subr.mxu0 %v723
        %958 = vmatpush1.msra.mxu0 %v722
        %959 = vmatprep.subr.mxu0 %v727
        %960 = vmatpush1.msra.mxu0 %v726
        %961 = vmatprep.subr.mxu0 %v731
        %962 = vmatpush1.msra.mxu0 %v730
        %963 = vmatprep.subr.mxu0 %v735
        %964 = vmatpush1.msra.mxu0 %v734
        %965 = vmatprep.subr.mxu0 %v739
        %966 = vmatpush1.msra.mxu0 %v738
        %967 = vmatprep.subr.mxu0 %v743
        %968 = vmatpush1.msra.mxu0 %v742
        %969 = vmatprep.subr.mxu0 %v747
        %970 = vmatpush1.msra.mxu0 %v746
        %971 = vmatprep.subr.mxu0 %v751
        %972 = vmatpush1.msra.mxu0 %v750
        %973 = vmatprep.subr.mxu0 %v755
        %974 = vmatpush1.msra.mxu0 %v754
        %975 = vmatprep.subr.mxu0 %v759
        %976 = vmatpush1.msra.mxu0 %v758
        %977 = vmatprep.subr.mxu0 %v763
        %978 = vmatpush1.msra.mxu0 %v762
        %979 = vmatprep.subr.mxu0 %v767
        %980 = vmatpush1.msra.mxu0 %v766
        %981 = vmatprep.mubr.f32.mxu0 %v502
        %982 = vmatmul.mubr.f32.gmra.mrb[0].mxu0 %v501
        %v983 = vpop.f32.mrb[0].mxu0
        %v984 = vadd.f32 %v901, %v983
        %v985 = vpop.f32.mrb[0].mxu0
        %v986 = vadd.f32 %v903, %v985
        %987 = vmatprep.mubr.f32.mxu0 %v507
        %988 = vmatmul.mubr.f32.gmra.mrb[0].mxu0 %v506
        %v989 = vpop.f32.mrb[0].mxu0
        %v990 = vadd.f32 %v907, %v989
        %v991 = vpop.f32.mrb[0].mxu0
        %v992 = vadd.f32 %v909, %v991
        %993 = vmatprep.mubr.f32.mxu0 %v512
        %994 = vmatmul.mubr.f32.gmra.mrb[0].mxu0 %v511
        %v995 = vpop.f32.mrb[0].mxu0
        %v996 = vadd.f32 %v913, %v995
        %v997 = vpop.f32.mrb[0].mxu0
        %v998 = vadd.f32 %v915, %v997
        %999 = vdwg.mxu0
        %1000 = vmatprep.subr.mxu0 %v771
        %1001 = vmatpush1.msra.mxu0 %v770
        %1002 = vmatprep.subr.mxu0 %v775
        %1003 = vmatpush1.msra.mxu0 %v774
        %1004 = vmatprep.subr.mxu0 %v779
        %1005 = vmatpush1.msra.mxu0 %v778
        %1006 = vmatprep.subr.mxu0 %v783
        %1007 = vmatpush1.msra.mxu0 %v782
        %1008 = vmatprep.subr.mxu0 %v787
        %1009 = vmatpush1.msra.mxu0 %v786
        %1010 = vmatprep.subr.mxu0 %v791
        %1011 = vmatpush1.msra.mxu0 %v790
        %1012 = vmatprep.subr.mxu0 %v795
        %1013 = vmatpush1.msra.mxu0 %v794
        %1014 = vmatprep.subr.mxu0 %v799
        %1015 = vmatpush1.msra.mxu0 %v798
        %1016 = vmatprep.subr.mxu0 %v803
        %1017 = vmatpush1.msra.mxu0 %v802
        %1018 = vmatprep.subr.mxu0 %v807
        %1019 = vmatpush1.msra.mxu0 %v806
        %1020 = vmatprep.subr.mxu0 %v811
        %1021 = vmatpush1.msra.mxu0 %v810
        %1022 = vmatprep.subr.mxu0 %v815
        %1023 = vmatpush1.msra.mxu0 %v814
        %1024 = vmatprep.subr.mxu0 %v819
        %1025 = vmatpush1.msra.mxu0 %v818
        %1026 = vmatprep.subr.mxu0 %v823
        %1027 = vmatpush1.msra.mxu0 %v822
        %1028 = vmatprep.subr.mxu0 %v827
        %1029 = vmatpush1.msra.mxu0 %v826
        %1030 = vmatprep.subr.mxu0 %v831
        %1031 = vmatpush1.msra.mxu0 %v830
        %1032 = vmatprep.subr.mxu0 0.0
        %1033 = vmatpush1.msra.mxu0 0.0
        %1034 = vmatprep.subr.mxu0 0.0
        %1035 = vmatpush1.msra.mxu0 0.0
        %1036 = vmatprep.subr.mxu0 0.0
        %1037 = vmatpush1.msra.mxu0 0.0
        %1038 = vmatprep.subr.mxu0 0.0
        %1039 = vmatpush1.msra.mxu0 0.0
        %1040 = vmatprep.subr.mxu0 0.0
        %1041 = vmatpush1.msra.mxu0 0.0
        %1042 = vmatprep.subr.mxu0 0.0
        %1043 = vmatpush1.msra.mxu0 0.0
        %1044 = vmatprep.subr.mxu0 0.0
        %1045 = vmatpush1.msra.mxu0 0.0
        %1046 = vmatprep.subr.mxu0 0.0
        %1047 = vmatpush1.msra.mxu0 0.0
        %1048 = vmatprep.subr.mxu0 0.0
        %1049 = vmatpush1.msra.mxu0 0.0
        %1050 = vmatprep.subr.mxu0 0.0
        %1051 = vmatpush1.msra.mxu0 0.0
        %1052 = vmatprep.subr.mxu0 0.0
        %1053 = vmatpush1.msra.mxu0 0.0
        %1054 = vmatprep.subr.mxu0 0.0
        %1055 = vmatpush1.msra.mxu0 0.0
        %1056 = vmatprep.subr.mxu0 0.0
        %1057 = vmatpush1.msra.mxu0 0.0
        %1058 = vmatprep.subr.mxu0 0.0
        %1059 = vmatpush1.msra.mxu0 0.0
        %1060 = vmatprep.subr.mxu0 0.0
        %1061 = vmatpush1.msra.mxu0 0.0
        %1062 = vmatprep.subr.mxu0 0.0
        %1063 = vmatpush1.msra.mxu0 0.0
        %1064 = vmatprep.mubr.f32.mxu0 0.0
        %1065 = vmatmul.mubr.f32.gmra.mrb[0].mxu0 %v503
        %v1066 = vpop.f32.mrb[0].mxu0
        %v1067 = vadd.f32 %v984, %v1066
        %v1068 = vpop.f32.mrb[0].mxu0
        %v1069 = vadd.f32 %v986, %v1068
        %1070 = vmatprep.mubr.f32.mxu0 0.0
        %1071 = vmatmul.mubr.f32.gmra.mrb[0].mxu0 %v508
        %v1072 = vpop.f32.mrb[0].mxu0
        %v1073 = vadd.f32 %v990, %v1072
        %v1074 = vpop.f32.mrb[0].mxu0
        %v1075 = vadd.f32 %v992, %v1074
        %1076 = vmatprep.mubr.f32.mxu0 0.0
        %1077 = vmatmul.mubr.f32.gmra.mrb[0].mxu0 %v513
        %v1078 = vpop.f32.mrb[0].mxu0
        %v1079 = vadd.f32 %v996, %v1078
        %v1080 = vpop.f32.mrb[0].mxu0
        %v1081 = vadd.f32 %v998, %v1080
        %1082 = vdwg.mxu0
        %1083 = vmatprep.subr.mxu0 %v517
        %1084 = vmatpush1.msra.mxu0 %v516
        %1085 = vmatprep.subr.mxu0 %v521
        %1086 = vmatpush1.msra.mxu0 %v520
        %1087 = vmatprep.subr.mxu0 %v525
        %1088 = vmatpush1.msra.mxu0 %v524
        %1089 = vmatprep.subr.mxu0 %v529
        %1090 = vmatpush1.msra.mxu0 %v528
        %1091 = vmatprep.subr.mxu0 %v533
        %1092 = vmatpush1.msra.mxu0 %v532
        %1093 = vmatprep.subr.mxu0 %v537
        %1094 = vmatpush1.msra.mxu0 %v536
        %1095 = vmatprep.subr.mxu0 %v541
        %1096 = vmatpush1.msra.mxu0 %v540
        %1097 = vmatprep.subr.mxu0 %v545
        %1098 = vmatpush1.msra.mxu0 %v544
        %1099 = vmatprep.subr.mxu0 %v549
        %1100 = vmatpush1.msra.mxu0 %v548
        %1101 = vmatprep.subr.mxu0 %v553
        %1102 = vmatpush1.msra.mxu0 %v552
        %1103 = vmatprep.subr.mxu0 %v557
        %1104 = vmatpush1.msra.mxu0 %v556
        %1105 = vmatprep.subr.mxu0 %v561
        %1106 = vmatpush1.msra.mxu0 %v560
        %1107 = vmatprep.subr.mxu0 %v565
        %1108 = vmatpush1.msra.mxu0 %v564
        %1109 = vmatprep.subr.mxu0 %v569
        %1110 = vmatpush1.msra.mxu0 %v568
        %1111 = vmatprep.subr.mxu0 %v573
        %1112 = vmatpush1.msra.mxu0 %v572
        %1113 = vmatprep.subr.mxu0 %v577
        %1114 = vmatpush1.msra.mxu0 %v576
        %1115 = vmatprep.subr.mxu0 %v581
        %1116 = vmatpush1.msra.mxu0 %v580
        %1117 = vmatprep.subr.mxu0 %v585
        %1118 = vmatpush1.msra.mxu0 %v584
        %1119 = vmatprep.subr.mxu0 %v589
        %1120 = vmatpush1.msra.mxu0 %v588
        %1121 = vmatprep.subr.mxu0 %v593
        %1122 = vmatpush1.msra.mxu0 %v592
        %1123 = vmatprep.subr.mxu0 %v597
        %1124 = vmatpush1.msra.mxu0 %v596
        %1125 = vmatprep.subr.mxu0 %v601
        %1126 = vmatpush1.msra.mxu0 %v600
        %1127 = vmatprep.subr.mxu0 %v605
        %1128 = vmatpush1.msra.mxu0 %v604
        %1129 = vmatprep.subr.mxu0 %v609
        %1130 = vmatpush1.msra.mxu0 %v608
        %1131 = vmatprep.subr.mxu0 %v613
        %1132 = vmatpush1.msra.mxu0 %v612
        %1133 = vmatprep.subr.mxu0 %v617
        %1134 = vmatpush1.msra.mxu0 %v616
        %1135 = vmatprep.subr.mxu0 %v621
        %1136 = vmatpush1.msra.mxu0 %v620
        %1137 = vmatprep.subr.mxu0 %v625
        %1138 = vmatpush1.msra.mxu0 %v624
        %1139 = vmatprep.subr.mxu0 %v629
        %1140 = vmatpush1.msra.mxu0 %v628
        %1141 = vmatprep.subr.mxu0 %v633
        %1142 = vmatpush1.msra.mxu0 %v632
        %1143 = vmatprep.subr.mxu0 %v637
        %1144 = vmatpush1.msra.mxu0 %v636
        %1145 = vmatprep.subr.mxu0 %v641
        %1146 = vmatpush1.msra.mxu0 %v640
        %1147 = vmatprep.mubr.f32.mxu0 %v500
        %1148 = vmatmul.mubr.f32.gmra.mrb[0].mxu0 %v499
        %v1149 = vpop.f32.mrb[0].mxu0
        %v1150 = vadd.f32 0.0, %v1149
        %v1151 = vpop.f32.mrb[0].mxu0
        %v1152 = vadd.f32 0.0, %v1151
        %1153 = vmatprep.mubr.f32.mxu0 %v505
        %1154 = vmatmul.mubr.f32.gmra.mrb[0].mxu0 %v504
        %v1155 = vpop.f32.mrb[0].mxu0
        %v1156 = vadd.f32 0.0, %v1155
        %v1157 = vpop.f32.mrb[0].mxu0
        %v1158 = vadd.f32 0.0, %v1157
        %1159 = vmatprep.mubr.f32.mxu0 %v510
        %1160 = vmatmul.mubr.f32.gmra.mrb[0].mxu0 %v509
        %v1161 = vpop.f32.mrb[0].mxu0
        %v1162 = vadd.f32 0.0, %v1161
        %v1163 = vpop.f32.mrb[0].mxu0
        %v1164 = vadd.f32 0.0, %v1163
        %1165 = vdwg.mxu0
        %1166 = vmatprep.subr.mxu0 %v645
        %1167 = vmatpush1.msra.mxu0 %v644
        %1168 = vmatprep.subr.mxu0 %v649
        %1169 = vmatpush1.msra.mxu0 %v648
        %1170 = vmatprep.subr.mxu0 %v653
        %1171 = vmatpush1.msra.mxu0 %v652
        %1172 = vmatprep.subr.mxu0 %v657
        %1173 = vmatpush1.msra.mxu0 %v656
        %1174 = vmatprep.subr.mxu0 %v661
        %1175 = vmatpush1.msra.mxu0 %v660
        %1176 = vmatprep.subr.mxu0 %v665
        %1177 = vmatpush1.msra.mxu0 %v664
        %1178 = vmatprep.subr.mxu0 %v669
        %1179 = vmatpush1.msra.mxu0 %v668
        %1180 = vmatprep.subr.mxu0 %v673
        %1181 = vmatpush1.msra.mxu0 %v672
        %1182 = vmatprep.subr.mxu0 %v677
        %1183 = vmatpush1.msra.mxu0 %v676
        %1184 = vmatprep.subr.mxu0 %v681
        %1185 = vmatpush1.msra.mxu0 %v680
        %1186 = vmatprep.subr.mxu0 %v685
        %1187 = vmatpush1.msra.mxu0 %v684
        %1188 = vmatprep.subr.mxu0 %v689
        %1189 = vmatpush1.msra.mxu0 %v688
        %1190 = vmatprep.subr.mxu0 %v693
        %1191 = vmatpush1.msra.mxu0 %v692
        %1192 = vmatprep.subr.mxu0 %v697
        %1193 = vmatpush1.msra.mxu0 %v696
        %1194 = vmatprep.subr.mxu0 %v701
        %1195 = vmatpush1.msra.mxu0 %v700
        %1196 = vmatprep.subr.mxu0 %v705
        %1197 = vmatpush1.msra.mxu0 %v704
        %1198 = vmatprep.subr.mxu0 %v709
        %1199 = vmatpush1.msra.mxu0 %v708
        %1200 = vmatprep.subr.mxu0 %v713
        %1201 = vmatpush1.msra.mxu0 %v712
        %1202 = vmatprep.subr.mxu0 %v717
        %1203 = vmatpush1.msra.mxu0 %v716
        %1204 = vmatprep.subr.mxu0 %v721
        %1205 = vmatpush1.msra.mxu0 %v720
        %1206 = vmatprep.subr.mxu0 %v725
        %1207 = vmatpush1.msra.mxu0 %v724
        %1208 = vmatprep.subr.mxu0 %v729
        %1209 = vmatpush1.msra.mxu0 %v728
        %1210 = vmatprep.subr.mxu0 %v733
        %1211 = vmatpush1.msra.mxu0 %v732
        %1212 = vmatprep.subr.mxu0 %v737
        %1213 = vmatpush1.msra.mxu0 %v736
        %1214 = vmatprep.subr.mxu0 %v741
        %1215 = vmatpush1.msra.mxu0 %v740
        %1216 = vmatprep.subr.mxu0 %v745
        %1217 = vmatpush1.msra.mxu0 %v744
        %1218 = vmatprep.subr.mxu0 %v749
        %1219 = vmatpush1.msra.mxu0 %v748
        %1220 = vmatprep.subr.mxu0 %v753
        %1221 = vmatpush1.msra.mxu0 %v752
        %1222 = vmatprep.subr.mxu0 %v757
        %1223 = vmatpush1.msra.mxu0 %v756
        %1224 = vmatprep.subr.mxu0 %v761
        %1225 = vmatpush1.msra.mxu0 %v760
        %1226 = vmatprep.subr.mxu0 %v765
        %1227 = vmatpush1.msra.mxu0 %v764
        %1228 = vmatprep.subr.mxu0 %v769
        %1229 = vmatpush1.msra.mxu0 %v768
        %1230 = vmatprep.mubr.f32.mxu0 %v502
        %1231 = vmatmul.mubr.f32.gmra.mrb[0].mxu0 %v501
        %v1232 = vpop.f32.mrb[0].mxu0
        %v1233 = vadd.f32 %v1150, %v1232
        %v1234 = vpop.f32.mrb[0].mxu0
        %v1235 = vadd.f32 %v1152, %v1234
        %1236 = vmatprep.mubr.f32.mxu0 %v507
        %1237 = vmatmul.mubr.f32.gmra.mrb[0].mxu0 %v506
        %v1238 = vpop.f32.mrb[0].mxu0
        %v1239 = vadd.f32 %v1156, %v1238
        %v1240 = vpop.f32.mrb[0].mxu0
        %v1241 = vadd.f32 %v1158, %v1240
        %1242 = vmatprep.mubr.f32.mxu0 %v512
        %1243 = vmatmul.mubr.f32.gmra.mrb[0].mxu0 %v511
        %v1244 = vpop.f32.mrb[0].mxu0
        %v1245 = vadd.f32 %v1162, %v1244
        %v1246 = vpop.f32.mrb[0].mxu0
        %v1247 = vadd.f32 %v1164, %v1246
        %1248 = vdwg.mxu0
        %1249 = vmatprep.subr.mxu0 %v773
        %1250 = vmatpush1.msra.mxu0 %v772
        %1251 = vmatprep.subr.mxu0 %v777
        %1252 = vmatpush1.msra.mxu0 %v776
        %1253 = vmatprep.subr.mxu0 %v781
        %1254 = vmatpush1.msra.mxu0 %v780
        %1255 = vmatprep.subr.mxu0 %v785
        %1256 = vmatpush1.msra.mxu0 %v784
        %1257 = vmatprep.subr.mxu0 %v789
        %1258 = vmatpush1.msra.mxu0 %v788
        %1259 = vmatprep.subr.mxu0 %v793
        %1260 = vmatpush1.msra.mxu0 %v792
        %1261 = vmatprep.subr.mxu0 %v797
        %1262 = vmatpush1.msra.mxu0 %v796
        %1263 = vmatprep.subr.mxu0 %v801
        %1264 = vmatpush1.msra.mxu0 %v800
        %1265 = vmatprep.subr.mxu0 %v805
        %1266 = vmatpush1.msra.mxu0 %v804
        %1267 = vmatprep.subr.mxu0 %v809
        %1268 = vmatpush1.msra.mxu0 %v808
        %1269 = vmatprep.subr.mxu0 %v813
        %1270 = vmatpush1.msra.mxu0 %v812
        %1271 = vmatprep.subr.mxu0 %v817
        %1272 = vmatpush1.msra.mxu0 %v816
        %1273 = vmatprep.subr.mxu0 %v821
        %1274 = vmatpush1.msra.mxu0 %v820
        %1275 = vmatprep.subr.mxu0 %v825
        %1276 = vmatpush1.msra.mxu0 %v824
        %1277 = vmatprep.subr.mxu0 %v829
        %1278 = vmatpush1.msra.mxu0 %v828
        %1279 = vmatprep.subr.mxu0 %v833
        %1280 = vmatpush1.msra.mxu0 %v832
        %1281 = vmatprep.subr.mxu0 0.0
        %1282 = vmatpush1.msra.mxu0 0.0
        %1283 = vmatprep.subr.mxu0 0.0
        %1284 = vmatpush1.msra.mxu0 0.0
        %1285 = vmatprep.subr.mxu0 0.0
        %1286 = vmatpush1.msra.mxu0 0.0
        %1287 = vmatprep.subr.mxu0 0.0
        %1288 = vmatpush1.msra.mxu0 0.0
        %1289 = vmatprep.subr.mxu0 0.0
        %1290 = vmatpush1.msra.mxu0 0.0
        %1291 = vmatprep.subr.mxu0 0.0
        %1292 = vmatpush1.msra.mxu0 0.0
        %1293 = vmatprep.subr.mxu0 0.0
        %1294 = vmatpush1.msra.mxu0 0.0
        %1295 = vmatprep.subr.mxu0 0.0
        %1296 = vmatpush1.msra.mxu0 0.0
        %1297 = vmatprep.subr.mxu0 0.0
        %1298 = vmatpush1.msra.mxu0 0.0
        %1299 = vmatprep.subr.mxu0 0.0
        %1300 = vmatpush1.msra.mxu0 0.0
        %1301 = vmatprep.subr.mxu0 0.0
        %1302 = vmatpush1.msra.mxu0 0.0
        %1303 = vmatprep.subr.mxu0 0.0
        %1304 = vmatpush1.msra.mxu0 0.0
        %1305 = vmatprep.subr.mxu0 0.0
        %1306 = vmatpush1.msra.mxu0 0.0
        %1307 = vmatprep.subr.mxu0 0.0
        %1308 = vmatpush1.msra.mxu0 0.0
        %1309 = vmatprep.subr.mxu0 0.0
        %1310 = vmatpush1.msra.mxu0 0.0
        %1311 = vmatprep.subr.mxu0 0.0
        %1312 = vmatpush1.msra.mxu0 0.0
        %1313 = vmatprep.mubr.f32.mxu0 0.0
        %1314 = vmatmul.mubr.f32.gmra.mrb[0].mxu0 %v503
        %v1315 = vpop.f32.mrb[0].mxu0
        %v1316 = vadd.f32 %v1233, %v1315
        %v1317 = vpop.f32.mrb[0].mxu0
        %v1318 = vadd.f32 %v1235, %v1317
        %1319 = vmatprep.mubr.f32.mxu0 0.0
        %1320 = vmatmul.mubr.f32.gmra.mrb[0].mxu0 %v508
        %v1321 = vpop.f32.mrb[0].mxu0
        %v1322 = vadd.f32 %v1239, %v1321
        %v1323 = vpop.f32.mrb[0].mxu0
        %v1324 = vadd.f32 %v1241, %v1323
        %1325 = vmatprep.mubr.f32.mxu0 0.0
        %1326 = vmatmul.mubr.f32.gmra.mrb[0].mxu0 %v513
        %v1327 = vpop.f32.mrb[0].mxu0
        %v1328 = vadd.f32 %v1245, %v1327
        %v1329 = vpop.f32.mrb[0].mxu0
        %v1330 = vadd.f32 %v1247, %v1329
        %1331 = vdwg.mxu0
        %1332 = vst [vmem:[#allocation3] sm:$0xff] %v1067
        %1333 = vst [vmem:[#allocation3 + $0x8] sm:$0xff] %v1069
        %1334 = vst [vmem:[#allocation3 + $0x10] sm:$0xff] %v1316
        %1335 = vst [vmem:[#allocation3 + $0x18] sm:$0xff] %v1318
        %1336 = vst [vmem:[#allocation3 + $0x20] sm:$0xff] %v1073
        %1337 = vst [vmem:[#allocation3 + $0x28] sm:$0xff] %v1075
        %1338 = vst [vmem:[#allocation3 + $0x30] sm:$0xff] %v1322
        %1339 = vst [vmem:[#allocation3 + $0x38] sm:$0xff] %v1324
        %1340 = vst [vmem:[#allocation3 + $0x40] sm:$0xff] %v1079
        %1341 = vst [vmem:[#allocation3 + $0x48] sm:$0xff] %v1081
        %1342 = vst [vmem:[#allocation3 + $0x50] sm:$0xff] %v1328
        %1343 = vst [vmem:[#allocation3 + $0x58] sm:$0xff] %v1330
        %v1344 = vld [vmem:[#allocation3] sm:$0xff]
        %v1345 = vld [vmem:[#allocation3 + $0x8] sm:$0xff]
        %v1346 = vld [vmem:[#allocation3 + $0x10] sm:$0xff]
        %v1347 = vld [vmem:[#allocation3 + $0x18] sm:$0xff]
        %v1348 = vld [vmem:[#allocation3 + $0x20] sm:$0xf]
        %v1349 = vld [vmem:[#allocation3 + $0x28] sm:$0xf]
        %v1350 = vld [vmem:[#allocation3 + $0x30] sm:$0xf]
        %v1351 = vld [vmem:[#allocation3 + $0x38] sm:$0xf]
        %v1352 = vld [vmem:[#allocation3 + $0x20] sm:$0xf0]
        %v1353 = vld [vmem:[#allocation3 + $0x28] sm:$0xf0]
        %v1354 = vld [vmem:[#allocation3 + $0x30] sm:$0xf0]
        %v1355 = vld [vmem:[#allocation3 + $0x38] sm:$0xf0]
        %v1356 = vld [vmem:[#allocation3 + $0x40] sm:$0xff]
        %v1357 = vld [vmem:[#allocation3 + $0x48] sm:$0xff]
        %v1358 = vld [vmem:[#allocation3 + $0x50] sm:$0xff]
        %v1359 = vld [vmem:[#allocation3 + $0x58] sm:$0xff]
        %v1368 = vrot.slane %v1352, 4
        %v1369 = vrot.slane %v1356, 4
        %v1370 = vsel %vm447, %v1368, %v1369
        %v1371 = vrot.slane %v1353, 4
        %v1372 = vrot.slane %v1357, 4
        %v1373 = vsel %vm447, %v1371, %v1372
        %v1374 = vrot.slane %v1354, 4
        %v1375 = vrot.slane %v1358, 4
        %v1376 = vsel %vm447, %v1374, %v1375
        %v1377 = vrot.slane %v1355, 4
        %v1378 = vrot.slane %v1359, 4
        %v1379 = vsel %vm447, %v1377, %v1378
        %v1388 = vmax.f32 %v1344, %v1370
        %v1389 = vmax.f32 %v1345, %v1373
        %v1390 = vmax.f32 %v1346, %v1376
        %v1391 = vmax.f32 %v1347, %v1379
        %v1392 = vmax.f32 %v1348, %v1369
        %v1393 = vmax.f32 %v1349, %v1372
        %v1394 = vmax.f32 %v1350, %v1375
        %v1395 = vmax.f32 %v1351, %v1378
        %v1396 = vmax.f32 %v1388, %v1390
        %v1397 = vmax.f32 %v1389, %v1391
        %v1398 = vmax.f32 %v1392, %v1394
        %v1399 = vmax.f32 %v1393, %v1395
        %v1400 = vld [vmem:[#allocation8] sm:$0x3]
        %v1402 = vlaneseq
        %v1403 = vshrl.u32 %v1402, 7
        %v1404 = vsub.s32 0, %v1403
        %v1405 = vrot.slane %v1400, %v1404
        %v1406 = vlaneseq
        %v1407 = vshrl.u32 %v1406, 7
        %v1408 = vsub.s32 1, %v1407
        %v1409 = vrot.slane %v1400, %v1408
        %v1412 = vadd.f32 %v1396, %v1405
        %v1413 = vadd.f32 %v1397, %v1409
        %v1414 = vadd.f32 %v1398, %v1405
        %v1415 = vadd.f32 %v1399, %v1409
        %v1416 = vmax.f32 %v1412, 0.0
        %v1417 = vmax.f32 %v1413, 0.0
        %v1418 = vmax.f32 %v1414, 0.0
        %v1419 = vmax.f32 %v1415, 0.0
        %1420 = vst [vmem:[#allocation4] sm:$0xff] %v1416
        %1421 = vst [vmem:[#allocation4 + $0x8] sm:$0xff] %v1417
        %1422 = vst [vmem:[#allocation4 + $0x10] sm:$0xf] %v1418
        %1423 = vst [vmem:[#allocation4 + $0x18] sm:$0xf] %v1419
        %v1424 = vld [vmem:[#allocation4] sm:$0xff]
        %v1425 = vld [vmem:[#allocation4 + $0x8] sm:$0xff]
        %1426 = vst [vmem:[#allocation5] sm:$0xff] %v1424
        %1427 = vst [vmem:[#allocation5 + $0x8] sm:$0xff] %v1425
        %v1428 = vld [vmem:[#allocation4] sm:$0xfe]
        %v1429 = vld [vmem:[#allocation4 + $0x8] sm:$0xfe]
        %v1430 = vld [vmem:[#allocation4 + $0x10] sm:$0x1]
        %v1431 = vld [vmem:[#allocation4 + $0x18] sm:$0x1]
        %vm1436 = vcmask 1046528
        %v1437 = vrot.slane %v1428, 1
        %v1438 = vrot.slane %v1430, 1
        %v1439 = vsel %vm1436, %v1437, %v1438
        %v1440 = vrot.slane %v1429, 1
        %v1441 = vrot.slane %v1431, 1
        %v1442 = vsel %vm1436, %v1440, %v1441
        %1445 = vst [vmem:[#allocation5 + $0x10] sm:$0xff] %v1439
        %1446 = vst [vmem:[#allocation5 + $0x18] sm:$0xff] %v1442
        %v1447 = vld [vmem:[#allocation4] sm:$0xfc]
        %v1448 = vld [vmem:[#allocation4 + $0x8] sm:$0xfc]
        %v1449 = vld [vmem:[#allocation4 + $0x10] sm:$0x3]
        %v1450 = vld [vmem:[#allocation4 + $0x18] sm:$0x3]
        %vm1455 = vcmask 1045504
        %v1456 = vrot.slane %v1447, 2
        %v1457 = vrot.slane %v1449, 2
        %v1458 = vsel %vm1455, %v1456, %v1457
        %v1459 = vrot.slane %v1448, 2
        %v1460 = vrot.slane %v1450, 2
        %v1461 = vsel %vm1455, %v1459, %v1460
        %1464 = vst [vmem:[#allocation5 + $0x20] sm:$0xff] %v1458
        %1465 = vst [vmem:[#allocation5 + $0x28] sm:$0xff] %v1461
        %v1466 = vld [vmem:[#allocation4] sm:$0xf8]
        %v1467 = vld [vmem:[#allocation4 + $0x8] sm:$0xf8]
        %v1468 = vld [vmem:[#allocation4 + $0x10] sm:$0x7]
        %v1469 = vld [vmem:[#allocation4 + $0x18] sm:$0x7]
        %vm1474 = vcmask 1044480
        %v1475 = vrot.slane %v1466, 3
        %v1476 = vrot.slane %v1468, 3
        %v1477 = vsel %vm1474, %v1475, %v1476
        %v1478 = vrot.slane %v1467, 3
        %v1479 = vrot.slane %v1469, 3
        %v1480 = vsel %vm1474, %v1478, %v1479
        %1483 = vst [vmem:[#allocation5 + $0x30] sm:$0xff] %v1477
        %1484 = vst [vmem:[#allocation5 + $0x38] sm:$0xff] %v1480
        %v1485 = vld [vmem:[#allocation4] sm:$0xf0]
        %v1486 = vld [vmem:[#allocation4 + $0x8] sm:$0xf0]
        %v1487 = vld [vmem:[#allocation4 + $0x10] sm:$0xf]
        %v1488 = vld [vmem:[#allocation4 + $0x18] sm:$0xf]
        %v1493 = vrot.slane %v1485, 4
        %v1494 = vrot.slane %v1487, 4
        %v1495 = vsel %vm447, %v1493, %v1494
        %v1496 = vrot.slane %v1486, 4
        %v1497 = vrot.slane %v1488, 4
        %v1498 = vsel %vm447, %v1496, %v1497
        %1501 = vst [vmem:[#allocation5 + $0x40] sm:$0xff] %v1495
        %1502 = vst [vmem:[#allocation5 + $0x48] sm:$0xff] %v1498
        %v1503 = vld [vmem:[#allocation5] sm:$0xff]
        %v1504 = vld [vmem:[#allocation5 + $0x8] sm:$0xff]
        %v1505 = vld [vmem:[#allocation5 + $0x10] sm:$0xff]
        %v1506 = vld [vmem:[#allocation5 + $0x18] sm:$0xff]
        %v1507 = vld [vmem:[#allocation5 + $0x20] sm:$0xff]
        %v1508 = vld [vmem:[#allocation5 + $0x28] sm:$0xff]
        %v1509 = vld [vmem:[#allocation5 + $0x30] sm:$0xff]
        %v1510 = vld [vmem:[#allocation5 + $0x38] sm:$0xff]
        %v1511 = vld [vmem:[#allocation5 + $0x40] sm:$0xff]
        %v1512 = vld [vmem:[#allocation5 + $0x48] sm:$0xff]
        %v1513 = vld [vmem:[#allocation10] sm:$0xff]
        %v1514 = vld [vmem:[#allocation10 + $0x8] sm:$0xff]
        %v1515 = vld [vmem:[#allocation10 + $0x10] sm:$0xff]
        %v1516 = vld [vmem:[#allocation10 + $0x18] sm:$0xff]
        %v1517 = vld [vmem:[#allocation10 + $0x20] sm:$0xff]
        %v1518 = vld [vmem:[#allocation10 + $0x28] sm:$0xff]
        %v1519 = vld [vmem:[#allocation10 + $0x30] sm:$0xff]
        %v1520 = vld [vmem:[#allocation10 + $0x38] sm:$0xff]
        %v1521 = vld [vmem:[#allocation10 + $0x40] sm:$0xff]
        %v1522 = vld [vmem:[#allocation10 + $0x48] sm:$0xff]
        %v1523 = vld [vmem:[#allocation10 + $0x50] sm:$0xff]
        %v1524 = vld [vmem:[#allocation10 + $0x58] sm:$0xff]
        %v1525 = vld [vmem:[#allocation10 + $0x60] sm:$0xff]
        %v1526 = vld [vmem:[#allocation10 + $0x68] sm:$0xff]
        %v1527 = vld [vmem:[#allocation10 + $0x70] sm:$0xff]
        %v1528 = vld [vmem:[#allocation10 + $0x78] sm:$0xff]
        %v1529 = vld [vmem:[#allocation10 + $0x80] sm:$0xff]
        %v1530 = vld [vmem:[#allocation10 + $0x88] sm:$0xff]
        %v1531 = vld [vmem:[#allocation10 + $0x90] sm:$0xff]
        %v1532 = vld [vmem:[#allocation10 + $0x98] sm:$0xff]
        %v1533 = vld [vmem:[#allocation10 + $0xa0] sm:$0xff]
        %v1534 = vld [vmem:[#allocation10 + $0xa8] sm:$0xff]
        %v1535 = vld [vmem:[#allocation10 + $0xb0] sm:$0xff]
        %v1536 = vld [vmem:[#allocation10 + $0xb8] sm:$0xff]
        %v1537 = vld [vmem:[#allocation10 + $0xc0] sm:$0xff]
        %v1538 = vld [vmem:[#allocation10 + $0xc8] sm:$0xff]
        %v1539 = vld [vmem:[#allocation10 + $0xd0] sm:$0xff]
        %v1540 = vld [vmem:[#allocation10 + $0xd8] sm:$0xff]
        %v1541 = vld [vmem:[#allocation10 + $0xe0] sm:$0xff]
        %v1542 = vld [vmem:[#allocation10 + $0xe8] sm:$0xff]
        %v1543 = vld [vmem:[#allocation10 + $0xf0] sm:$0xff]
        %v1544 = vld [vmem:[#allocation10 + $0xf8] sm:$0xff]
        %v1545 = vld [vmem:[#allocation10 + $0x100] sm:$0xff]
        %v1546 = vld [vmem:[#allocation10 + $0x108] sm:$0xff]
        %v1547 = vld [vmem:[#allocation10 + $0x110] sm:$0xff]
        %v1548 = vld [vmem:[#allocation10 + $0x118] sm:$0xff]
        %v1549 = vld [vmem:[#allocation10 + $0x120] sm:$0xff]
        %v1550 = vld [vmem:[#allocation10 + $0x128] sm:$0xff]
        %v1551 = vld [vmem:[#allocation10 + $0x130] sm:$0xff]
        %v1552 = vld [vmem:[#allocation10 + $0x138] sm:$0xff]
        %v1553 = vld [vmem:[#allocation10 + $0x140] sm:$0xff]
        %v1554 = vld [vmem:[#allocation10 + $0x148] sm:$0xff]
        %v1555 = vld [vmem:[#allocation10 + $0x150] sm:$0xff]
        %v1556 = vld [vmem:[#allocation10 + $0x158] sm:$0xff]
        %v1557 = vld [vmem:[#allocation10 + $0x160] sm:$0xff]
        %v1558 = vld [vmem:[#allocation10 + $0x168] sm:$0xff]
        %v1559 = vld [vmem:[#allocation10 + $0x170] sm:$0xff]
        %v1560 = vld [vmem:[#allocation10 + $0x178] sm:$0xff]
        %v1561 = vld [vmem:[#allocation10 + $0x180] sm:$0xff]
        %v1562 = vld [vmem:[#allocation10 + $0x188] sm:$0xff]
        %v1563 = vld [vmem:[#allocation10 + $0x190] sm:$0xff]
        %v1564 = vld [vmem:[#allocation10 + $0x198] sm:$0xff]
        %v1565 = vld [vmem:[#allocation10 + $0x1a0] sm:$0xff]
        %v1566 = vld [vmem:[#allocation10 + $0x1a8] sm:$0xff]
        %v1567 = vld [vmem:[#allocation10 + $0x1b0] sm:$0xff]
        %v1568 = vld [vmem:[#allocation10 + $0x1b8] sm:$0xff]
        %v1569 = vld [vmem:[#allocation10 + $0x1c0] sm:$0xff]
        %v1570 = vld [vmem:[#allocation10 + $0x1c8] sm:$0xff]
        %v1571 = vld [vmem:[#allocation10 + $0x1d0] sm:$0xff]
        %v1572 = vld [vmem:[#allocation10 + $0x1d8] sm:$0xff]
        %v1573 = vld [vmem:[#allocation10 + $0x1e0] sm:$0xff]
        %v1574 = vld [vmem:[#allocation10 + $0x1e8] sm:$0xff]
        %v1575 = vld [vmem:[#allocation10 + $0x1f0] sm:$0xff]
        %v1576 = vld [vmem:[#allocation10 + $0x1f8] sm:$0xff]
        %v1577 = vld [vmem:[#allocation10 + $0x200] sm:$0xff]
        %v1578 = vld [vmem:[#allocation10 + $0x208] sm:$0xff]
        %v1579 = vld [vmem:[#allocation10 + $0x210] sm:$0xff]
        %v1580 = vld [vmem:[#allocation10 + $0x218] sm:$0xff]
        %v1581 = vld [vmem:[#allocation10 + $0x220] sm:$0xff]
        %v1582 = vld [vmem:[#allocation10 + $0x228] sm:$0xff]
        %v1583 = vld [vmem:[#allocation10 + $0x230] sm:$0xff]
        %v1584 = vld [vmem:[#allocation10 + $0x238] sm:$0xff]
        %v1585 = vld [vmem:[#allocation10 + $0x240] sm:$0xff]
        %v1586 = vld [vmem:[#allocation10 + $0x248] sm:$0xff]
        %v1587 = vld [vmem:[#allocation10 + $0x250] sm:$0xff]
        %v1588 = vld [vmem:[#allocation10 + $0x258] sm:$0xff]
        %v1589 = vld [vmem:[#allocation10 + $0x260] sm:$0xff]
        %v1590 = vld [vmem:[#allocation10 + $0x268] sm:$0xff]
        %v1591 = vld [vmem:[#allocation10 + $0x270] sm:$0xff]
        %v1592 = vld [vmem:[#allocation10 + $0x278] sm:$0xff]
        %v1593 = vld [vmem:[#allocation10 + $0x280] sm:$0xff]
        %v1594 = vld [vmem:[#allocation10 + $0x288] sm:$0xff]
        %v1595 = vld [vmem:[#allocation10 + $0x290] sm:$0xff]
        %v1596 = vld [vmem:[#allocation10 + $0x298] sm:$0xff]
        %v1597 = vld [vmem:[#allocation10 + $0x2a0] sm:$0xff]
        %v1598 = vld [vmem:[#allocation10 + $0x2a8] sm:$0xff]
        %v1599 = vld [vmem:[#allocation10 + $0x2b0] sm:$0xff]
        %v1600 = vld [vmem:[#allocation10 + $0x2b8] sm:$0xff]
        %v1601 = vld [vmem:[#allocation10 + $0x2c0] sm:$0xff]
        %v1602 = vld [vmem:[#allocation10 + $0x2c8] sm:$0xff]
        %v1603 = vld [vmem:[#allocation10 + $0x2d0] sm:$0xff]
        %v1604 = vld [vmem:[#allocation10 + $0x2d8] sm:$0xff]
        %v1605 = vld [vmem:[#allocation10 + $0x2e0] sm:$0xff]
        %v1606 = vld [vmem:[#allocation10 + $0x2e8] sm:$0xff]
        %v1607 = vld [vmem:[#allocation10 + $0x2f0] sm:$0xff]
        %v1608 = vld [vmem:[#allocation10 + $0x2f8] sm:$0xff]
        %v1609 = vld [vmem:[#allocation10 + $0x300] sm:$0xff]
        %v1610 = vld [vmem:[#allocation10 + $0x308] sm:$0xff]
        %v1611 = vld [vmem:[#allocation10 + $0x310] sm:$0xff]
        %v1612 = vld [vmem:[#allocation10 + $0x318] sm:$0xff]
        %v1613 = vld [vmem:[#allocation10 + $0x320] sm:$0xff]
        %v1614 = vld [vmem:[#allocation10 + $0x328] sm:$0xff]
        %v1615 = vld [vmem:[#allocation10 + $0x330] sm:$0xff]
        %v1616 = vld [vmem:[#allocation10 + $0x338] sm:$0xff]
        %v1617 = vld [vmem:[#allocation10 + $0x340] sm:$0xff]
        %v1618 = vld [vmem:[#allocation10 + $0x348] sm:$0xff]
        %v1619 = vld [vmem:[#allocation10 + $0x350] sm:$0xff]
        %v1620 = vld [vmem:[#allocation10 + $0x358] sm:$0xff]
        %v1621 = vld [vmem:[#allocation10 + $0x360] sm:$0xff]
        %v1622 = vld [vmem:[#allocation10 + $0x368] sm:$0xff]
        %v1623 = vld [vmem:[#allocation10 + $0x370] sm:$0xff]
        %v1624 = vld [vmem:[#allocation10 + $0x378] sm:$0xff]
        %v1625 = vld [vmem:[#allocation10 + $0x380] sm:$0xff]
        %v1626 = vld [vmem:[#allocation10 + $0x388] sm:$0xff]
        %v1627 = vld [vmem:[#allocation10 + $0x390] sm:$0xff]
        %v1628 = vld [vmem:[#allocation10 + $0x398] sm:$0xff]
        %v1629 = vld [vmem:[#allocation10 + $0x3a0] sm:$0xff]
        %v1630 = vld [vmem:[#allocation10 + $0x3a8] sm:$0xff]
        %v1631 = vld [vmem:[#allocation10 + $0x3b0] sm:$0xff]
        %v1632 = vld [vmem:[#allocation10 + $0x3b8] sm:$0xff]
        %v1633 = vld [vmem:[#allocation10 + $0x3c0] sm:$0xff]
        %v1634 = vld [vmem:[#allocation10 + $0x3c8] sm:$0xff]
        %v1635 = vld [vmem:[#allocation10 + $0x3d0] sm:$0xff]
        %v1636 = vld [vmem:[#allocation10 + $0x3d8] sm:$0xff]
        %v1637 = vld [vmem:[#allocation10 + $0x3e0] sm:$0xff]
        %v1638 = vld [vmem:[#allocation10 + $0x3e8] sm:$0xff]
        %v1639 = vld [vmem:[#allocation10 + $0x3f0] sm:$0xff]
        %v1640 = vld [vmem:[#allocation10 + $0x3f8] sm:$0xff]
        %v1641 = vld [vmem:[#allocation10 + $0x400] sm:$0xff]
        %v1642 = vld [vmem:[#allocation10 + $0x408] sm:$0xff]
        %v1643 = vld [vmem:[#allocation10 + $0x410] sm:$0xff]
        %v1644 = vld [vmem:[#allocation10 + $0x418] sm:$0xff]
        %v1645 = vld [vmem:[#allocation10 + $0x420] sm:$0xff]
        %v1646 = vld [vmem:[#allocation10 + $0x428] sm:$0xff]
        %v1647 = vld [vmem:[#allocation10 + $0x430] sm:$0xff]
        %v1648 = vld [vmem:[#allocation10 + $0x438] sm:$0xff]
        %v1649 = vld [vmem:[#allocation10 + $0x440] sm:$0xff]
        %v1650 = vld [vmem:[#allocation10 + $0x448] sm:$0xff]
        %v1651 = vld [vmem:[#allocation10 + $0x450] sm:$0xff]
        %v1652 = vld [vmem:[#allocation10 + $0x458] sm:$0xff]
        %v1653 = vld [vmem:[#allocation10 + $0x460] sm:$0xff]
        %v1654 = vld [vmem:[#allocation10 + $0x468] sm:$0xff]
        %v1655 = vld [vmem:[#allocation10 + $0x470] sm:$0xff]
        %v1656 = vld [vmem:[#allocation10 + $0x478] sm:$0xff]
        %v1657 = vld [vmem:[#allocation10 + $0x480] sm:$0xff]
        %v1658 = vld [vmem:[#allocation10 + $0x488] sm:$0xff]
        %v1659 = vld [vmem:[#allocation10 + $0x490] sm:$0xff]
        %v1660 = vld [vmem:[#allocation10 + $0x498] sm:$0xff]
        %v1661 = vld [vmem:[#allocation10 + $0x4a0] sm:$0xff]
        %v1662 = vld [vmem:[#allocation10 + $0x4a8] sm:$0xff]
        %v1663 = vld [vmem:[#allocation10 + $0x4b0] sm:$0xff]
        %v1664 = vld [vmem:[#allocation10 + $0x4b8] sm:$0xff]
        %v1665 = vld [vmem:[#allocation10 + $0x4c0] sm:$0xff]
        %v1666 = vld [vmem:[#allocation10 + $0x4c8] sm:$0xff]
        %v1667 = vld [vmem:[#allocation10 + $0x4d0] sm:$0xff]
        %v1668 = vld [vmem:[#allocation10 + $0x4d8] sm:$0xff]
        %v1669 = vld [vmem:[#allocation10 + $0x4e0] sm:$0xff]
        %v1670 = vld [vmem:[#allocation10 + $0x4e8] sm:$0xff]
        %v1671 = vld [vmem:[#allocation10 + $0x4f0] sm:$0xff]
        %v1672 = vld [vmem:[#allocation10 + $0x4f8] sm:$0xff]
        %v1673 = vld [vmem:[#allocation10 + $0x500] sm:$0xff]
        %v1674 = vld [vmem:[#allocation10 + $0x508] sm:$0xff]
        %v1675 = vld [vmem:[#allocation10 + $0x510] sm:$0xff]
        %v1676 = vld [vmem:[#allocation10 + $0x518] sm:$0xff]
        %v1677 = vld [vmem:[#allocation10 + $0x520] sm:$0xff]
        %v1678 = vld [vmem:[#allocation10 + $0x528] sm:$0xff]
        %v1679 = vld [vmem:[#allocation10 + $0x530] sm:$0xff]
        %v1680 = vld [vmem:[#allocation10 + $0x538] sm:$0xff]
        %v1681 = vld [vmem:[#allocation10 + $0x540] sm:$0xff]
        %v1682 = vld [vmem:[#allocation10 + $0x548] sm:$0xff]
        %v1683 = vld [vmem:[#allocation10 + $0x550] sm:$0xff]
        %v1684 = vld [vmem:[#allocation10 + $0x558] sm:$0xff]
        %v1685 = vld [vmem:[#allocation10 + $0x560] sm:$0xff]
        %v1686 = vld [vmem:[#allocation10 + $0x568] sm:$0xff]
        %v1687 = vld [vmem:[#allocation10 + $0x570] sm:$0xff]
        %v1688 = vld [vmem:[#allocation10 + $0x578] sm:$0xff]
        %v1689 = vld [vmem:[#allocation10 + $0x580] sm:$0xff]
        %v1690 = vld [vmem:[#allocation10 + $0x588] sm:$0xff]
        %v1691 = vld [vmem:[#allocation10 + $0x590] sm:$0xff]
        %v1692 = vld [vmem:[#allocation10 + $0x598] sm:$0xff]
        %v1693 = vld [vmem:[#allocation10 + $0x5a0] sm:$0xff]
        %v1694 = vld [vmem:[#allocation10 + $0x5a8] sm:$0xff]
        %v1695 = vld [vmem:[#allocation10 + $0x5b0] sm:$0xff]
        %v1696 = vld [vmem:[#allocation10 + $0x5b8] sm:$0xff]
        %v1697 = vld [vmem:[#allocation10 + $0x5c0] sm:$0xff]
        %v1698 = vld [vmem:[#allocation10 + $0x5c8] sm:$0xff]
        %v1699 = vld [vmem:[#allocation10 + $0x5d0] sm:$0xff]
        %v1700 = vld [vmem:[#allocation10 + $0x5d8] sm:$0xff]
        %v1701 = vld [vmem:[#allocation10 + $0x5e0] sm:$0xff]
        %v1702 = vld [vmem:[#allocation10 + $0x5e8] sm:$0xff]
        %v1703 = vld [vmem:[#allocation10 + $0x5f0] sm:$0xff]
        %v1704 = vld [vmem:[#allocation10 + $0x5f8] sm:$0xff]
        %v1705 = vld [vmem:[#allocation10 + $0x600] sm:$0xff]
        %v1706 = vld [vmem:[#allocation10 + $0x608] sm:$0xff]
        %v1707 = vld [vmem:[#allocation10 + $0x610] sm:$0xff]
        %v1708 = vld [vmem:[#allocation10 + $0x618] sm:$0xff]
        %v1709 = vld [vmem:[#allocation10 + $0x620] sm:$0xff]
        %v1710 = vld [vmem:[#allocation10 + $0x628] sm:$0xff]
        %v1711 = vld [vmem:[#allocation10 + $0x630] sm:$0xff]
        %v1712 = vld [vmem:[#allocation10 + $0x638] sm:$0xff]
        %v1713 = vld [vmem:[#allocation10 + $0x640] sm:$0xff]
        %v1714 = vld [vmem:[#allocation10 + $0x648] sm:$0xff]
        %v1715 = vld [vmem:[#allocation10 + $0x650] sm:$0xff]
        %v1716 = vld [vmem:[#allocation10 + $0x658] sm:$0xff]
        %v1717 = vld [vmem:[#allocation10 + $0x660] sm:$0xff]
        %v1718 = vld [vmem:[#allocation10 + $0x668] sm:$0xff]
        %v1719 = vld [vmem:[#allocation10 + $0x670] sm:$0xff]
        %v1720 = vld [vmem:[#allocation10 + $0x678] sm:$0xff]
        %v1721 = vld [vmem:[#allocation10 + $0x680] sm:$0xff]
        %v1722 = vld [vmem:[#allocation10 + $0x688] sm:$0xff]
        %v1723 = vld [vmem:[#allocation10 + $0x690] sm:$0xff]
        %v1724 = vld [vmem:[#allocation10 + $0x698] sm:$0xff]
        %v1725 = vld [vmem:[#allocation10 + $0x6a0] sm:$0xff]
        %v1726 = vld [vmem:[#allocation10 + $0x6a8] sm:$0xff]
        %v1727 = vld [vmem:[#allocation10 + $0x6b0] sm:$0xff]
        %v1728 = vld [vmem:[#allocation10 + $0x6b8] sm:$0xff]
        %v1729 = vld [vmem:[#allocation10 + $0x6c0] sm:$0xff]
        %v1730 = vld [vmem:[#allocation10 + $0x6c8] sm:$0xff]
        %v1731 = vld [vmem:[#allocation10 + $0x6d0] sm:$0xff]
        %v1732 = vld [vmem:[#allocation10 + $0x6d8] sm:$0xff]
        %v1733 = vld [vmem:[#allocation10 + $0x6e0] sm:$0xff]
        %v1734 = vld [vmem:[#allocation10 + $0x6e8] sm:$0xff]
        %v1735 = vld [vmem:[#allocation10 + $0x6f0] sm:$0xff]
        %v1736 = vld [vmem:[#allocation10 + $0x6f8] sm:$0xff]
        %v1737 = vld [vmem:[#allocation10 + $0x700] sm:$0xff]
        %v1738 = vld [vmem:[#allocation10 + $0x708] sm:$0xff]
        %v1739 = vld [vmem:[#allocation10 + $0x710] sm:$0xff]
        %v1740 = vld [vmem:[#allocation10 + $0x718] sm:$0xff]
        %v1741 = vld [vmem:[#allocation10 + $0x720] sm:$0xff]
        %v1742 = vld [vmem:[#allocation10 + $0x728] sm:$0xff]
        %v1743 = vld [vmem:[#allocation10 + $0x730] sm:$0xff]
        %v1744 = vld [vmem:[#allocation10 + $0x738] sm:$0xff]
        %v1745 = vld [vmem:[#allocation10 + $0x740] sm:$0xff]
        %v1746 = vld [vmem:[#allocation10 + $0x748] sm:$0xff]
        %v1747 = vld [vmem:[#allocation10 + $0x750] sm:$0xff]
        %v1748 = vld [vmem:[#allocation10 + $0x758] sm:$0xff]
        %v1749 = vld [vmem:[#allocation10 + $0x760] sm:$0xff]
        %v1750 = vld [vmem:[#allocation10 + $0x768] sm:$0xff]
        %v1751 = vld [vmem:[#allocation10 + $0x770] sm:$0xff]
        %v1752 = vld [vmem:[#allocation10 + $0x778] sm:$0xff]
        %v1753 = vld [vmem:[#allocation10 + $0x780] sm:$0xff]
        %v1754 = vld [vmem:[#allocation10 + $0x788] sm:$0xff]
        %v1755 = vld [vmem:[#allocation10 + $0x790] sm:$0xff]
        %v1756 = vld [vmem:[#allocation10 + $0x798] sm:$0xff]
        %v1757 = vld [vmem:[#allocation10 + $0x7a0] sm:$0xff]
        %v1758 = vld [vmem:[#allocation10 + $0x7a8] sm:$0xff]
        %v1759 = vld [vmem:[#allocation10 + $0x7b0] sm:$0xff]
        %v1760 = vld [vmem:[#allocation10 + $0x7b8] sm:$0xff]
        %v1761 = vld [vmem:[#allocation10 + $0x7c0] sm:$0xff]
        %v1762 = vld [vmem:[#allocation10 + $0x7c8] sm:$0xff]
        %v1763 = vld [vmem:[#allocation10 + $0x7d0] sm:$0xff]
        %v1764 = vld [vmem:[#allocation10 + $0x7d8] sm:$0xff]
        %v1765 = vld [vmem:[#allocation10 + $0x7e0] sm:$0xff]
        %v1766 = vld [vmem:[#allocation10 + $0x7e8] sm:$0xff]
        %v1767 = vld [vmem:[#allocation10 + $0x7f0] sm:$0xff]
        %v1768 = vld [vmem:[#allocation10 + $0x7f8] sm:$0xff]
        %v1769 = vld [vmem:[#allocation10 + $0x800] sm:$0xff]
        %v1770 = vld [vmem:[#allocation10 + $0x808] sm:$0xff]
        %v1771 = vld [vmem:[#allocation10 + $0x810] sm:$0xff]
        %v1772 = vld [vmem:[#allocation10 + $0x818] sm:$0xff]
        %v1773 = vld [vmem:[#allocation10 + $0x820] sm:$0xff]
        %v1774 = vld [vmem:[#allocation10 + $0x828] sm:$0xff]
        %v1775 = vld [vmem:[#allocation10 + $0x830] sm:$0xff]
        %v1776 = vld [vmem:[#allocation10 + $0x838] sm:$0xff]
        %v1777 = vld [vmem:[#allocation10 + $0x840] sm:$0xff]
        %v1778 = vld [vmem:[#allocation10 + $0x848] sm:$0xff]
        %v1779 = vld [vmem:[#allocation10 + $0x850] sm:$0xff]
        %v1780 = vld [vmem:[#allocation10 + $0x858] sm:$0xff]
        %v1781 = vld [vmem:[#allocation10 + $0x860] sm:$0xff]
        %v1782 = vld [vmem:[#allocation10 + $0x868] sm:$0xff]
        %v1783 = vld [vmem:[#allocation10 + $0x870] sm:$0xff]
        %v1784 = vld [vmem:[#allocation10 + $0x878] sm:$0xff]
        %v1785 = vld [vmem:[#allocation10 + $0x880] sm:$0xff]
        %v1786 = vld [vmem:[#allocation10 + $0x888] sm:$0xff]
        %v1787 = vld [vmem:[#allocation10 + $0x890] sm:$0xff]
        %v1788 = vld [vmem:[#allocation10 + $0x898] sm:$0xff]
        %v1789 = vld [vmem:[#allocation10 + $0x8a0] sm:$0xff]
        %v1790 = vld [vmem:[#allocation10 + $0x8a8] sm:$0xff]
        %v1791 = vld [vmem:[#allocation10 + $0x8b0] sm:$0xff]
        %v1792 = vld [vmem:[#allocation10 + $0x8b8] sm:$0xff]
        %v1793 = vld [vmem:[#allocation10 + $0x8c0] sm:$0xff]
        %v1794 = vld [vmem:[#allocation10 + $0x8c8] sm:$0xff]
        %v1795 = vld [vmem:[#allocation10 + $0x8d0] sm:$0xff]
        %v1796 = vld [vmem:[#allocation10 + $0x8d8] sm:$0xff]
        %v1797 = vld [vmem:[#allocation10 + $0x8e0] sm:$0xff]
        %v1798 = vld [vmem:[#allocation10 + $0x8e8] sm:$0xff]
        %v1799 = vld [vmem:[#allocation10 + $0x8f0] sm:$0xff]
        %v1800 = vld [vmem:[#allocation10 + $0x8f8] sm:$0xff]
        %v1801 = vld [vmem:[#allocation10 + $0x900] sm:$0xff]
        %v1802 = vld [vmem:[#allocation10 + $0x908] sm:$0xff]
        %v1803 = vld [vmem:[#allocation10 + $0x910] sm:$0xff]
        %v1804 = vld [vmem:[#allocation10 + $0x918] sm:$0xff]
        %v1805 = vld [vmem:[#allocation10 + $0x920] sm:$0xff]
        %v1806 = vld [vmem:[#allocation10 + $0x928] sm:$0xff]
        %v1807 = vld [vmem:[#allocation10 + $0x930] sm:$0xff]
        %v1808 = vld [vmem:[#allocation10 + $0x938] sm:$0xff]
        %v1809 = vld [vmem:[#allocation10 + $0x940] sm:$0xff]
        %v1810 = vld [vmem:[#allocation10 + $0x948] sm:$0xff]
        %v1811 = vld [vmem:[#allocation10 + $0x950] sm:$0xff]
        %v1812 = vld [vmem:[#allocation10 + $0x958] sm:$0xff]
        %v1813 = vld [vmem:[#allocation10 + $0x960] sm:$0xff]
        %v1814 = vld [vmem:[#allocation10 + $0x968] sm:$0xff]
        %v1815 = vld [vmem:[#allocation10 + $0x970] sm:$0xff]
        %v1816 = vld [vmem:[#allocation10 + $0x978] sm:$0xff]
        %v1817 = vld [vmem:[#allocation10 + $0x980] sm:$0xff]
        %v1818 = vld [vmem:[#allocation10 + $0x988] sm:$0xff]
        %v1819 = vld [vmem:[#allocation10 + $0x990] sm:$0xff]
        %v1820 = vld [vmem:[#allocation10 + $0x998] sm:$0xff]
        %v1821 = vld [vmem:[#allocation10 + $0x9a0] sm:$0xff]
        %v1822 = vld [vmem:[#allocation10 + $0x9a8] sm:$0xff]
        %v1823 = vld [vmem:[#allocation10 + $0x9b0] sm:$0xff]
        %v1824 = vld [vmem:[#allocation10 + $0x9b8] sm:$0xff]
        %v1825 = vld [vmem:[#allocation10 + $0x9c0] sm:$0xff]
        %v1826 = vld [vmem:[#allocation10 + $0x9c8] sm:$0xff]
        %v1827 = vld [vmem:[#allocation10 + $0x9d0] sm:$0xff]
        %v1828 = vld [vmem:[#allocation10 + $0x9d8] sm:$0xff]
        %v1829 = vld [vmem:[#allocation10 + $0x9e0] sm:$0xff]
        %v1830 = vld [vmem:[#allocation10 + $0x9e8] sm:$0xff]
        %v1831 = vld [vmem:[#allocation10 + $0x9f0] sm:$0xff]
        %v1832 = vld [vmem:[#allocation10 + $0x9f8] sm:$0xff]
        %1833 = vmatprep.subr.mxu0 %v1514
        %1834 = vmatpush1.msra.mxu0 %v1513
        %1835 = vmatprep.subr.mxu0 %v1516
        %1836 = vmatpush1.msra.mxu0 %v1515
        %1837 = vmatprep.subr.mxu0 %v1518
        %1838 = vmatpush1.msra.mxu0 %v1517
        %1839 = vmatprep.subr.mxu0 %v1520
        %1840 = vmatpush1.msra.mxu0 %v1519
        %1841 = vmatprep.subr.mxu0 %v1522
        %1842 = vmatpush1.msra.mxu0 %v1521
        %1843 = vmatprep.subr.mxu0 %v1524
        %1844 = vmatpush1.msra.mxu0 %v1523
        %1845 = vmatprep.subr.mxu0 %v1526
        %1846 = vmatpush1.msra.mxu0 %v1525
        %1847 = vmatprep.subr.mxu0 %v1528
        %1848 = vmatpush1.msra.mxu0 %v1527
        %1849 = vmatprep.subr.mxu0 %v1530
        %1850 = vmatpush1.msra.mxu0 %v1529
        %1851 = vmatprep.subr.mxu0 %v1532
        %1852 = vmatpush1.msra.mxu0 %v1531
        %1853 = vmatprep.subr.mxu0 %v1534
        %1854 = vmatpush1.msra.mxu0 %v1533
        %1855 = vmatprep.subr.mxu0 %v1536
        %1856 = vmatpush1.msra.mxu0 %v1535
        %1857 = vmatprep.subr.mxu0 %v1538
        %1858 = vmatpush1.msra.mxu0 %v1537
        %1859 = vmatprep.subr.mxu0 %v1540
        %1860 = vmatpush1.msra.mxu0 %v1539
        %1861 = vmatprep.subr.mxu0 %v1542
        %1862 = vmatpush1.msra.mxu0 %v1541
        %1863 = vmatprep.subr.mxu0 %v1544
        %1864 = vmatpush1.msra.mxu0 %v1543
        %1865 = vmatprep.subr.mxu0 %v1546
        %1866 = vmatpush1.msra.mxu0 %v1545
        %1867 = vmatprep.subr.mxu0 %v1548
        %1868 = vmatpush1.msra.mxu0 %v1547
        %1869 = vmatprep.subr.mxu0 %v1550
        %1870 = vmatpush1.msra.mxu0 %v1549
        %1871 = vmatprep.subr.mxu0 %v1552
        %1872 = vmatpush1.msra.mxu0 %v1551
        %1873 = vmatprep.subr.mxu0 %v1554
        %1874 = vmatpush1.msra.mxu0 %v1553
        %1875 = vmatprep.subr.mxu0 %v1556
        %1876 = vmatpush1.msra.mxu0 %v1555
        %1877 = vmatprep.subr.mxu0 %v1558
        %1878 = vmatpush1.msra.mxu0 %v1557
        %1879 = vmatprep.subr.mxu0 %v1560
        %1880 = vmatpush1.msra.mxu0 %v1559
        %1881 = vmatprep.subr.mxu0 %v1562
        %1882 = vmatpush1.msra.mxu0 %v1561
        %1883 = vmatprep.subr.mxu0 %v1564
        %1884 = vmatpush1.msra.mxu0 %v1563
        %1885 = vmatprep.subr.mxu0 %v1566
        %1886 = vmatpush1.msra.mxu0 %v1565
        %1887 = vmatprep.subr.mxu0 %v1568
        %1888 = vmatpush1.msra.mxu0 %v1567
        %1889 = vmatprep.subr.mxu0 %v1570
        %1890 = vmatpush1.msra.mxu0 %v1569
        %1891 = vmatprep.subr.mxu0 %v1572
        %1892 = vmatpush1.msra.mxu0 %v1571
        %1893 = vmatprep.subr.mxu0 %v1574
        %1894 = vmatpush1.msra.mxu0 %v1573
        %1895 = vmatprep.subr.mxu0 %v1576
        %1896 = vmatpush1.msra.mxu0 %v1575
        %1897 = vmatprep.mubr.f32.mxu0 %v1504
        %1898 = vmatmul.mubr.f32.gmra.mrb[0].mxu0 %v1503
        %v1899 = vpop.f32.mrb[0].mxu0
        %v1900 = vadd.f32 0.0, %v1899
        %v1901 = vpop.f32.mrb[0].mxu0
        %v1902 = vadd.f32 0.0, %v1901
        %1903 = vdwg.mxu0
        %1904 = vmatprep.subr.mxu0 %v1578
        %1905 = vmatpush1.msra.mxu0 %v1577
        %1906 = vmatprep.subr.mxu0 %v1580
        %1907 = vmatpush1.msra.mxu0 %v1579
        %1908 = vmatprep.subr.mxu0 %v1582
        %1909 = vmatpush1.msra.mxu0 %v1581
        %1910 = vmatprep.subr.mxu0 %v1584
        %1911 = vmatpush1.msra.mxu0 %v1583
        %1912 = vmatprep.subr.mxu0 %v1586
        %1913 = vmatpush1.msra.mxu0 %v1585
        %1914 = vmatprep.subr.mxu0 %v1588
        %1915 = vmatpush1.msra.mxu0 %v1587
        %1916 = vmatprep.subr.mxu0 %v1590
        %1917 = vmatpush1.msra.mxu0 %v1589
        %1918 = vmatprep.subr.mxu0 %v1592
        %1919 = vmatpush1.msra.mxu0 %v1591
        %1920 = vmatprep.subr.mxu0 %v1594
        %1921 = vmatpush1.msra.mxu0 %v1593
        %1922 = vmatprep.subr.mxu0 %v1596
        %1923 = vmatpush1.msra.mxu0 %v1595
        %1924 = vmatprep.subr.mxu0 %v1598
        %1925 = vmatpush1.msra.mxu0 %v1597
        %1926 = vmatprep.subr.mxu0 %v1600
        %1927 = vmatpush1.msra.mxu0 %v1599
        %1928 = vmatprep.subr.mxu0 %v1602
        %1929 = vmatpush1.msra.mxu0 %v1601
        %1930 = vmatprep.subr.mxu0 %v1604
        %1931 = vmatpush1.msra.mxu0 %v1603
        %1932 = vmatprep.subr.mxu0 %v1606
        %1933 = vmatpush1.msra.mxu0 %v1605
        %1934 = vmatprep.subr.mxu0 %v1608
        %1935 = vmatpush1.msra.mxu0 %v1607
        %1936 = vmatprep.subr.mxu0 %v1610
        %1937 = vmatpush1.msra.mxu0 %v1609
        %1938 = vmatprep.subr.mxu0 %v1612
        %1939 = vmatpush1.msra.mxu0 %v1611
        %1940 = vmatprep.subr.mxu0 %v1614
        %1941 = vmatpush1.msra.mxu0 %v1613
        %1942 = vmatprep.subr.mxu0 %v1616
        %1943 = vmatpush1.msra.mxu0 %v1615
        %1944 = vmatprep.subr.mxu0 %v1618
        %1945 = vmatpush1.msra.mxu0 %v1617
        %1946 = vmatprep.subr.mxu0 %v1620
        %1947 = vmatpush1.msra.mxu0 %v1619
        %1948 = vmatprep.subr.mxu0 %v1622
        %1949 = vmatpush1.msra.mxu0 %v1621
        %1950 = vmatprep.subr.mxu0 %v1624
        %1951 = vmatpush1.msra.mxu0 %v1623
        %1952 = vmatprep.subr.mxu0 %v1626
        %1953 = vmatpush1.msra.mxu0 %v1625
        %1954 = vmatprep.subr.mxu0 %v1628
        %1955 = vmatpush1.msra.mxu0 %v1627
        %1956 = vmatprep.subr.mxu0 %v1630
        %1957 = vmatpush1.msra.mxu0 %v1629
        %1958 = vmatprep.subr.mxu0 %v1632
        %1959 = vmatpush1.msra.mxu0 %v1631
        %1960 = vmatprep.subr.mxu0 %v1634
        %1961 = vmatpush1.msra.mxu0 %v1633
        %1962 = vmatprep.subr.mxu0 %v1636
        %1963 = vmatpush1.msra.mxu0 %v1635
        %1964 = vmatprep.subr.mxu0 %v1638
        %1965 = vmatpush1.msra.mxu0 %v1637
        %1966 = vmatprep.subr.mxu0 %v1640
        %1967 = vmatpush1.msra.mxu0 %v1639
        %1968 = vmatprep.mubr.f32.mxu0 %v1506
        %1969 = vmatmul.mubr.f32.gmra.mrb[0].mxu0 %v1505
        %v1970 = vpop.f32.mrb[0].mxu0
        %v1971 = vadd.f32 %v1900, %v1970
        %v1972 = vpop.f32.mrb[0].mxu0
        %v1973 = vadd.f32 %v1902, %v1972
        %1974 = vdwg.mxu0
        %1975 = vmatprep.subr.mxu0 %v1642
        %1976 = vmatpush1.msra.mxu0 %v1641
        %1977 = vmatprep.subr.mxu0 %v1644
        %1978 = vmatpush1.msra.mxu0 %v1643
        %1979 = vmatprep.subr.mxu0 %v1646
        %1980 = vmatpush1.msra.mxu0 %v1645
        %1981 = vmatprep.subr.mxu0 %v1648
        %1982 = vmatpush1.msra.mxu0 %v1647
        %1983 = vmatprep.subr.mxu0 %v1650
        %1984 = vmatpush1.msra.mxu0 %v1649
        %1985 = vmatprep.subr.mxu0 %v1652
        %1986 = vmatpush1.msra.mxu0 %v1651
        %1987 = vmatprep.subr.mxu0 %v1654
        %1988 = vmatpush1.msra.mxu0 %v1653
        %1989 = vmatprep.subr.mxu0 %v1656
        %1990 = vmatpush1.msra.mxu0 %v1655
        %1991 = vmatprep.subr.mxu0 %v1658
        %1992 = vmatpush1.msra.mxu0 %v1657
        %1993 = vmatprep.subr.mxu0 %v1660
        %1994 = vmatpush1.msra.mxu0 %v1659
        %1995 = vmatprep.subr.mxu0 %v1662
        %1996 = vmatpush1.msra.mxu0 %v1661
        %1997 = vmatprep.subr.mxu0 %v1664
        %1998 = vmatpush1.msra.mxu0 %v1663
        %1999 = vmatprep.subr.mxu0 %v1666
        %2000 = vmatpush1.msra.mxu0 %v1665
        %2001 = vmatprep.subr.mxu0 %v1668
        %2002 = vmatpush1.msra.mxu0 %v1667
        %2003 = vmatprep.subr.mxu0 %v1670
        %2004 = vmatpush1.msra.mxu0 %v1669
        %2005 = vmatprep.subr.mxu0 %v1672
        %2006 = vmatpush1.msra.mxu0 %v1671
        %2007 = vmatprep.subr.mxu0 %v1674
        %2008 = vmatpush1.msra.mxu0 %v1673
        %2009 = vmatprep.subr.mxu0 %v1676
        %2010 = vmatpush1.msra.mxu0 %v1675
        %2011 = vmatprep.subr.mxu0 %v1678
        %2012 = vmatpush1.msra.mxu0 %v1677
        %2013 = vmatprep.subr.mxu0 %v1680
        %2014 = vmatpush1.msra.mxu0 %v1679
        %2015 = vmatprep.subr.mxu0 %v1682
        %2016 = vmatpush1.msra.mxu0 %v1681
        %2017 = vmatprep.subr.mxu0 %v1684
        %2018 = vmatpush1.msra.mxu0 %v1683
        %2019 = vmatprep.subr.mxu0 %v1686
        %2020 = vmatpush1.msra.mxu0 %v1685
        %2021 = vmatprep.subr.mxu0 %v1688
        %2022 = vmatpush1.msra.mxu0 %v1687
        %2023 = vmatprep.subr.mxu0 %v1690
        %2024 = vmatpush1.msra.mxu0 %v1689
        %2025 = vmatprep.subr.mxu0 %v1692
        %2026 = vmatpush1.msra.mxu0 %v1691
        %2027 = vmatprep.subr.mxu0 %v1694
        %2028 = vmatpush1.msra.mxu0 %v1693
        %2029 = vmatprep.subr.mxu0 %v1696
        %2030 = vmatpush1.msra.mxu0 %v1695
        %2031 = vmatprep.subr.mxu0 %v1698
        %2032 = vmatpush1.msra.mxu0 %v1697
        %2033 = vmatprep.subr.mxu0 %v1700
        %2034 = vmatpush1.msra.mxu0 %v1699
        %2035 = vmatprep.subr.mxu0 %v1702
        %2036 = vmatpush1.msra.mxu0 %v1701
        %2037 = vmatprep.subr.mxu0 %v1704
        %2038 = vmatpush1.msra.mxu0 %v1703
        %2039 = vmatprep.mubr.f32.mxu0 %v1508
        %2040 = vmatmul.mubr.f32.gmra.mrb[0].mxu0 %v1507
        %v2041 = vpop.f32.mrb[0].mxu0
        %v2042 = vadd.f32 %v1971, %v2041
        %v2043 = vpop.f32.mrb[0].mxu0
        %v2044 = vadd.f32 %v1973, %v2043
        %2045 = vdwg.mxu0
        %2046 = vmatprep.subr.mxu0 %v1706
        %2047 = vmatpush1.msra.mxu0 %v1705
        %2048 = vmatprep.subr.mxu0 %v1708
        %2049 = vmatpush1.msra.mxu0 %v1707
        %2050 = vmatprep.subr.mxu0 %v1710
        %2051 = vmatpush1.msra.mxu0 %v1709
        %2052 = vmatprep.subr.mxu0 %v1712
        %2053 = vmatpush1.msra.mxu0 %v1711
        %2054 = vmatprep.subr.mxu0 %v1714
        %2055 = vmatpush1.msra.mxu0 %v1713
        %2056 = vmatprep.subr.mxu0 %v1716
        %2057 = vmatpush1.msra.mxu0 %v1715
        %2058 = vmatprep.subr.mxu0 %v1718
        %2059 = vmatpush1.msra.mxu0 %v1717
        %2060 = vmatprep.subr.mxu0 %v1720
        %2061 = vmatpush1.msra.mxu0 %v1719
        %2062 = vmatprep.subr.mxu0 %v1722
        %2063 = vmatpush1.msra.mxu0 %v1721
        %2064 = vmatprep.subr.mxu0 %v1724
        %2065 = vmatpush1.msra.mxu0 %v1723
        %2066 = vmatprep.subr.mxu0 %v1726
        %2067 = vmatpush1.msra.mxu0 %v1725
        %2068 = vmatprep.subr.mxu0 %v1728
        %2069 = vmatpush1.msra.mxu0 %v1727
        %2070 = vmatprep.subr.mxu0 %v1730
        %2071 = vmatpush1.msra.mxu0 %v1729
        %2072 = vmatprep.subr.mxu0 %v1732
        %2073 = vmatpush1.msra.mxu0 %v1731
        %2074 = vmatprep.subr.mxu0 %v1734
        %2075 = vmatpush1.msra.mxu0 %v1733
        %2076 = vmatprep.subr.mxu0 %v1736
        %2077 = vmatpush1.msra.mxu0 %v1735
        %2078 = vmatprep.subr.mxu0 %v1738
        %2079 = vmatpush1.msra.mxu0 %v1737
        %2080 = vmatprep.subr.mxu0 %v1740
        %2081 = vmatpush1.msra.mxu0 %v1739
        %2082 = vmatprep.subr.mxu0 %v1742
        %2083 = vmatpush1.msra.mxu0 %v1741
        %2084 = vmatprep.subr.mxu0 %v1744
        %2085 = vmatpush1.msra.mxu0 %v1743
        %2086 = vmatprep.subr.mxu0 %v1746
        %2087 = vmatpush1.msra.mxu0 %v1745
        %2088 = vmatprep.subr.mxu0 %v1748
        %2089 = vmatpush1.msra.mxu0 %v1747
        %2090 = vmatprep.subr.mxu0 %v1750
        %2091 = vmatpush1.msra.mxu0 %v1749
        %2092 = vmatprep.subr.mxu0 %v1752
        %2093 = vmatpush1.msra.mxu0 %v1751
        %2094 = vmatprep.subr.mxu0 %v1754
        %2095 = vmatpush1.msra.mxu0 %v1753
        %2096 = vmatprep.subr.mxu0 %v1756
        %2097 = vmatpush1.msra.mxu0 %v1755
        %2098 = vmatprep.subr.mxu0 %v1758
        %2099 = vmatpush1.msra.mxu0 %v1757
        %2100 = vmatprep.subr.mxu0 %v1760
        %2101 = vmatpush1.msra.mxu0 %v1759
        %2102 = vmatprep.subr.mxu0 %v1762
        %2103 = vmatpush1.msra.mxu0 %v1761
        %2104 = vmatprep.subr.mxu0 %v1764
        %2105 = vmatpush1.msra.mxu0 %v1763
        %2106 = vmatprep.subr.mxu0 %v1766
        %2107 = vmatpush1.msra.mxu0 %v1765
        %2108 = vmatprep.subr.mxu0 %v1768
        %2109 = vmatpush1.msra.mxu0 %v1767
        %2110 = vmatprep.mubr.f32.mxu0 %v1510
        %2111 = vmatmul.mubr.f32.gmra.mrb[0].mxu0 %v1509
        %v2112 = vpop.f32.mrb[0].mxu0
        %v2113 = vadd.f32 %v2042, %v2112
        %v2114 = vpop.f32.mrb[0].mxu0
        %v2115 = vadd.f32 %v2044, %v2114
        %2116 = vdwg.mxu0
        %2117 = vmatprep.subr.mxu0 %v1770
        %2118 = vmatpush1.msra.mxu0 %v1769
        %2119 = vmatprep.subr.mxu0 %v1772
        %2120 = vmatpush1.msra.mxu0 %v1771
        %2121 = vmatprep.subr.mxu0 %v1774
        %2122 = vmatpush1.msra.mxu0 %v1773
        %2123 = vmatprep.subr.mxu0 %v1776
        %2124 = vmatpush1.msra.mxu0 %v1775
        %2125 = vmatprep.subr.mxu0 %v1778
        %2126 = vmatpush1.msra.mxu0 %v1777
        %2127 = vmatprep.subr.mxu0 %v1780
        %2128 = vmatpush1.msra.mxu0 %v1779
        %2129 = vmatprep.subr.mxu0 %v1782
        %2130 = vmatpush1.msra.mxu0 %v1781
        %2131 = vmatprep.subr.mxu0 %v1784
        %2132 = vmatpush1.msra.mxu0 %v1783
        %2133 = vmatprep.subr.mxu0 %v1786
        %2134 = vmatpush1.msra.mxu0 %v1785
        %2135 = vmatprep.subr.mxu0 %v1788
        %2136 = vmatpush1.msra.mxu0 %v1787
        %2137 = vmatprep.subr.mxu0 %v1790
        %2138 = vmatpush1.msra.mxu0 %v1789
        %2139 = vmatprep.subr.mxu0 %v1792
        %2140 = vmatpush1.msra.mxu0 %v1791
        %2141 = vmatprep.subr.mxu0 %v1794
        %2142 = vmatpush1.msra.mxu0 %v1793
        %2143 = vmatprep.subr.mxu0 %v1796
        %2144 = vmatpush1.msra.mxu0 %v1795
        %2145 = vmatprep.subr.mxu0 %v1798
        %2146 = vmatpush1.msra.mxu0 %v1797
        %2147 = vmatprep.subr.mxu0 %v1800
        %2148 = vmatpush1.msra.mxu0 %v1799
        %2149 = vmatprep.subr.mxu0 %v1802
        %2150 = vmatpush1.msra.mxu0 %v1801
        %2151 = vmatprep.subr.mxu0 %v1804
        %2152 = vmatpush1.msra.mxu0 %v1803
        %2153 = vmatprep.subr.mxu0 %v1806
        %2154 = vmatpush1.msra.mxu0 %v1805
        %2155 = vmatprep.subr.mxu0 %v1808
        %2156 = vmatpush1.msra.mxu0 %v1807
        %2157 = vmatprep.subr.mxu0 %v1810
        %2158 = vmatpush1.msra.mxu0 %v1809
        %2159 = vmatprep.subr.mxu0 %v1812
        %2160 = vmatpush1.msra.mxu0 %v1811
        %2161 = vmatprep.subr.mxu0 %v1814
        %2162 = vmatpush1.msra.mxu0 %v1813
        %2163 = vmatprep.subr.mxu0 %v1816
        %2164 = vmatpush1.msra.mxu0 %v1815
        %2165 = vmatprep.subr.mxu0 %v1818
        %2166 = vmatpush1.msra.mxu0 %v1817
        %2167 = vmatprep.subr.mxu0 %v1820
        %2168 = vmatpush1.msra.mxu0 %v1819
        %2169 = vmatprep.subr.mxu0 %v1822
        %2170 = vmatpush1.msra.mxu0 %v1821
        %2171 = vmatprep.subr.mxu0 %v1824
        %2172 = vmatpush1.msra.mxu0 %v1823
        %2173 = vmatprep.subr.mxu0 %v1826
        %2174 = vmatpush1.msra.mxu0 %v1825
        %2175 = vmatprep.subr.mxu0 %v1828
        %2176 = vmatpush1.msra.mxu0 %v1827
        %2177 = vmatprep.subr.mxu0 %v1830
        %2178 = vmatpush1.msra.mxu0 %v1829
        %2179 = vmatprep.subr.mxu0 %v1832
        %2180 = vmatpush1.msra.mxu0 %v1831
        %2181 = vmatprep.mubr.f32.mxu0 %v1512
        %2182 = vmatmul.mubr.f32.gmra.mrb[0].mxu0 %v1511
        %v2183 = vpop.f32.mrb[0].mxu0
        %v2184 = vadd.f32 %v2113, %v2183
        %v2185 = vpop.f32.mrb[0].mxu0
        %v2186 = vadd.f32 %v2115, %v2185
        %2187 = vdwg.mxu0
        %v2188 = vmax.f32 %v2184, %v2186
        %v2189 = vld [vmem:[#allocation11] sm:$0x1]
        %v2191 = vlaneseq
        %v2192 = vshrl.u32 %v2191, 7
        %v2193 = vsub.s32 0, %v2192
        %v2194 = vrot.slane %v2189, %v2193
        %v2196 = vadd.f32 %v2188, %v2194
        %v2197 = vmax.f32 %v2196, 0.0
        %v2199 = vrot.slane %v2197, 1
        %v2201 = vmax.f32 %v2197, %v2199
        %v2203 = vrot.slane %v2201, 2
        %v2205 = vrot.slane %v2201, 4
        %v2207 = vrot.slane %v2201, 6
        %v2209 = vld [vmem:[%s5] sm:$0xff]
        %v2210 = vld [vmem:[%s5 + $0x8] sm:$0xff]
        %v2211 = vld [vmem:[%s5 + $0x10] sm:$0xff]
        %v2212 = vld [vmem:[%s5 + $0x18] sm:$0xff]
        %v2213 = vld [vmem:[%s5 + $0x20] sm:$0xff]
        %v2214 = vld [vmem:[%s5 + $0x28] sm:$0xff]
        %v2215 = vld [vmem:[%s5 + $0x30] sm:$0xff]
        %v2216 = vld [vmem:[%s5 + $0x38] sm:$0xff]
        %v2217 = vld [vmem:[%s5 + $0x40] sm:$0xff]
        %v2218 = vld [vmem:[%s5 + $0x48] sm:$0xff]
        %v2219 = vld [vmem:[%s5 + $0x50] sm:$0xff]
        %v2220 = vld [vmem:[%s5 + $0x58] sm:$0xff]
        %v2221 = vld [vmem:[%s5 + $0x60] sm:$0xff]
        %v2222 = vld [vmem:[%s5 + $0x68] sm:$0xff]
        %v2223 = vld [vmem:[%s5 + $0x70] sm:$0xff]
        %v2224 = vld [vmem:[%s5 + $0x78] sm:$0xff]
        %v2225 = vld [vmem:[%s5 + $0x80] sm:$0xff]
        %v2226 = vld [vmem:[%s5 + $0x88] sm:$0xff]
        %v2227 = vld [vmem:[%s5 + $0x90] sm:$0xff]
        %v2228 = vld [vmem:[%s5 + $0x98] sm:$0xff]
        %v2229 = vld [vmem:[%s5 + $0xa0] sm:$0xff]
        %v2230 = vld [vmem:[%s5 + $0xa8] sm:$0xff]
        %v2231 = vld [vmem:[%s5 + $0xb0] sm:$0xff]
        %v2232 = vld [vmem:[%s5 + $0xb8] sm:$0xff]
        %v2233 = vld [vmem:[%s5 + $0xc0] sm:$0xff]
        %v2234 = vld [vmem:[%s5 + $0xc8] sm:$0xff]
        %v2235 = vld [vmem:[%s5 + $0xd0] sm:$0xff]
        %v2236 = vld [vmem:[%s5 + $0xd8] sm:$0xff]
        %v2237 = vld [vmem:[%s5 + $0xe0] sm:$0xff]
        %v2238 = vld [vmem:[%s5 + $0xe8] sm:$0xff]
        %v2239 = vld [vmem:[%s5 + $0xf0] sm:$0xff]
        %v2240 = vld [vmem:[%s5 + $0xf8] sm:$0xff]
        %v2241 = vld [vmem:[%s5 + $0x100] sm:$0xff]
        %v2242 = vld [vmem:[%s5 + $0x108] sm:$0xff]
        %v2243 = vld [vmem:[%s5 + $0x110] sm:$0xff]
        %v2244 = vld [vmem:[%s5 + $0x118] sm:$0xff]
        %v2245 = vld [vmem:[%s5 + $0x120] sm:$0xff]
        %v2246 = vld [vmem:[%s5 + $0x128] sm:$0xff]
        %v2247 = vld [vmem:[%s5 + $0x130] sm:$0xff]
        %v2248 = vld [vmem:[%s5 + $0x138] sm:$0xff]
        %v2249 = vld [vmem:[%s5 + $0x140] sm:$0xff]
        %v2250 = vld [vmem:[%s5 + $0x148] sm:$0xff]
        %v2251 = vld [vmem:[%s5 + $0x150] sm:$0xff]
        %v2252 = vld [vmem:[%s5 + $0x158] sm:$0xff]
        %v2253 = vld [vmem:[%s5 + $0x160] sm:$0xff]
        %v2254 = vld [vmem:[%s5 + $0x168] sm:$0xff]
        %v2255 = vld [vmem:[%s5 + $0x170] sm:$0xff]
        %v2256 = vld [vmem:[%s5 + $0x178] sm:$0xff]
        %v2257 = vld [vmem:[%s5 + $0x180] sm:$0xff]
        %v2258 = vld [vmem:[%s5 + $0x188] sm:$0xff]
        %v2259 = vld [vmem:[%s5 + $0x190] sm:$0xff]
        %v2260 = vld [vmem:[%s5 + $0x198] sm:$0xff]
        %v2261 = vld [vmem:[%s5 + $0x1a0] sm:$0xff]
        %v2262 = vld [vmem:[%s5 + $0x1a8] sm:$0xff]
        %v2263 = vld [vmem:[%s5 + $0x1b0] sm:$0xff]
        %v2264 = vld [vmem:[%s5 + $0x1b8] sm:$0xff]
        %v2265 = vld [vmem:[%s5 + $0x1c0] sm:$0xff]
        %v2266 = vld [vmem:[%s5 + $0x1c8] sm:$0xff]
        %v2267 = vld [vmem:[%s5 + $0x1d0] sm:$0xff]
        %v2268 = vld [vmem:[%s5 + $0x1d8] sm:$0xff]
        %v2269 = vld [vmem:[%s5 + $0x1e0] sm:$0xff]
        %v2270 = vld [vmem:[%s5 + $0x1e8] sm:$0xff]
        %v2271 = vld [vmem:[%s5 + $0x1f0] sm:$0xff]
        %v2272 = vld [vmem:[%s5 + $0x1f8] sm:$0xff]
        %v2273 = vld [vmem:[#allocation13] sm:$0x1]
        %2274 = vmatprep.subr.mxu0 0.0
        %2275 = vmatpush1.msra.mxu0 %v2209
        %2276 = vmatprep.subr.mxu0 0.0
        %2277 = vmatpush1.msra.mxu0 %v2210
        %2278 = vmatprep.subr.mxu0 0.0
        %2279 = vmatpush1.msra.mxu0 %v2211
        %2280 = vmatprep.subr.mxu0 0.0
        %2281 = vmatpush1.msra.mxu0 %v2212
        %2282 = vmatprep.subr.mxu0 0.0
        %2283 = vmatpush1.msra.mxu0 %v2213
        %2284 = vmatprep.subr.mxu0 0.0
        %2285 = vmatpush1.msra.mxu0 %v2214
        %2286 = vmatprep.subr.mxu0 0.0
        %2287 = vmatpush1.msra.mxu0 %v2215
        %2288 = vmatprep.subr.mxu0 0.0
        %2289 = vmatpush1.msra.mxu0 %v2216
        %2290 = vmatprep.subr.mxu0 0.0
        %2291 = vmatpush1.msra.mxu0 %v2217
        %2292 = vmatprep.subr.mxu0 0.0
        %2293 = vmatpush1.msra.mxu0 %v2218
        %2294 = vmatprep.subr.mxu0 0.0
        %2295 = vmatpush1.msra.mxu0 %v2219
        %2296 = vmatprep.subr.mxu0 0.0
        %2297 = vmatpush1.msra.mxu0 %v2220
        %2298 = vmatprep.subr.mxu0 0.0
        %2299 = vmatpush1.msra.mxu0 %v2221
        %2300 = vmatprep.subr.mxu0 0.0
        %2301 = vmatpush1.msra.mxu0 %v2222
        %2302 = vmatprep.subr.mxu0 0.0
        %2303 = vmatpush1.msra.mxu0 %v2223
        %2304 = vmatprep.subr.mxu0 0.0
        %2305 = vmatpush1.msra.mxu0 %v2224
        %2306 = vmatprep.subr.mxu0 0.0
        %2307 = vmatpush1.msra.mxu0 %v2225
        %2308 = vmatprep.subr.mxu0 0.0
        %2309 = vmatpush1.msra.mxu0 %v2226
        %2310 = vmatprep.subr.mxu0 0.0
        %2311 = vmatpush1.msra.mxu0 %v2227
        %2312 = vmatprep.subr.mxu0 0.0
        %2313 = vmatpush1.msra.mxu0 %v2228
        %2314 = vmatprep.subr.mxu0 0.0
        %2315 = vmatpush1.msra.mxu0 %v2229
        %2316 = vmatprep.subr.mxu0 0.0
        %2317 = vmatpush1.msra.mxu0 %v2230
        %2318 = vmatprep.subr.mxu0 0.0
        %2319 = vmatpush1.msra.mxu0 %v2231
        %2320 = vmatprep.subr.mxu0 0.0
        %2321 = vmatpush1.msra.mxu0 %v2232
        %2322 = vmatprep.subr.mxu0 0.0
        %2323 = vmatpush1.msra.mxu0 %v2233
        %2324 = vmatprep.subr.mxu0 0.0
        %2325 = vmatpush1.msra.mxu0 %v2234
        %2326 = vmatprep.subr.mxu0 0.0
        %2327 = vmatpush1.msra.mxu0 %v2235
        %2328 = vmatprep.subr.mxu0 0.0
        %2329 = vmatpush1.msra.mxu0 %v2236
        %2330 = vmatprep.subr.mxu0 0.0
        %2331 = vmatpush1.msra.mxu0 %v2237
        %2332 = vmatprep.subr.mxu0 0.0
        %2333 = vmatpush1.msra.mxu0 %v2238
        %2334 = vmatprep.subr.mxu0 0.0
        %2335 = vmatpush1.msra.mxu0 %v2239
        %2336 = vmatprep.subr.mxu0 0.0
        %2337 = vmatpush1.msra.mxu0 %v2240
        %2338 = vmatprep.mubr.f32.mxu0 %v2203
        %2339 = vmatmul.mubr.f32.gmra.mrb[0].mxu0 %v2201
        %v2340 = vpop.f32.mrb[0].mxu0
        %v2341 = vadd.f32 %v2273, %v2340
        %v2342 = vpop.f32.mrb[0].mxu0
        %2343 = vdwg.mxu0
        %2344 = vmatprep.subr.mxu0 0.0
        %2345 = vmatpush1.msra.mxu0 %v2241
        %2346 = vmatprep.subr.mxu0 0.0
        %2347 = vmatpush1.msra.mxu0 %v2242
        %2348 = vmatprep.subr.mxu0 0.0
        %2349 = vmatpush1.msra.mxu0 %v2243
        %2350 = vmatprep.subr.mxu0 0.0
        %2351 = vmatpush1.msra.mxu0 %v2244
        %2352 = vmatprep.subr.mxu0 0.0
        %2353 = vmatpush1.msra.mxu0 %v2245
        %2354 = vmatprep.subr.mxu0 0.0
        %2355 = vmatpush1.msra.mxu0 %v2246
        %2356 = vmatprep.subr.mxu0 0.0
        %2357 = vmatpush1.msra.mxu0 %v2247
        %2358 = vmatprep.subr.mxu0 0.0
        %2359 = vmatpush1.msra.mxu0 %v2248
        %2360 = vmatprep.subr.mxu0 0.0
        %2361 = vmatpush1.msra.mxu0 %v2249
        %2362 = vmatprep.subr.mxu0 0.0
        %2363 = vmatpush1.msra.mxu0 %v2250
        %2364 = vmatprep.subr.mxu0 0.0
        %2365 = vmatpush1.msra.mxu0 %v2251
        %2366 = vmatprep.subr.mxu0 0.0
        %2367 = vmatpush1.msra.mxu0 %v2252
        %2368 = vmatprep.subr.mxu0 0.0
        %2369 = vmatpush1.msra.mxu0 %v2253
        %2370 = vmatprep.subr.mxu0 0.0
        %2371 = vmatpush1.msra.mxu0 %v2254
        %2372 = vmatprep.subr.mxu0 0.0
        %2373 = vmatpush1.msra.mxu0 %v2255
        %2374 = vmatprep.subr.mxu0 0.0
        %2375 = vmatpush1.msra.mxu0 %v2256
        %2376 = vmatprep.subr.mxu0 0.0
        %2377 = vmatpush1.msra.mxu0 %v2257
        %2378 = vmatprep.subr.mxu0 0.0
        %2379 = vmatpush1.msra.mxu0 %v2258
        %2380 = vmatprep.subr.mxu0 0.0
        %2381 = vmatpush1.msra.mxu0 %v2259
        %2382 = vmatprep.subr.mxu0 0.0
        %2383 = vmatpush1.msra.mxu0 %v2260
        %2384 = vmatprep.subr.mxu0 0.0
        %2385 = vmatpush1.msra.mxu0 %v2261
        %2386 = vmatprep.subr.mxu0 0.0
        %2387 = vmatpush1.msra.mxu0 %v2262
        %2388 = vmatprep.subr.mxu0 0.0
        %2389 = vmatpush1.msra.mxu0 %v2263
        %2390 = vmatprep.subr.mxu0 0.0
        %2391 = vmatpush1.msra.mxu0 %v2264
        %2392 = vmatprep.subr.mxu0 0.0
        %2393 = vmatpush1.msra.mxu0 %v2265
        %2394 = vmatprep.subr.mxu0 0.0
        %2395 = vmatpush1.msra.mxu0 %v2266
        %2396 = vmatprep.subr.mxu0 0.0
        %2397 = vmatpush1.msra.mxu0 %v2267
        %2398 = vmatprep.subr.mxu0 0.0
        %2399 = vmatpush1.msra.mxu0 %v2268
        %2400 = vmatprep.subr.mxu0 0.0
        %2401 = vmatpush1.msra.mxu0 %v2269
        %2402 = vmatprep.subr.mxu0 0.0
        %2403 = vmatpush1.msra.mxu0 %v2270
        %2404 = vmatprep.subr.mxu0 0.0
        %2405 = vmatpush1.msra.mxu0 %v2271
        %2406 = vmatprep.subr.mxu0 0.0
        %2407 = vmatpush1.msra.mxu0 %v2272
        %2408 = vmatprep.mubr.f32.mxu0 %v2207
        %2409 = vmatmul.mubr.f32.gmra.mrb[0].mxu0 %v2205
        %v2410 = vpop.f32.mrb[0].mxu0
        %v2411 = vadd.f32 %v2341, %v2410
        %v2412 = vpop.f32.mrb[0].mxu0
        %2413 = vdwg.mxu0
        %v2414 = vmax.f32 %v2411, 0.0
        %v2415 = vld [vmem:[#allocation14] sm:$0xff]
        %v2416 = vld [vmem:[#allocation14 + $0x8] sm:$0xff]
        %v2417 = vld [vmem:[#allocation14 + $0x10] sm:$0xff]
        %v2418 = vld [vmem:[#allocation14 + $0x18] sm:$0xff]
        %v2419 = vld [vmem:[#allocation14 + $0x20] sm:$0xff]
        %v2420 = vld [vmem:[#allocation14 + $0x28] sm:$0xff]
        %v2421 = vld [vmem:[#allocation14 + $0x30] sm:$0xff]
        %v2422 = vld [vmem:[#allocation14 + $0x38] sm:$0xff]
        %v2423 = vld [vmem:[#allocation16] sm:$0x1]
        %vm2424 = vcmask 523264
        %v2426 = vsel %vm2424, %v2414, 0
        %2428 = vmatprep.subr.mxu0 0.0
        %2429 = vmatpush1.msra.mxu0 %v2415
        %2430 = vmatprep.subr.mxu0 0.0
        %2431 = vmatpush1.msra.mxu0 %v2416
        %2432 = vmatprep.subr.mxu0 0.0
        %2433 = vmatpush1.msra.mxu0 %v2417
        %2434 = vmatprep.subr.mxu0 0.0
        %2435 = vmatpush1.msra.mxu0 %v2418
        %2436 = vmatprep.subr.mxu0 0.0
        %2437 = vmatpush1.msra.mxu0 %v2419
        %2438 = vmatprep.subr.mxu0 0.0
        %2439 = vmatpush1.msra.mxu0 %v2420
        %2440 = vmatprep.subr.mxu0 0.0
        %2441 = vmatpush1.msra.mxu0 %v2421
        %2442 = vmatprep.subr.mxu0 0.0
        %2443 = vmatpush1.msra.mxu0 %v2422
        %2444 = vmatprep.subr.mxu0 0.0
        %2445 = vmatpush1.msra.mxu0 0.0
        %2446 = vmatprep.subr.mxu0 0.0
        %2447 = vmatpush1.msra.mxu0 0.0
        %2448 = vmatprep.subr.mxu0 0.0
        %2449 = vmatpush1.msra.mxu0 0.0
        %2450 = vmatprep.subr.mxu0 0.0
        %2451 = vmatpush1.msra.mxu0 0.0
        %2452 = vmatprep.subr.mxu0 0.0
        %2453 = vmatpush1.msra.mxu0 0.0
        %2454 = vmatprep.subr.mxu0 0.0
        %2455 = vmatpush1.msra.mxu0 0.0
        %2456 = vmatprep.subr.mxu0 0.0
        %2457 = vmatpush1.msra.mxu0 0.0
        %2458 = vmatprep.subr.mxu0 0.0
        %2459 = vmatpush1.msra.mxu0 0.0
        %2460 = vmatprep.subr.mxu0 0.0
        %2461 = vmatpush1.msra.mxu0 0.0
        %2462 = vmatprep.subr.mxu0 0.0
        %2463 = vmatpush1.msra.mxu0 0.0
        %2464 = vmatprep.subr.mxu0 0.0
        %2465 = vmatpush1.msra.mxu0 0.0
        %2466 = vmatprep.subr.mxu0 0.0
        %2467 = vmatpush1.msra.mxu0 0.0
        %2468 = vmatprep.subr.mxu0 0.0
        %2469 = vmatpush1.msra.mxu0 0.0
        %2470 = vmatprep.subr.mxu0 0.0
        %2471 = vmatpush1.msra.mxu0 0.0
        %2472 = vmatprep.subr.mxu0 0.0
        %2473 = vmatpush1.msra.mxu0 0.0
        %2474 = vmatprep.subr.mxu0 0.0
        %2475 = vmatpush1.msra.mxu0 0.0
        %2476 = vmatprep.subr.mxu0 0.0
        %2477 = vmatpush1.msra.mxu0 0.0
        %2478 = vmatprep.subr.mxu0 0.0
        %2479 = vmatpush1.msra.mxu0 0.0
        %2480 = vmatprep.subr.mxu0 0.0
        %2481 = vmatpush1.msra.mxu0 0.0
        %2482 = vmatprep.subr.mxu0 0.0
        %2483 = vmatpush1.msra.mxu0 0.0
        %2484 = vmatprep.subr.mxu0 0.0
        %2485 = vmatpush1.msra.mxu0 0.0
        %2486 = vmatprep.subr.mxu0 0.0
        %2487 = vmatpush1.msra.mxu0 0.0
        %2488 = vmatprep.subr.mxu0 0.0
        %2489 = vmatpush1.msra.mxu0 0.0
        %2490 = vmatprep.subr.mxu0 0.0
        %2491 = vmatpush1.msra.mxu0 0.0
        %2492 = vmatprep.mubr.f32.mxu0 0.0
        %2493 = vmatmul.mubr.f32.gmra.mrb[0].mxu0 %v2426
        %v2494 = vpop.f32.mrb[0].mxu0
        %v2495 = vadd.f32 %v2423, %v2494
        %v2496 = vpop.f32.mrb[0].mxu0
        %2497 = vdwg.mxu0
        %2498 = vst [vmem:[%s422] sm:$0x1] %v2495
        %p2499 = scmp.lt.s32.totalorder %s24, 1
        %s2500 = scalar_select %p2499, %s24, 1
        %s2501 = scalar_lea.vmem %s9, %s2500
        // Predicated region
        $region85: #{unbounded_grid_locnet_forward.1} parent=55 // pred_check
          %p2502 = pneg %p236
        $region86: #{unbounded_grid_locnet_forward.1} parent=55 // pred_check_branch
          %2504 = sbr.rel (%p2502) target = $region88
        $region87: #{unbounded_grid_locnet_forward.1} parent=55 // pred_region
          _
        $region88: #{unbounded_grid_locnet_forward.1} parent=55 // pred_fallthru
          _
      $region56: #{unbounded_grid_locnet_forward.1} parent=5 // pred_fallthru
        _
      %p2505 = scmp.le.s32.totalorder 2, %s19
      // Predicated region
      $region89: #{unbounded_grid_locnet_forward.1} parent=5 // pred_check
        %p2506 = pneg %p2505
      $region90: #{unbounded_grid_locnet_forward.1} parent=5 // pred_check_branch
        %2508 = sbr.rel (%p2506) target = $region92
      $region91: #{unbounded_grid_locnet_forward.1} parent=5 // pred_region
        %s2509 = ssub.s32 %s19, 2
        // Predicated region
        $region93: #{unbounded_grid_locnet_forward.1} parent=91 // pred_check
          %p2510 = pneg %p242
        $region94: #{unbounded_grid_locnet_forward.1} parent=91 // pred_check_branch
          %2512 = sbr.rel (%p2510) target = $region96
        $region95: #{unbounded_grid_locnet_forward.1} parent=91 // pred_region
          %p2513 = scmp.lt.s32.totalorder %s25, 1
          %s2514 = scalar_select %p2513, %s25, 1
          %s2515 = scalar_lea.vmem %s9, %s2514
        $region96: #{unbounded_grid_locnet_forward.1} parent=91 // pred_fallthru
          _
      $region92: #{unbounded_grid_locnet_forward.1} parent=5 // pred_fallthru
        _
    $region6: #{unbounded_grid_locnet_forward.1} parent=1 // loop_footer
      %s23 = sadd.s32 1, %s19
    $region7: #{unbounded_grid_locnet_forward.1} parent=1 // loop_footer_branch
      %18 = sbr.rel target = $region3
    $region8: #{unbounded_grid_locnet_forward.1} parent=1 // loop_exit
      _
    %2516 = vsyncpa [#allocation7], 1
    %s2517 = scalar_lea.sflag [#allocation7], 1
    %2518 = vsyncpa %s2517, 1
    %2519 = vsyncpa [#allocation9], 1
    %2520 = vsyncpa [#allocation12], 1
    %2521 = vsyncpa [#allocation15], 1

</llo_original>
